<compile_context>
chip_gen: v7x
topology: tpu7x:2x2x1
jax: 0.10.0
libtpu: 0.0.40
codegen_flags: <defaults>
</compile_context>

<pallas_src>
import jax
import jax.numpy as jnp
from jax.experimental import pallas as pl
from jax.experimental.pallas import tpu as pltpu

# Logical sizes (from the PyTorch module) and padded hardware sizes.
IN1, H1, O1, H2, O2 = 50, 500, 300, 50, 3
IN1_P, H1_P, O1_P, H2_P, O2_P = 128, 512, 384, 128, 128

_NEG_INF = -1e30


def assignment_nn_kernel(x_ref,
                         wf_ref, bf_ref,
                         wfh_ref, bfh_ref,
                         wg_ref, bg_ref,
                         wgh_ref, bgh_ref,
                         out_ref):
    x = x_ref[...]                                                    # (TB, 128) bf16

    # f: relu(x @ Wf + bf)        -- MXU in bf16, f32 accumulation
    a = jnp.dot(x, wf_ref[...], preferred_element_type=jnp.float32) + bf_ref[...]
    a = jnp.maximum(a, 0.0)                                           # (TB, 512) f32

    # f_h: relu(a @ Wfh + bfh)
    b = jnp.dot(a.astype(jnp.bfloat16), wfh_ref[...],
                preferred_element_type=jnp.float32) + bfh_ref[...]
    b = jnp.maximum(b, 0.0)                                           # (TB, 384)

    # g: tanh(b @ Wg + bg)
    c = jnp.tanh(jnp.dot(b.astype(jnp.bfloat16), wg_ref[...],
                         preferred_element_type=jnp.float32) + bg_ref[...])   # (TB, 128)

    # g_h: tanh(c @ Wgh + bgh)   (head padded to 128 lanes; only first 3 are real)
    d = jnp.tanh(jnp.dot(c.astype(jnp.bfloat16), wgh_ref[...],
                         preferred_element_type=jnp.float32) + bgh_ref[...])  # (TB, 128)

    # Mask padded logit columns so they cannot perturb the log_softmax.
    col = jax.lax.broadcasted_iota(jnp.int32, d.shape, 1)
    d = jnp.where(col < O2, d, _NEG_INF)

    # log_softmax over the 3 real classes (padded cols -> ~0 contribution).
    m = jnp.max(d, axis=1, keepdims=True)
    z = d - m
    lse = jnp.log(jnp.sum(jnp.exp(z), axis=1, keepdims=True))
    out_ref[...] = z - lse                                            # (TB, 128) f32, lane-dense store


def _pad2(x, rows, cols):
    return jnp.pad(x, ((0, rows - x.shape[0]), (0, cols - x.shape[1])))


def _round_up(v, m):
    return ((v + m - 1) // m) * m


def _vmem_limit_bytes():
    # Generation-aware scoped-VMEM budget: ~3/4 of physical, never above 64 MiB.
    # (v7x: 64 MiB/TC -> 48 MiB;  v5e/v6e: 128 MiB -> 64 MiB.)
    try:
        phys = pltpu.get_tpu_info().vmem_capacity_bytes
    except Exception:
        phys = 64 * 1024 * 1024
    return int(min(phys * 3 // 4, 64 * 1024 * 1024))


def _max_tile_rows(vmem_limit):
    # ~8 KiB/row of f32 intermediates + double-buffered bf16 input / f32 output,
    # plus ~2 MiB for weights/biases and compiler slack.
    budget = vmem_limit - 2 * 1024 * 1024
    return max(16, (budget // (8 * 1024)) // 16 * 16)


def _build_call(tb, m_pad, vmem_limit, weight_pipeline):
    const = lambda i: (0, 0)
    if weight_pipeline is None:
        wspec = lambda shape: pl.BlockSpec(shape, const)
    else:
        # Weights/biases never change across the grid -> single-buffer them.
        wspec = lambda shape: pl.BlockSpec(shape, const, pipeline_mode=weight_pipeline)

    weight_bytes = (2 * (IN1_P * H1_P + H1_P * O1_P + O1_P * H2_P + H2_P * O2_P)
                    + 4 * (H1_P + O1_P + H2_P + O2_P))
    cost = pl.CostEstimate(
        flops=2 * m_pad * (IN1_P * H1_P + H1_P * O1_P + O1_P * H2_P + H2_P * O2_P),
        transcendentals=m_pad * (H2_P + 2 * O2_P),          # tanh x2 + exp
        bytes_accessed=m_pad * (IN1_P * 2 + O2_P * 4) + weight_bytes,
    )

    return pl.pallas_call(
        assignment_nn_kernel,
        out_shape=jax.ShapeDtypeStruct((m_pad, O2_P), jnp.float32),
        grid_spec=pltpu.PrefetchScalarGridSpec(
            num_scalar_prefetch=0,
            grid=(m_pad // tb,),
            in_specs=[
                pl.BlockSpec((tb, IN1_P), lambda i: (i, 0)),   # streamed bf16 activations
                wspec((IN1_P, H1_P)),                          # weights: VMEM-resident
                wspec((1, H1_P)),
                wspec((H1_P, O1_P)),
                wspec((1, O1_P)),
                wspec((O1_P, H2_P)),
                wspec((1, H2_P)),
                wspec((H2_P, O2_P)),
                wspec((1, O2_P)),
            ],
            out_specs=pl.BlockSpec((tb, O2_P), lambda i: (i, 0)),
        ),
        compiler_params=pltpu.CompilerParams(
            dimension_semantics=("parallel",),      # v7x: shard batch tiles across 2 TCs
            vmem_limit_bytes=vmem_limit,
        ),
        cost_estimate=cost,
    )


def assignment_nn(p, h, params, *, block_rows=1024):
    """params are the logical (unpadded, f32) weights; padding/casting happens here."""
    wf, bf, wfh, bfh, wg, bg, wgh, bgh = params

    # Stack both branches into a single batch (torch.cat dim-0 semantics) as bf16.
    x = jnp.concatenate([p, h], axis=0).astype(jnp.bfloat16)          # (2B, 50) bf16
    M = x.shape[0]

    vmem_limit = _vmem_limit_bytes()

    # Batch tile: multiple of 16 (bf16 sublane packing), capped by the VMEM budget,
    # and clamped so the grid has >= 2 tiles whenever the batch allows (megacore).
    m16 = _round_up(M, 16)
    tb = min(int(block_rows),
             _max_tile_rows(vmem_limit),
             _round_up(pl.cdiv(m16, 2), 16))
    tb = _round_up(max(tb, 16), 16)
    m_pad = _round_up(m16, tb)
    x = _pad2(x, m_pad, IN1_P)

    # Pad weights/biases; zero-padded rows/cols contribute nothing -> results unchanged.
    wf_p = _pad2(wf, IN1_P, H1_P).astype(jnp.bfloat16)
    wfh_p = _pad2(wfh, H1_P, O1_P).astype(jnp.bfloat16)
    wg_p = _pad2(wg, O1_P, H2_P).astype(jnp.bfloat16)
    wgh_p = _pad2(wgh, H2_P, O2_P).astype(jnp.bfloat16)
    bf_p = _pad2(bf, 1, H1_P).astype(jnp.float32)
    bfh_p = _pad2(bfh, 1, O1_P).astype(jnp.float32)
    bg_p = _pad2(bg, 1, H2_P).astype(jnp.float32)
    bgh_p = _pad2(bgh, 1, O2_P).astype(jnp.float32)

    args = (x, wf_p, bf_p, wfh_p, bfh_p, wg_p, bg_p, wgh_p, bgh_p)
    try:
        out = _build_call(tb, m_pad, vmem_limit, pl.Buffered(1))(*args)
    except Exception:
        # Fallback for versions without single-buffered pipeline_mode support.
        out = _build_call(tb, m_pad, vmem_limit, None)(*args)

    return out[:M, :O2]


def init_params(key):
    # Deterministic init mirroring nn.Linear's U(-1/sqrt(fan_in), 1/sqrt(fan_in)).
    # Weights are stored pre-transposed as (in_features, out_features).
    ks = jax.random.split(key, 8)

    def lin(kw, kb, fan_in, fan_out):
        bound = 1.0 / (fan_in ** 0.5)
        W = jax.random.uniform(kw, (fan_in, fan_out), jnp.float32, -bound, bound)
        b = jax.random.uniform(kb, (1, fan_out), jnp.float32, -bound, bound)
        return W, b

    wf, bf = lin(ks[0], ks[1], IN1, H1)      # self.f
    wfh, bfh = lin(ks[2], ks[3], H1, O1)     # self.f_h
    wg, bg = lin(ks[4], ks[5], O1, H2)       # self.g
    wgh, bgh = lin(ks[6], ks[7], H2, O2)     # self.g_h
    return (wf, bf, wfh, bfh, wg, bg, wgh, bgh)


def assignment_nn_ref(p, h, params):
    # Pure-JAX f32 reference matching the PyTorch forward exactly.
    wf, bf, wfh, bfh, wg, bg, wgh, bgh = params

    def f_branch(x):
        a = jnp.maximum(x @ wf + bf, 0.0)
        return jnp.maximum(a @ wfh + bfh, 0.0)

    out = jnp.concatenate([f_branch(p), f_branch(h)], axis=0)
    out = jnp.tanh(out @ wg + bg)
    out = jnp.tanh(out @ wgh + bgh)
    return jax.nn.log_softmax(out, axis=1)


if __name__ == "__main__":
    key = jax.random.PRNGKey(0)
    kp, kh, kparams = jax.random.split(key, 3)
    params = init_params(kparams)

    # Small test (single tile).
    B = 4
    p = jax.random.normal(kp, (B, IN1), jnp.float32)
    h = jax.random.normal(kh, (B, IN1), jnp.float32)
    out = jax.block_until_ready(assignment_nn(p, h, params))
    ref = jax.block_until_ready(assignment_nn_ref(p, h, params))
    assert out.shape == (2 * B, O2)
    # bf16 matmuls / bf16 streamed activations (f32 accumulation) -> loose tolerance.
    assert jnp.allclose(out, ref, atol=2e-2, rtol=2e-2)

    # Larger test exercising a multi-tile grid (+ row padding / output-column slicing).
    B2 = 20
    p2 = jax.random.normal(jax.random.fold_in(kp, 1), (B2, IN1), jnp.float32)
    h2 = jax.random.normal(jax.random.fold_in(kh, 1), (B2, IN1), jnp.float32)
    out2 = jax.block_until_ready(assignment_nn(p2, h2, params, block_rows=16))
    ref2 = jax.block_until_ready(assignment_nn_ref(p2, h2, params))
    assert out2.shape == (2 * B2, O2)
    assert jnp.allclose(out2, ref2, atol=2e-2, rtol=2e-2)

    print("KERNEL_OK")
</pallas_src>

<mosaic_0001>
module attributes {stable_mosaic.version = 11 : i64} {
  func.func @assignment_nn_kernel(%arg0: i32, %arg1: memref<16x128xbf16, #tpu.memory_space<vmem>>, %arg2: memref<128x512xbf16, #tpu.memory_space<vmem>>, %arg3: memref<1x512xf32, #tpu.memory_space<vmem>>, %arg4: memref<512x384xbf16, #tpu.memory_space<vmem>>, %arg5: memref<1x384xf32, #tpu.memory_space<vmem>>, %arg6: memref<384x128xbf16, #tpu.memory_space<vmem>>, %arg7: memref<1x128xf32, #tpu.memory_space<vmem>>, %arg8: memref<128x128xbf16, #tpu.memory_space<vmem>>, %arg9: memref<1x128xf32, #tpu.memory_space<vmem>>, %arg10: memref<16x128xf32, #tpu.memory_space<vmem>>) attributes {dimension_semantics = [#tpu.dimension_semantics<parallel>], iteration_bounds = array<i64: 1>, scalar_prefetch = 0 : i64, scratch_operands = 0 : i64, tpu.core_type = #tpu.core_type<tc>, window_params = [{transform_indices = @transform_0, window_bounds = array<i64: 16, 128>}, {pipeline_mode = #tpu.pipeline_mode<synchronous>, transform_indices = @transform_1, window_bounds = array<i64: 128, 512>}, {pipeline_mode = #tpu.pipeline_mode<synchronous>, transform_indices = @transform_2, window_bounds = array<i64: 1, 512>}, {pipeline_mode = #tpu.pipeline_mode<synchronous>, transform_indices = @transform_3, window_bounds = array<i64: 512, 384>}, {pipeline_mode = #tpu.pipeline_mode<synchronous>, transform_indices = @transform_4, window_bounds = array<i64: 1, 384>}, {pipeline_mode = #tpu.pipeline_mode<synchronous>, transform_indices = @transform_5, window_bounds = array<i64: 384, 128>}, {pipeline_mode = #tpu.pipeline_mode<synchronous>, transform_indices = @transform_6, window_bounds = array<i64: 1, 128>}, {pipeline_mode = #tpu.pipeline_mode<synchronous>, transform_indices = @transform_7, window_bounds = array<i64: 128, 128>}, {pipeline_mode = #tpu.pipeline_mode<synchronous>, transform_indices = @transform_8, window_bounds = array<i64: 1, 128>}, {transform_indices = @transform_9, window_bounds = array<i64: 16, 128>}]} {
    %c0 = arith.constant 0 : index
    %c0_0 = arith.constant 0 : index
    %0 = vector.load %arg1[%c0, %c0_0] : memref<16x128xbf16, #tpu.memory_space<vmem>>, vector<16x128xbf16>
    %c0_1 = arith.constant 0 : index
    %c0_2 = arith.constant 0 : index
    %1 = vector.load %arg2[%c0_1, %c0_2] : memref<128x512xbf16, #tpu.memory_space<vmem>>, vector<128x512xbf16>
    %cst = arith.constant dense<0.000000e+00> : vector<16x512xf32>
    %2 = tpu.matmul %0, %1, %cst {dimension_numbers = #tpu.dot_dimension_numbers<[1], [0], [0], [1], [0, 0, 1, 1], [], []>} : vector<16x128xbf16>, vector<128x512xbf16>, vector<16x512xf32> -> vector<16x512xf32>
    %c0_3 = arith.constant 0 : index
    %c0_4 = arith.constant 0 : index
    %3 = vector.load %arg3[%c0_3, %c0_4] : memref<1x512xf32, #tpu.memory_space<vmem>>, vector<1x512xf32>
    %4 = vector.broadcast %3 : vector<1x512xf32> to vector<16x512xf32>
    %5 = arith.addf %2, %4 : vector<16x512xf32>
    %cst_5 = arith.constant 0.000000e+00 : f32
    %6 = vector.broadcast %cst_5 : f32 to vector<16x512xf32>
    %7 = arith.maximumf %5, %6 : vector<16x512xf32>
    %8 = arith.truncf %7 : vector<16x512xf32> to vector<16x512xbf16>
    %c0_6 = arith.constant 0 : index
    %c0_7 = arith.constant 0 : index
    %9 = vector.load %arg4[%c0_6, %c0_7] : memref<512x384xbf16, #tpu.memory_space<vmem>>, vector<512x384xbf16>
    %cst_8 = arith.constant dense<0.000000e+00> : vector<16x384xf32>
    %10 = tpu.matmul %8, %9, %cst_8 {dimension_numbers = #tpu.dot_dimension_numbers<[1], [0], [0], [1], [0, 0, 1, 1], [], []>} : vector<16x512xbf16>, vector<512x384xbf16>, vector<16x384xf32> -> vector<16x384xf32>
    %c0_9 = arith.constant 0 : index
    %c0_10 = arith.constant 0 : index
    %11 = vector.load %arg5[%c0_9, %c0_10] : memref<1x384xf32, #tpu.memory_space<vmem>>, vector<1x384xf32>
    %12 = vector.broadcast %11 : vector<1x384xf32> to vector<16x384xf32>
    %13 = arith.addf %10, %12 : vector<16x384xf32>
    %cst_11 = arith.constant 0.000000e+00 : f32
    %14 = vector.broadcast %cst_11 : f32 to vector<16x384xf32>
    %15 = arith.maximumf %13, %14 : vector<16x384xf32>
    %16 = arith.truncf %15 : vector<16x384xf32> to vector<16x384xbf16>
    %c0_12 = arith.constant 0 : index
    %c0_13 = arith.constant 0 : index
    %17 = vector.load %arg6[%c0_12, %c0_13] : memref<384x128xbf16, #tpu.memory_space<vmem>>, vector<384x128xbf16>
    %cst_14 = arith.constant dense<0.000000e+00> : vector<16x128xf32>
    %18 = tpu.matmul %16, %17, %cst_14 {dimension_numbers = #tpu.dot_dimension_numbers<[1], [0], [0], [1], [0, 0, 1, 1], [], []>} : vector<16x384xbf16>, vector<384x128xbf16>, vector<16x128xf32> -> vector<16x128xf32>
    %c0_15 = arith.constant 0 : index
    %c0_16 = arith.constant 0 : index
    %19 = vector.load %arg7[%c0_15, %c0_16] : memref<1x128xf32, #tpu.memory_space<vmem>>, vector<1x128xf32>
    %20 = vector.broadcast %19 : vector<1x128xf32> to vector<16x128xf32>
    %21 = arith.addf %18, %20 : vector<16x128xf32>
    %22 = math.tanh %21 : vector<16x128xf32>
    %23 = arith.truncf %22 : vector<16x128xf32> to vector<16x128xbf16>
    %c0_17 = arith.constant 0 : index
    %c0_18 = arith.constant 0 : index
    %24 = vector.load %arg8[%c0_17, %c0_18] : memref<128x128xbf16, #tpu.memory_space<vmem>>, vector<128x128xbf16>
    %cst_19 = arith.constant dense<0.000000e+00> : vector<16x128xf32>
    %25 = tpu.matmul %23, %24, %cst_19 {dimension_numbers = #tpu.dot_dimension_numbers<[1], [0], [0], [1], [0, 0, 1, 1], [], []>} : vector<16x128xbf16>, vector<128x128xbf16>, vector<16x128xf32> -> vector<16x128xf32>
    %c0_20 = arith.constant 0 : index
    %c0_21 = arith.constant 0 : index
    %26 = vector.load %arg9[%c0_20, %c0_21] : memref<1x128xf32, #tpu.memory_space<vmem>>, vector<1x128xf32>
    %27 = vector.broadcast %26 : vector<1x128xf32> to vector<16x128xf32>
    %28 = arith.addf %25, %27 : vector<16x128xf32>
    %29 = math.tanh %28 : vector<16x128xf32>
    %30 = tpu.iota {dimensions = array<i32: 1>} : vector<16x128xi32>
    %c3_i32 = arith.constant 3 : i32
    %31 = vector.broadcast %c3_i32 : i32 to vector<16x128xi32>
    %32 = arith.cmpi slt, %30, %31 : vector<16x128xi32>
    %cst_22 = arith.constant -1.000000e+30 : f32
    %33 = vector.broadcast %cst_22 : f32 to vector<16x128xf32>
    %34 = arith.select %32, %29, %33 : vector<16x128xi1>, vector<16x128xf32>
    %cst_23 = arith.constant dense<0xFF800000> : vector<16xf32>
    %35 = vector.multi_reduction <maximumf>, %34, %cst_23 [1] : vector<16x128xf32> to vector<16xf32>
    %36 = vector.shape_cast %35 : vector<16xf32> to vector<16x1xf32>
    %37 = vector.broadcast %36 : vector<16x1xf32> to vector<16x128xf32>
    %38 = arith.subf %34, %37 : vector<16x128xf32>
    %39 = math.exp %38 : vector<16x128xf32>
    %cst_24 = arith.constant dense<0.000000e+00> : vector<16xf32>
    %40 = vector.multi_reduction <add>, %39, %cst_24 [1] : vector<16x128xf32> to vector<16xf32>
    %41 = vector.shape_cast %40 : vector<16xf32> to vector<16x1xf32>
    %42 = math.log %41 : vector<16x1xf32>
    %43 = vector.broadcast %42 : vector<16x1xf32> to vector<16x128xf32>
    %44 = arith.subf %38, %43 : vector<16x128xf32>
    %c0_25 = arith.constant 0 : index
    %c0_26 = arith.constant 0 : index
    %45 = vector.load %arg10[%c0_25, %c0_26] : memref<16x128xf32, #tpu.memory_space<vmem>>, vector<16x128xf32>
    tpu.vector_store %arg10[%c0_25, %c0_26], %44 {strides = array<i32>} : memref<16x128xf32, #tpu.memory_space<vmem>>, vector<16x128xf32>,
    return
  }
  func.func @transform_0(%arg0: i32) -> (i32, i32) {
    %c0_i32 = arith.constant 0 : i32
    %c0_i32_0 = arith.constant 0 : i32
    return %arg0, %c0_i32 : i32, i32
  }
  func.func @transform_1(%arg0: i32) -> (i32, i32) {
    %c0_i32 = arith.constant 0 : i32
    %c0_i32_0 = arith.constant 0 : i32
    %c0_i32_1 = arith.constant 0 : i32
    return %c0_i32, %c0_i32_0 : i32, i32
  }
  func.func @transform_2(%arg0: i32) -> (i32, i32) {
    %c0_i32 = arith.constant 0 : i32
    %c0_i32_0 = arith.constant 0 : i32
    %c0_i32_1 = arith.constant 0 : i32
    return %c0_i32, %c0_i32_0 : i32, i32
  }
  func.func @transform_3(%arg0: i32) -> (i32, i32) {
    %c0_i32 = arith.constant 0 : i32
    %c0_i32_0 = arith.constant 0 : i32
    %c0_i32_1 = arith.constant 0 : i32
    return %c0_i32, %c0_i32_0 : i32, i32
  }
  func.func @transform_4(%arg0: i32) -> (i32, i32) {
    %c0_i32 = arith.constant 0 : i32
    %c0_i32_0 = arith.constant 0 : i32
    %c0_i32_1 = arith.constant 0 : i32
    return %c0_i32, %c0_i32_0 : i32, i32
  }
  func.func @transform_5(%arg0: i32) -> (i32, i32) {
    %c0_i32 = arith.constant 0 : i32
    %c0_i32_0 = arith.constant 0 : i32
    %c0_i32_1 = arith.constant 0 : i32
    return %c0_i32, %c0_i32_0 : i32, i32
  }
  func.func @transform_6(%arg0: i32) -> (i32, i32) {
    %c0_i32 = arith.constant 0 : i32
    %c0_i32_0 = arith.constant 0 : i32
    %c0_i32_1 = arith.constant 0 : i32
    return %c0_i32, %c0_i32_0 : i32, i32
  }
  func.func @transform_7(%arg0: i32) -> (i32, i32) {
    %c0_i32 = arith.constant 0 : i32
    %c0_i32_0 = arith.constant 0 : i32
    %c0_i32_1 = arith.constant 0 : i32
    return %c0_i32, %c0_i32_0 : i32, i32
  }
  func.func @transform_8(%arg0: i32) -> (i32, i32) {
    %c0_i32 = arith.constant 0 : i32
    %c0_i32_0 = arith.constant 0 : i32
    %c0_i32_1 = arith.constant 0 : i32
    return %c0_i32, %c0_i32_0 : i32, i32
  }
  func.func @transform_9(%arg0: i32) -> (i32, i32) {
    %c0_i32 = arith.constant 0 : i32
    %c0_i32_0 = arith.constant 0 : i32
    return %arg0, %c0_i32 : i32, i32
  }
}

module attributes {stable_mosaic.version = 11 : i64} {
  func.func @assignment_nn_kernel(%arg0: i32, %arg1: memref<16x128xbf16, #tpu.memory_space<vmem>>, %arg2: memref<128x512xbf16, #tpu.memory_space<vmem>>, %arg3: memref<1x512xf32, #tpu.memory_space<vmem>>, %arg4: memref<512x384xbf16, #tpu.memory_space<vmem>>, %arg5: memref<1x384xf32, #tpu.memory_space<vmem>>, %arg6: memref<384x128xbf16, #tpu.memory_space<vmem>>, %arg7: memref<1x128xf32, #tpu.memory_space<vmem>>, %arg8: memref<128x128xbf16, #tpu.memory_space<vmem>>, %arg9: memref<1x128xf32, #tpu.memory_space<vmem>>, %arg10: memref<16x128xf32, #tpu.memory_space<vmem>>) attributes {dimension_semantics = [#tpu.dimension_semantics<parallel>], iteration_bounds = array<i64: 1>, scalar_prefetch = 0 : i64, scratch_operands = 0 : i64, tpu.core_type = #tpu.core_type<tc>, window_params = [{transform_indices = @transform_0, window_bounds = array<i64: 16, 128>}, {pipeline_mode = #tpu.pipeline_mode<synchronous>, transform_indices = @transform_1, window_bounds = array<i64: 128, 512>}, {pipeline_mode = #tpu.pipeline_mode<synchronous>, transform_indices = @transform_2, window_bounds = array<i64: 1, 512>}, {pipeline_mode = #tpu.pipeline_mode<synchronous>, transform_indices = @transform_3, window_bounds = array<i64: 512, 384>}, {pipeline_mode = #tpu.pipeline_mode<synchronous>, transform_indices = @transform_4, window_bounds = array<i64: 1, 384>}, {pipeline_mode = #tpu.pipeline_mode<synchronous>, transform_indices = @transform_5, window_bounds = array<i64: 384, 128>}, {pipeline_mode = #tpu.pipeline_mode<synchronous>, transform_indices = @transform_6, window_bounds = array<i64: 1, 128>}, {pipeline_mode = #tpu.pipeline_mode<synchronous>, transform_indices = @transform_7, window_bounds = array<i64: 128, 128>}, {pipeline_mode = #tpu.pipeline_mode<synchronous>, transform_indices = @transform_8, window_bounds = array<i64: 1, 128>}, {transform_indices = @transform_9, window_bounds = array<i64: 16, 128>}]} {
    %c0 = arith.constant 0 : index
    %c0_0 = arith.constant 0 : index
    %0 = vector.load %arg1[%c0, %c0_0] : memref<16x128xbf16, #tpu.memory_space<vmem>>, vector<16x128xbf16>
    %c0_1 = arith.constant 0 : index
    %c0_2 = arith.constant 0 : index
    %1 = vector.load %arg2[%c0_1, %c0_2] : memref<128x512xbf16, #tpu.memory_space<vmem>>, vector<128x512xbf16>
    %cst = arith.constant dense<0.000000e+00> : vector<16x512xf32>
    %2 = tpu.matmul %0, %1, %cst {dimension_numbers = #tpu.dot_dimension_numbers<[1], [0], [0], [1], [0, 0, 1, 1], [], []>} : vector<16x128xbf16>, vector<128x512xbf16>, vector<16x512xf32> -> vector<16x512xf32>
    %c0_3 = arith.constant 0 : index
    %c0_4 = arith.constant 0 : index
    %3 = vector.load %arg3[%c0_3, %c0_4] : memref<1x512xf32, #tpu.memory_space<vmem>>, vector<1x512xf32>
    %4 = vector.broadcast %3 : vector<1x512xf32> to vector<16x512xf32>
    %5 = arith.addf %2, %4 : vector<16x512xf32>
    %cst_5 = arith.constant 0.000000e+00 : f32
    %6 = vector.broadcast %cst_5 : f32 to vector<16x512xf32>
    %7 = arith.maximumf %5, %6 : vector<16x512xf32>
    %8 = arith.truncf %7 : vector<16x512xf32> to vector<16x512xbf16>
    %c0_6 = arith.constant 0 : index
    %c0_7 = arith.constant 0 : index
    %9 = vector.load %arg4[%c0_6, %c0_7] : memref<512x384xbf16, #tpu.memory_space<vmem>>, vector<512x384xbf16>
    %cst_8 = arith.constant dense<0.000000e+00> : vector<16x384xf32>
    %10 = tpu.matmul %8, %9, %cst_8 {dimension_numbers = #tpu.dot_dimension_numbers<[1], [0], [0], [1], [0, 0, 1, 1], [], []>} : vector<16x512xbf16>, vector<512x384xbf16>, vector<16x384xf32> -> vector<16x384xf32>
    %c0_9 = arith.constant 0 : index
    %c0_10 = arith.constant 0 : index
    %11 = vector.load %arg5[%c0_9, %c0_10] : memref<1x384xf32, #tpu.memory_space<vmem>>, vector<1x384xf32>
    %12 = vector.broadcast %11 : vector<1x384xf32> to vector<16x384xf32>
    %13 = arith.addf %10, %12 : vector<16x384xf32>
    %cst_11 = arith.constant 0.000000e+00 : f32
    %14 = vector.broadcast %cst_11 : f32 to vector<16x384xf32>
    %15 = arith.maximumf %13, %14 : vector<16x384xf32>
    %16 = arith.truncf %15 : vector<16x384xf32> to vector<16x384xbf16>
    %c0_12 = arith.constant 0 : index
    %c0_13 = arith.constant 0 : index
    %17 = vector.load %arg6[%c0_12, %c0_13] : memref<384x128xbf16, #tpu.memory_space<vmem>>, vector<384x128xbf16>
    %cst_14 = arith.constant dense<0.000000e+00> : vector<16x128xf32>
    %18 = tpu.matmul %16, %17, %cst_14 {dimension_numbers = #tpu.dot_dimension_numbers<[1], [0], [0], [1], [0, 0, 1, 1], [], []>} : vector<16x384xbf16>, vector<384x128xbf16>, vector<16x128xf32> -> vector<16x128xf32>
    %c0_15 = arith.constant 0 : index
    %c0_16 = arith.constant 0 : index
    %19 = vector.load %arg7[%c0_15, %c0_16] : memref<1x128xf32, #tpu.memory_space<vmem>>, vector<1x128xf32>
    %20 = vector.broadcast %19 : vector<1x128xf32> to vector<16x128xf32>
    %21 = arith.addf %18, %20 : vector<16x128xf32>
    %22 = math.tanh %21 : vector<16x128xf32>
    %23 = arith.truncf %22 : vector<16x128xf32> to vector<16x128xbf16>
    %c0_17 = arith.constant 0 : index
    %c0_18 = arith.constant 0 : index
    %24 = vector.load %arg8[%c0_17, %c0_18] : memref<128x128xbf16, #tpu.memory_space<vmem>>, vector<128x128xbf16>
    %cst_19 = arith.constant dense<0.000000e+00> : vector<16x128xf32>
    %25 = tpu.matmul %23, %24, %cst_19 {dimension_numbers = #tpu.dot_dimension_numbers<[1], [0], [0], [1], [0, 0, 1, 1], [], []>} : vector<16x128xbf16>, vector<128x128xbf16>, vector<16x128xf32> -> vector<16x128xf32>
    %c0_20 = arith.constant 0 : index
    %c0_21 = arith.constant 0 : index
    %26 = vector.load %arg9[%c0_20, %c0_21] : memref<1x128xf32, #tpu.memory_space<vmem>>, vector<1x128xf32>
    %27 = vector.broadcast %26 : vector<1x128xf32> to vector<16x128xf32>
    %28 = arith.addf %25, %27 : vector<16x128xf32>
    %29 = math.tanh %28 : vector<16x128xf32>
    %30 = tpu.iota {dimensions = array<i32: 1>} : vector<16x128xi32>
    %c3_i32 = arith.constant 3 : i32
    %31 = vector.broadcast %c3_i32 : i32 to vector<16x128xi32>
    %32 = arith.cmpi slt, %30, %31 : vector<16x128xi32>
    %cst_22 = arith.constant -1.000000e+30 : f32
    %33 = vector.broadcast %cst_22 : f32 to vector<16x128xf32>
    %34 = arith.select %32, %29, %33 : vector<16x128xi1>, vector<16x128xf32>
    %cst_23 = arith.constant dense<0xFF800000> : vector<16xf32>
    %35 = vector.multi_reduction <maximumf>, %34, %cst_23 [1] : vector<16x128xf32> to vector<16xf32>
    %36 = vector.shape_cast %35 : vector<16xf32> to vector<16x1xf32>
    %37 = vector.broadcast %36 : vector<16x1xf32> to vector<16x128xf32>
    %38 = arith.subf %34, %37 : vector<16x128xf32>
    %39 = math.exp %38 : vector<16x128xf32>
    %cst_24 = arith.constant dense<0.000000e+00> : vector<16xf32>
    %40 = vector.multi_reduction <add>, %39, %cst_24 [1] : vector<16x128xf32> to vector<16xf32>
    %41 = vector.shape_cast %40 : vector<16xf32> to vector<16x1xf32>
    %42 = math.log %41 : vector<16x1xf32>
    %43 = vector.broadcast %42 : vector<16x1xf32> to vector<16x128xf32>
    %44 = arith.subf %38, %43 : vector<16x128xf32>
    %c0_25 = arith.constant 0 : index
    %c0_26 = arith.constant 0 : index
    %45 = vector.load %arg10[%c0_25, %c0_26] : memref<16x128xf32, #tpu.memory_space<vmem>>, vector<16x128xf32>
    tpu.vector_store %arg10[%c0_25, %c0_26], %44 {strides = array<i32>} : memref<16x128xf32, #tpu.memory_space<vmem>>, vector<16x128xf32>,
    return
  }
  func.func @transform_0(%arg0: i32) -> (i32, i32) {
    %c0_i32 = arith.constant 0 : i32
    %c0_i32_0 = arith.constant 0 : i32
    return %arg0, %c0_i32 : i32, i32
  }
  func.func @transform_1(%arg0: i32) -> (i32, i32) {
    %c0_i32 = arith.constant 0 : i32
    %c0_i32_0 = arith.constant 0 : i32
    %c0_i32_1 = arith.constant 0 : i32
    return %c0_i32, %c0_i32_0 : i32, i32
  }
  func.func @transform_2(%arg0: i32) -> (i32, i32) {
    %c0_i32 = arith.constant 0 : i32
    %c0_i32_0 = arith.constant 0 : i32
    %c0_i32_1 = arith.constant 0 : i32
    return %c0_i32, %c0_i32_0 : i32, i32
  }
  func.func @transform_3(%arg0: i32) -> (i32, i32) {
    %c0_i32 = arith.constant 0 : i32
    %c0_i32_0 = arith.constant 0 : i32
    %c0_i32_1 = arith.constant 0 : i32
    return %c0_i32, %c0_i32_0 : i32, i32
  }
  func.func @transform_4(%arg0: i32) -> (i32, i32) {
    %c0_i32 = arith.constant 0 : i32
    %c0_i32_0 = arith.constant 0 : i32
    %c0_i32_1 = arith.constant 0 : i32
    return %c0_i32, %c0_i32_0 : i32, i32
  }
  func.func @transform_5(%arg0: i32) -> (i32, i32) {
    %c0_i32 = arith.constant 0 : i32
    %c0_i32_0 = arith.constant 0 : i32
    %c0_i32_1 = arith.constant 0 : i32
    return %c0_i32, %c0_i32_0 : i32, i32
  }
  func.func @transform_6(%arg0: i32) -> (i32, i32) {
    %c0_i32 = arith.constant 0 : i32
    %c0_i32_0 = arith.constant 0 : i32
    %c0_i32_1 = arith.constant 0 : i32
    return %c0_i32, %c0_i32_0 : i32, i32
  }
  func.func @transform_7(%arg0: i32) -> (i32, i32) {
    %c0_i32 = arith.constant 0 : i32
    %c0_i32_0 = arith.constant 0 : i32
    %c0_i32_1 = arith.constant 0 : i32
    return %c0_i32, %c0_i32_0 : i32, i32
  }
  func.func @transform_8(%arg0: i32) -> (i32, i32) {
    %c0_i32 = arith.constant 0 : i32
    %c0_i32_0 = arith.constant 0 : i32
    %c0_i32_1 = arith.constant 0 : i32
    return %c0_i32, %c0_i32_0 : i32, i32
  }
  func.func @transform_9(%arg0: i32) -> (i32, i32) {
    %c0_i32 = arith.constant 0 : i32
    %c0_i32_0 = arith.constant 0 : i32
    return %arg0, %c0_i32 : i32, i32
  }
}

</mosaic_0001>

<llo_original>
// kernel: tpu_custom_call.1
$region0: #{tpu_custom_call.1}
  #allocation0 [shape = 'u32[]', space=smem, size = 0x4, offset = 0x4, fixed_abs, tag = 'smem constant byte address 0x4 - core index']
  #allocation1 [shape = 'u32[144,128]{1,0:T(1,128)}', space=vmem, size = 0x12000, scoped, tag = 'internal scratch']
  %s0 = inlined_call_operand.hbm [shape: bf16[16,128], index: 0, kind: input, shape index: {}]
  %s1 = inlined_call_operand.hbm [shape: bf16[128,512], index: 1, kind: input, shape index: {}]
  %s2 = inlined_call_operand.vmem [shape: f32[1,512], index: 2, kind: input, shape index: {}]
  %s3 = inlined_call_operand.hbm [shape: bf16[512,384], index: 3, kind: input, shape index: {}]
  %s4 = inlined_call_operand.vmem [shape: f32[1,384], index: 4, kind: input, shape index: {}]
  %s5 = inlined_call_operand.hbm [shape: bf16[384,128], index: 5, kind: input, shape index: {}]
  %s6 = inlined_call_operand.vmem [shape: f32[1,128], index: 6, kind: input, shape index: {}]
  %s7 = inlined_call_operand.hbm [shape: bf16[128,128], index: 7, kind: input, shape index: {}]
  %s8 = inlined_call_operand.vmem [shape: f32[1,128], index: 8, kind: input, shape index: {}]
  %s9 = inlined_call_operand.hbm [shape: f32[16,128], index: 9, kind: output, shape index: {}]
  %s10 = sld [smem:[#allocation0]]
  $region66: #{tpu_custom_call.1} parent=0
    _
  %s12 = ssub.s32 1, %s10
  %s13 = scalar_select 0, %s12, %s10
  $region1: #{tpu_custom_call.1} parent=0
    #allocation2 [shape = 'u8[4096]{0}', space=vmem, size = 0x1000, scoped, tag = 'input window, operand 0, single buffered']
    #allocation3 [shape = 's32[1]{0}', space=sflag, size = 0x4, scoped, tag = 'scoped memory for tpu_custom_call.1']
    #allocation4 [shape = 's32[1]{0}', space=sflag, size = 0x4, scoped, tag = 'scoped memory for tpu_custom_call.1']
    #allocation5 [shape = 'u8[131072]{0}', space=vmem, size = 0x20000, scoped, tag = 'input window, operand 1, single buffered']
    #allocation6 [shape = 's32[1]{0}', space=sflag, size = 0x4, scoped, tag = 'scoped memory for tpu_custom_call.1']
    #allocation7 [shape = 'u8[393216]{0}', space=vmem, size = 0x60000, scoped, tag = 'input window, operand 3, single buffered']
    #allocation8 [shape = 'u8[98304]{0}', space=vmem, size = 0x18000, scoped, tag = 'input window, operand 5, single buffered']
    #allocation9 [shape = 's32[1]{0}', space=sflag, size = 0x4, scoped, tag = 'scoped memory for tpu_custom_call.1']
    #allocation10 [shape = 'u8[32768]{0}', space=vmem, size = 0x8000, scoped, tag = 'input window, operand 7, single buffered']
    #allocation11 [shape = 'u8[8192]{0}', space=vmem, size = 0x2000, scoped, tag = 'output window, operand 0, single buffered']
    %14 = vsyncpa [#allocation3], 0
    %15 = vsyncpa [#allocation6], 0
    %16 = vsyncpa [#allocation9], 0
    %17 = vsyncpa [#allocation4], 0
    // Predicated region
    $region2: #{tpu_custom_call.1} parent=1 // pred_check
      _
    $region3: #{tpu_custom_call.1} parent=1 // pred_check_branch
      %19 = sbr.rel (0) target = $region5
    $region4: #{tpu_custom_call.1} parent=1 // pred_region
      %s21 = ssub.s32 128, 128
      %22 = vsyncadd [#allocation3], %s21
      %s23 = sshll.u32 [#allocation2], 4
      %s24 = int_to_ptr.vmem [resolvable:$true] %s23
      %29 = dma.hbm_to_vmem [thread:$0]  %s0, 128, %s24, [#allocation3], 64, 64, 4
    $region5: #{tpu_custom_call.1} parent=1 // pred_fallthru
      _
    // Predicated region
    $region6: #{tpu_custom_call.1} parent=1 // pred_check
      _
    $region7: #{tpu_custom_call.1} parent=1 // pred_check_branch
      %31 = sbr.rel (0) target = $region9
    $region8: #{tpu_custom_call.1} parent=1 // pred_region
      %s33 = ssub.s32 4096, 4096
      %34 = vsyncadd [#allocation6], %s33
      %s35 = sshll.u32 [#allocation5], 4
      %s36 = int_to_ptr.vmem [resolvable:$true] %s35
      %41 = dma.hbm_to_vmem [thread:$0]  %s1, 4096, %s36, [#allocation6], 256, 256, 16
    $region9: #{tpu_custom_call.1} parent=1 // pred_fallthru
      _
    // Predicated region
    $region10: #{tpu_custom_call.1} parent=1 // pred_check
      _
    $region11: #{tpu_custom_call.1} parent=1 // pred_check_branch
      %43 = sbr.rel (0) target = $region13
    $region12: #{tpu_custom_call.1} parent=1 // pred_region
      _
    $region13: #{tpu_custom_call.1} parent=1 // pred_fallthru
      _
    // Predicated region
    $region14: #{tpu_custom_call.1} parent=1 // pred_check
      _
    $region15: #{tpu_custom_call.1} parent=1 // pred_check_branch
      %45 = sbr.rel (0) target = $region17
    $region16: #{tpu_custom_call.1} parent=1 // pred_region
      %s47 = ssub.s32 12288, 12288
      %48 = vsyncadd [#allocation6], %s47
      %s49 = sshll.u32 [#allocation7], 4
      %s50 = int_to_ptr.vmem [resolvable:$true] %s49
      %55 = dma.hbm_to_vmem [thread:$0]  %s3, 12288, %s50, [#allocation6], 192, 192, 12
    $region17: #{tpu_custom_call.1} parent=1 // pred_fallthru
      _
    // Predicated region
    $region18: #{tpu_custom_call.1} parent=1 // pred_check
      _
    $region19: #{tpu_custom_call.1} parent=1 // pred_check_branch
      %57 = sbr.rel (0) target = $region21
    $region20: #{tpu_custom_call.1} parent=1 // pred_region
      _
    $region21: #{tpu_custom_call.1} parent=1 // pred_fallthru
      _
    // Predicated region
    $region22: #{tpu_custom_call.1} parent=1 // pred_check
      _
    $region23: #{tpu_custom_call.1} parent=1 // pred_check_branch
      %59 = sbr.rel (0) target = $region25
    $region24: #{tpu_custom_call.1} parent=1 // pred_region
      %s61 = ssub.s32 3072, 3072
      %62 = vsyncadd [#allocation9], %s61
      %s63 = sshll.u32 [#allocation8], 4
      %s64 = int_to_ptr.vmem [resolvable:$true] %s63
      %69 = dma.hbm_to_vmem [thread:$0]  %s5, 3072, %s64, [#allocation9], 64, 64, 4
    $region25: #{tpu_custom_call.1} parent=1 // pred_fallthru
      _
    // Predicated region
    $region26: #{tpu_custom_call.1} parent=1 // pred_check
      _
    $region27: #{tpu_custom_call.1} parent=1 // pred_check_branch
      %71 = sbr.rel (0) target = $region29
    $region28: #{tpu_custom_call.1} parent=1 // pred_region
      _
    $region29: #{tpu_custom_call.1} parent=1 // pred_fallthru
      _
    // Predicated region
    $region30: #{tpu_custom_call.1} parent=1 // pred_check
      _
    $region31: #{tpu_custom_call.1} parent=1 // pred_check_branch
      %73 = sbr.rel (0) target = $region33
    $region32: #{tpu_custom_call.1} parent=1 // pred_region
      %s75 = ssub.s32 1024, 1024
      %76 = vsyncadd [#allocation9], %s75
      %s77 = sshll.u32 [#allocation10], 4
      %s78 = int_to_ptr.vmem [resolvable:$true] %s77
      %83 = dma.hbm_to_vmem [thread:$0]  %s7, 1024, %s78, [#allocation9], 64, 64, 4
    $region33: #{tpu_custom_call.1} parent=1 // pred_fallthru
      _
    // Predicated region
    $region34: #{tpu_custom_call.1} parent=1 // pred_check
      _
    $region35: #{tpu_custom_call.1} parent=1 // pred_check_branch
      %85 = sbr.rel (0) target = $region37
    $region36: #{tpu_custom_call.1} parent=1 // pred_region
      _
    $region37: #{tpu_custom_call.1} parent=1 // pred_fallthru
      _
    // Predicated region
    $region38: #{tpu_custom_call.1} parent=1 // pred_check
      _
    $region39: #{tpu_custom_call.1} parent=1 // pred_check_branch
      %87 = sbr.rel (0) target = $region41
    $region40: #{tpu_custom_call.1} parent=1 // pred_region
      %88 = dma.done [#allocation3], 128
    $region41: #{tpu_custom_call.1} parent=1 // pred_fallthru
      _
    // Predicated region
    $region42: #{tpu_custom_call.1} parent=1 // pred_check
      _
    $region43: #{tpu_custom_call.1} parent=1 // pred_check_branch
      %90 = sbr.rel (0) target = $region45
    $region44: #{tpu_custom_call.1} parent=1 // pred_region
      %91 = dma.done [#allocation6], 4096
    $region45: #{tpu_custom_call.1} parent=1 // pred_fallthru
      _
    // Predicated region
    $region46: #{tpu_custom_call.1} parent=1 // pred_check
      _
    $region47: #{tpu_custom_call.1} parent=1 // pred_check_branch
      %93 = sbr.rel (0) target = $region49
    $region48: #{tpu_custom_call.1} parent=1 // pred_region
      %94 = dma.done [#allocation6], 12288
    $region49: #{tpu_custom_call.1} parent=1 // pred_fallthru
      _
    // Predicated region
    $region50: #{tpu_custom_call.1} parent=1 // pred_check
      _
    $region51: #{tpu_custom_call.1} parent=1 // pred_check_branch
      %96 = sbr.rel (0) target = $region53
    $region52: #{tpu_custom_call.1} parent=1 // pred_region
      %97 = dma.done [#allocation9], 3072
    $region53: #{tpu_custom_call.1} parent=1 // pred_fallthru
      _
    // Predicated region
    $region54: #{tpu_custom_call.1} parent=1 // pred_check
      _
    $region55: #{tpu_custom_call.1} parent=1 // pred_check_branch
      %99 = sbr.rel (0) target = $region57
    $region56: #{tpu_custom_call.1} parent=1 // pred_region
      %100 = dma.done [#allocation9], 1024
    $region57: #{tpu_custom_call.1} parent=1 // pred_fallthru
      _
    %v102 = vld [vmem:[#allocation2] sm:$0xf]
    %v103 = vld [vmem:[#allocation2 + $0x4] sm:$0xf]
    %v104 = vld [vmem:[#allocation5] sm:$0xff]
    %v105 = vld [vmem:[#allocation5 + $0x8] sm:$0xff]
    %v106 = vld [vmem:[#allocation5 + $0x10] sm:$0xff]
    %v107 = vld [vmem:[#allocation5 + $0x18] sm:$0xff]
    %v108 = vld [vmem:[#allocation5 + $0x20] sm:$0xff]
    %v109 = vld [vmem:[#allocation5 + $0x28] sm:$0xff]
    %v110 = vld [vmem:[#allocation5 + $0x30] sm:$0xff]
    %v111 = vld [vmem:[#allocation5 + $0x38] sm:$0xff]
    %v112 = vld [vmem:[#allocation5 + $0x40] sm:$0xff]
    %v113 = vld [vmem:[#allocation5 + $0x48] sm:$0xff]
    %v114 = vld [vmem:[#allocation5 + $0x50] sm:$0xff]
    %v115 = vld [vmem:[#allocation5 + $0x58] sm:$0xff]
    %v116 = vld [vmem:[#allocation5 + $0x60] sm:$0xff]
    %v117 = vld [vmem:[#allocation5 + $0x68] sm:$0xff]
    %v118 = vld [vmem:[#allocation5 + $0x70] sm:$0xff]
    %v119 = vld [vmem:[#allocation5 + $0x78] sm:$0xff]
    %v120 = vld [vmem:[#allocation5 + $0x80] sm:$0xff]
    %v121 = vld [vmem:[#allocation5 + $0x88] sm:$0xff]
    %v122 = vld [vmem:[#allocation5 + $0x90] sm:$0xff]
    %v123 = vld [vmem:[#allocation5 + $0x98] sm:$0xff]
    %v124 = vld [vmem:[#allocation5 + $0xa0] sm:$0xff]
    %v125 = vld [vmem:[#allocation5 + $0xa8] sm:$0xff]
    %v126 = vld [vmem:[#allocation5 + $0xb0] sm:$0xff]
    %v127 = vld [vmem:[#allocation5 + $0xb8] sm:$0xff]
    %v128 = vld [vmem:[#allocation5 + $0xc0] sm:$0xff]
    %v129 = vld [vmem:[#allocation5 + $0xc8] sm:$0xff]
    %v130 = vld [vmem:[#allocation5 + $0xd0] sm:$0xff]
    %v131 = vld [vmem:[#allocation5 + $0xd8] sm:$0xff]
    %v132 = vld [vmem:[#allocation5 + $0xe0] sm:$0xff]
    %v133 = vld [vmem:[#allocation5 + $0xe8] sm:$0xff]
    %v134 = vld [vmem:[#allocation5 + $0xf0] sm:$0xff]
    %v135 = vld [vmem:[#allocation5 + $0xf8] sm:$0xff]
    %v136 = vld [vmem:[%s2] sm:$0xf]
    %v138 = vlaneseq
    %v139 = vshrl.u32 %v138, 7
    %v140 = vsub.s32 0, %v139
    %v141 = vrot.slane %v136, %v140
    %v142 = vlaneseq
    %v143 = vshrl.u32 %v142, 7
    %v144 = vsub.s32 1, %v143
    %v145 = vrot.slane %v136, %v144
    %v146 = vlaneseq
    %v147 = vshrl.u32 %v146, 7
    %v148 = vsub.s32 2, %v147
    %v149 = vrot.slane %v136, %v148
    %v150 = vlaneseq
    %v151 = vshrl.u32 %v150, 7
    %v152 = vsub.s32 3, %v151
    %v153 = vrot.slane %v136, %v152
    %v160 = vunpack.c.l.b16 %v102
    %v161 = vunpack.c.l.b16 %v103
    %v162 = vpack.c.b16 %v161, %v160
    %v196 = vunpack.c.l.b16 %v104
    %v197 = vunpack.c.h.b16 %v104
    %v198 = vunpack.c.l.b16 %v105
    %v199 = vunpack.c.h.b16 %v105
    %v200 = vunpack.c.l.b16 %v106
    %v201 = vunpack.c.h.b16 %v106
    %v202 = vunpack.c.l.b16 %v107
    %v203 = vunpack.c.h.b16 %v107
    %v204 = vunpack.c.l.b16 %v108
    %v205 = vunpack.c.h.b16 %v108
    %v206 = vunpack.c.l.b16 %v109
    %v207 = vunpack.c.h.b16 %v109
    %v208 = vunpack.c.l.b16 %v110
    %v209 = vunpack.c.h.b16 %v110
    %v210 = vunpack.c.l.b16 %v111
    %v211 = vunpack.c.h.b16 %v111
    %v212 = vunpack.c.l.b16 %v112
    %v213 = vunpack.c.h.b16 %v112
    %v214 = vunpack.c.l.b16 %v113
    %v215 = vunpack.c.h.b16 %v113
    %v216 = vunpack.c.l.b16 %v114
    %v217 = vunpack.c.h.b16 %v114
    %v218 = vunpack.c.l.b16 %v115
    %v219 = vunpack.c.h.b16 %v115
    %v220 = vunpack.c.l.b16 %v116
    %v221 = vunpack.c.h.b16 %v116
    %v222 = vunpack.c.l.b16 %v117
    %v223 = vunpack.c.h.b16 %v117
    %v224 = vunpack.c.l.b16 %v118
    %v225 = vunpack.c.h.b16 %v118
    %v226 = vunpack.c.l.b16 %v119
    %v227 = vunpack.c.h.b16 %v119
    %v228 = vunpack.c.l.b16 %v120
    %v229 = vunpack.c.h.b16 %v120
    %v230 = vunpack.c.l.b16 %v121
    %v231 = vunpack.c.h.b16 %v121
    %v232 = vunpack.c.l.b16 %v122
    %v233 = vunpack.c.h.b16 %v122
    %v234 = vunpack.c.l.b16 %v123
    %v235 = vunpack.c.h.b16 %v123
    %v236 = vunpack.c.l.b16 %v124
    %v237 = vunpack.c.h.b16 %v124
    %v238 = vunpack.c.l.b16 %v125
    %v239 = vunpack.c.h.b16 %v125
    %v240 = vunpack.c.l.b16 %v126
    %v241 = vunpack.c.h.b16 %v126
    %v242 = vunpack.c.l.b16 %v127
    %v243 = vunpack.c.h.b16 %v127
    %v244 = vunpack.c.l.b16 %v128
    %v245 = vunpack.c.h.b16 %v128
    %v246 = vunpack.c.l.b16 %v129
    %v247 = vunpack.c.h.b16 %v129
    %v248 = vunpack.c.l.b16 %v130
    %v249 = vunpack.c.h.b16 %v130
    %v250 = vunpack.c.l.b16 %v131
    %v251 = vunpack.c.h.b16 %v131
    %v252 = vunpack.c.l.b16 %v132
    %v253 = vunpack.c.h.b16 %v132
    %v254 = vunpack.c.l.b16 %v133
    %v255 = vunpack.c.h.b16 %v133
    %v256 = vunpack.c.l.b16 %v134
    %v257 = vunpack.c.h.b16 %v134
    %v258 = vunpack.c.l.b16 %v135
    %v259 = vunpack.c.h.b16 %v135
    %v260 = vpack.c.b16 %v200, %v196
    %v261 = vpack.c.b16 %v201, %v197
    %v262 = vpack.c.b16 %v202, %v198
    %v263 = vpack.c.b16 %v203, %v199
    %v264 = vpack.c.b16 %v208, %v204
    %v265 = vpack.c.b16 %v209, %v205
    %v266 = vpack.c.b16 %v210, %v206
    %v267 = vpack.c.b16 %v211, %v207
    %v268 = vpack.c.b16 %v216, %v212
    %v269 = vpack.c.b16 %v217, %v213
    %v270 = vpack.c.b16 %v218, %v214
    %v271 = vpack.c.b16 %v219, %v215
    %v272 = vpack.c.b16 %v224, %v220
    %v273 = vpack.c.b16 %v225, %v221
    %v274 = vpack.c.b16 %v226, %v222
    %v275 = vpack.c.b16 %v227, %v223
    %v276 = vpack.c.b16 %v232, %v228
    %v277 = vpack.c.b16 %v233, %v229
    %v278 = vpack.c.b16 %v234, %v230
    %v279 = vpack.c.b16 %v235, %v231
    %v280 = vpack.c.b16 %v240, %v236
    %v281 = vpack.c.b16 %v241, %v237
    %v282 = vpack.c.b16 %v242, %v238
    %v283 = vpack.c.b16 %v243, %v239
    %v284 = vpack.c.b16 %v248, %v244
    %v285 = vpack.c.b16 %v249, %v245
    %v286 = vpack.c.b16 %v250, %v246
    %v287 = vpack.c.b16 %v251, %v247
    %v288 = vpack.c.b16 %v256, %v252
    %v289 = vpack.c.b16 %v257, %v253
    %v290 = vpack.c.b16 %v258, %v254
    %v291 = vpack.c.b16 %v259, %v255
    %324 = vmatprep.subr.bf16.mxu0 %v261
    %325 = vmatpush1.bf16.msra.mxu0 %v260
    %326 = vmatprep.subr.bf16.mxu0 %v265
    %327 = vmatpush1.bf16.msra.mxu0 %v264
    %328 = vmatprep.subr.bf16.mxu0 %v269
    %329 = vmatpush1.bf16.msra.mxu0 %v268
    %330 = vmatprep.subr.bf16.mxu0 %v273
    %331 = vmatpush1.bf16.msra.mxu0 %v272
    %332 = vmatprep.subr.bf16.mxu0 %v277
    %333 = vmatpush1.bf16.msra.mxu0 %v276
    %334 = vmatprep.subr.bf16.mxu0 %v281
    %335 = vmatpush1.bf16.msra.mxu0 %v280
    %336 = vmatprep.subr.bf16.mxu0 %v285
    %337 = vmatpush1.bf16.msra.mxu0 %v284
    %338 = vmatprep.subr.bf16.mxu0 %v289
    %339 = vmatpush1.bf16.msra.mxu0 %v288
    %340 = vmatprep.subr.bf16.mxu0 0
    %341 = vmatpush1.bf16.msra.mxu0 0
    %342 = vmatprep.subr.bf16.mxu0 0
    %343 = vmatpush1.bf16.msra.mxu0 0
    %344 = vmatprep.subr.bf16.mxu0 0
    %345 = vmatpush1.bf16.msra.mxu0 0
    %346 = vmatprep.subr.bf16.mxu0 0
    %347 = vmatpush1.bf16.msra.mxu0 0
    %348 = vmatprep.subr.bf16.mxu0 0
    %349 = vmatpush1.bf16.msra.mxu0 0
    %350 = vmatprep.subr.bf16.mxu0 0
    %351 = vmatpush1.bf16.msra.mxu0 0
    %352 = vmatprep.subr.bf16.mxu0 0
    %353 = vmatpush1.bf16.msra.mxu0 0
    %354 = vmatprep.subr.bf16.mxu0 0
    %355 = vmatpush1.bf16.msra.mxu0 0
    %356 = vmatprep.mubr.bf16.mxu0 0
    %357 = vmatmul.mubr.bf16.gmra.mrb[0].mxu0 %v162
    %v358 = vpop.f32.mrb[0].mxu0
    %v359 = vadd.f32 %v141, %v358
    %v360 = vpop.f32.mrb[0].mxu0
    %v361 = vadd.f32 %v145, %v360
    %v362 = vpop.f32.mrb[0].mxu0
    %v363 = vadd.f32 %v141, %v362
    %v364 = vpop.f32.mrb[0].mxu0
    %v365 = vadd.f32 %v145, %v364
    %366 = vdwg.mxu0
    %367 = vmatprep.subr.bf16.mxu0 %v263
    %368 = vmatpush1.bf16.msra.mxu0 %v262
    %369 = vmatprep.subr.bf16.mxu0 %v267
    %370 = vmatpush1.bf16.msra.mxu0 %v266
    %371 = vmatprep.subr.bf16.mxu0 %v271
    %372 = vmatpush1.bf16.msra.mxu0 %v270
    %373 = vmatprep.subr.bf16.mxu0 %v275
    %374 = vmatpush1.bf16.msra.mxu0 %v274
    %375 = vmatprep.subr.bf16.mxu0 %v279
    %376 = vmatpush1.bf16.msra.mxu0 %v278
    %377 = vmatprep.subr.bf16.mxu0 %v283
    %378 = vmatpush1.bf16.msra.mxu0 %v282
    %379 = vmatprep.subr.bf16.mxu0 %v287
    %380 = vmatpush1.bf16.msra.mxu0 %v286
    %381 = vmatprep.subr.bf16.mxu0 %v291
    %382 = vmatpush1.bf16.msra.mxu0 %v290
    %383 = vmatprep.subr.bf16.mxu0 0
    %384 = vmatpush1.bf16.msra.mxu0 0
    %385 = vmatprep.subr.bf16.mxu0 0
    %386 = vmatpush1.bf16.msra.mxu0 0
    %387 = vmatprep.subr.bf16.mxu0 0
    %388 = vmatpush1.bf16.msra.mxu0 0
    %389 = vmatprep.subr.bf16.mxu0 0
    %390 = vmatpush1.bf16.msra.mxu0 0
    %391 = vmatprep.subr.bf16.mxu0 0
    %392 = vmatpush1.bf16.msra.mxu0 0
    %393 = vmatprep.subr.bf16.mxu0 0
    %394 = vmatpush1.bf16.msra.mxu0 0
    %395 = vmatprep.subr.bf16.mxu0 0
    %396 = vmatpush1.bf16.msra.mxu0 0
    %397 = vmatprep.subr.bf16.mxu0 0
    %398 = vmatpush1.bf16.msra.mxu0 0
    %399 = vmatprep.mubr.bf16.mxu0 0
    %400 = vmatmul.mubr.bf16.gmra.mrb[0].mxu0 %v162
    %v401 = vpop.f32.mrb[0].mxu0
    %v402 = vadd.f32 %v149, %v401
    %v403 = vpop.f32.mrb[0].mxu0
    %v404 = vadd.f32 %v153, %v403
    %v405 = vpop.f32.mrb[0].mxu0
    %v406 = vadd.f32 %v149, %v405
    %v407 = vpop.f32.mrb[0].mxu0
    %v408 = vadd.f32 %v153, %v407
    %409 = vdwg.mxu0
    %v410 = vmax.f32 %v359, 0.0
    %v411 = vmax.f32 %v361, 0.0
    %v412 = vmax.f32 %v402, 0.0
    %v413 = vmax.f32 %v404, 0.0
    %v414 = vmax.f32 %v363, 0.0
    %v415 = vmax.f32 %v365, 0.0
    %v416 = vmax.f32 %v406, 0.0
    %v417 = vmax.f32 %v408, 0.0
    %v418 = vpack.c.bf16 %v414, %v410
    %v419 = vpack.c.bf16 %v415, %v411
    %v420 = vpack.c.bf16 %v416, %v412
    %v421 = vpack.c.bf16 %v417, %v413
    %v422 = vld [vmem:[#allocation7] sm:$0xff]
    %v423 = vld [vmem:[#allocation7 + $0x8] sm:$0xf]
    %v424 = vld [vmem:[#allocation7 + $0xc] sm:$0xff]
    %v425 = vld [vmem:[#allocation7 + $0x14] sm:$0xf]
    %v426 = vld [vmem:[#allocation7 + $0x18] sm:$0xff]
    %v427 = vld [vmem:[#allocation7 + $0x20] sm:$0xf]
    %v428 = vld [vmem:[#allocation7 + $0x24] sm:$0xff]
    %v429 = vld [vmem:[#allocation7 + $0x2c] sm:$0xf]
    %v430 = vld [vmem:[#allocation7 + $0x30] sm:$0xff]
    %v431 = vld [vmem:[#allocation7 + $0x38] sm:$0xf]
    %v432 = vld [vmem:[#allocation7 + $0x3c] sm:$0xff]
    %v433 = vld [vmem:[#allocation7 + $0x44] sm:$0xf]
    %v434 = vld [vmem:[#allocation7 + $0x48] sm:$0xff]
    %v435 = vld [vmem:[#allocation7 + $0x50] sm:$0xf]
    %v436 = vld [vmem:[#allocation7 + $0x54] sm:$0xff]
    %v437 = vld [vmem:[#allocation7 + $0x5c] sm:$0xf]
    %v438 = vld [vmem:[#allocation7 + $0x60] sm:$0xff]
    %v439 = vld [vmem:[#allocation7 + $0x68] sm:$0xf]
    %v440 = vld [vmem:[#allocation7 + $0x6c] sm:$0xff]
    %v441 = vld [vmem:[#allocation7 + $0x74] sm:$0xf]
    %v442 = vld [vmem:[#allocation7 + $0x78] sm:$0xff]
    %v443 = vld [vmem:[#allocation7 + $0x80] sm:$0xf]
    %v444 = vld [vmem:[#allocation7 + $0x84] sm:$0xff]
    %v445 = vld [vmem:[#allocation7 + $0x8c] sm:$0xf]
    %v446 = vld [vmem:[#allocation7 + $0x90] sm:$0xff]
    %v447 = vld [vmem:[#allocation7 + $0x98] sm:$0xf]
    %v448 = vld [vmem:[#allocation7 + $0x9c] sm:$0xff]
    %v449 = vld [vmem:[#allocation7 + $0xa4] sm:$0xf]
    %v450 = vld [vmem:[#allocation7 + $0xa8] sm:$0xff]
    %v451 = vld [vmem:[#allocation7 + $0xb0] sm:$0xf]
    %v452 = vld [vmem:[#allocation7 + $0xb4] sm:$0xff]
    %v453 = vld [vmem:[#allocation7 + $0xbc] sm:$0xf]
    %v454 = vld [vmem:[#allocation7 + $0xc0] sm:$0xff]
    %v455 = vld [vmem:[#allocation7 + $0xc8] sm:$0xf]
    %v456 = vld [vmem:[#allocation7 + $0xcc] sm:$0xff]
    %v457 = vld [vmem:[#allocation7 + $0xd4] sm:$0xf]
    %v458 = vld [vmem:[#allocation7 + $0xd8] sm:$0xff]
    %v459 = vld [vmem:[#allocation7 + $0xe0] sm:$0xf]
    %v460 = vld [vmem:[#allocation7 + $0xe4] sm:$0xff]
    %v461 = vld [vmem:[#allocation7 + $0xec] sm:$0xf]
    %v462 = vld [vmem:[#allocation7 + $0xf0] sm:$0xff]
    %v463 = vld [vmem:[#allocation7 + $0xf8] sm:$0xf]
    %v464 = vld [vmem:[#allocation7 + $0xfc] sm:$0xff]
    %v465 = vld [vmem:[#allocation7 + $0x104] sm:$0xf]
    %v466 = vld [vmem:[#allocation7 + $0x108] sm:$0xff]
    %v467 = vld [vmem:[#allocation7 + $0x110] sm:$0xf]
    %v468 = vld [vmem:[#allocation7 + $0x114] sm:$0xff]
    %v469 = vld [vmem:[#allocation7 + $0x11c] sm:$0xf]
    %v470 = vld [vmem:[#allocation7 + $0x120] sm:$0xff]
    %v471 = vld [vmem:[#allocation7 + $0x128] sm:$0xf]
    %v472 = vld [vmem:[#allocation7 + $0x12c] sm:$0xff]
    %v473 = vld [vmem:[#allocation7 + $0x134] sm:$0xf]
    %v474 = vld [vmem:[#allocation7 + $0x138] sm:$0xff]
    %v475 = vld [vmem:[#allocation7 + $0x140] sm:$0xf]
    %v476 = vld [vmem:[#allocation7 + $0x144] sm:$0xff]
    %v477 = vld [vmem:[#allocation7 + $0x14c] sm:$0xf]
    %v478 = vld [vmem:[#allocation7 + $0x150] sm:$0xff]
    %v479 = vld [vmem:[#allocation7 + $0x158] sm:$0xf]
    %v480 = vld [vmem:[#allocation7 + $0x15c] sm:$0xff]
    %v481 = vld [vmem:[#allocation7 + $0x164] sm:$0xf]
    %v482 = vld [vmem:[#allocation7 + $0x168] sm:$0xff]
    %v483 = vld [vmem:[#allocation7 + $0x170] sm:$0xf]
    %v484 = vld [vmem:[#allocation7 + $0x174] sm:$0xff]
    %v485 = vld [vmem:[#allocation7 + $0x17c] sm:$0xf]
    %v486 = vld [vmem:[#allocation7 + $0x180] sm:$0xff]
    %v487 = vld [vmem:[#allocation7 + $0x188] sm:$0xf]
    %v488 = vld [vmem:[#allocation7 + $0x18c] sm:$0xff]
    %v489 = vld [vmem:[#allocation7 + $0x194] sm:$0xf]
    %v490 = vld [vmem:[#allocation7 + $0x198] sm:$0xff]
    %v491 = vld [vmem:[#allocation7 + $0x1a0] sm:$0xf]
    %v492 = vld [vmem:[#allocation7 + $0x1a4] sm:$0xff]
    %v493 = vld [vmem:[#allocation7 + $0x1ac] sm:$0xf]
    %v494 = vld [vmem:[#allocation7 + $0x1b0] sm:$0xff]
    %v495 = vld [vmem:[#allocation7 + $0x1b8] sm:$0xf]
    %v496 = vld [vmem:[#allocation7 + $0x1bc] sm:$0xff]
    %v497 = vld [vmem:[#allocation7 + $0x1c4] sm:$0xf]
    %v498 = vld [vmem:[#allocation7 + $0x1c8] sm:$0xff]
    %v499 = vld [vmem:[#allocation7 + $0x1d0] sm:$0xf]
    %v500 = vld [vmem:[#allocation7 + $0x1d4] sm:$0xff]
    %v501 = vld [vmem:[#allocation7 + $0x1dc] sm:$0xf]
    %v502 = vld [vmem:[#allocation7 + $0x1e0] sm:$0xff]
    %v503 = vld [vmem:[#allocation7 + $0x1e8] sm:$0xf]
    %v504 = vld [vmem:[#allocation7 + $0x1ec] sm:$0xff]
    %v505 = vld [vmem:[#allocation7 + $0x1f4] sm:$0xf]
    %v506 = vld [vmem:[#allocation7 + $0x1f8] sm:$0xff]
    %v507 = vld [vmem:[#allocation7 + $0x200] sm:$0xf]
    %v508 = vld [vmem:[#allocation7 + $0x204] sm:$0xff]
    %v509 = vld [vmem:[#allocation7 + $0x20c] sm:$0xf]
    %v510 = vld [vmem:[#allocation7 + $0x210] sm:$0xff]
    %v511 = vld [vmem:[#allocation7 + $0x218] sm:$0xf]
    %v512 = vld [vmem:[#allocation7 + $0x21c] sm:$0xff]
    %v513 = vld [vmem:[#allocation7 + $0x224] sm:$0xf]
    %v514 = vld [vmem:[#allocation7 + $0x228] sm:$0xff]
    %v515 = vld [vmem:[#allocation7 + $0x230] sm:$0xf]
    %v516 = vld [vmem:[#allocation7 + $0x234] sm:$0xff]
    %v517 = vld [vmem:[#allocation7 + $0x23c] sm:$0xf]
    %v518 = vld [vmem:[#allocation7 + $0x240] sm:$0xff]
    %v519 = vld [vmem:[#allocation7 + $0x248] sm:$0xf]
    %v520 = vld [vmem:[#allocation7 + $0x24c] sm:$0xff]
    %v521 = vld [vmem:[#allocation7 + $0x254] sm:$0xf]
    %v522 = vld [vmem:[#allocation7 + $0x258] sm:$0xff]
    %v523 = vld [vmem:[#allocation7 + $0x260] sm:$0xf]
    %v524 = vld [vmem:[#allocation7 + $0x264] sm:$0xff]
    %v525 = vld [vmem:[#allocation7 + $0x26c] sm:$0xf]
    %v526 = vld [vmem:[#allocation7 + $0x270] sm:$0xff]
    %v527 = vld [vmem:[#allocation7 + $0x278] sm:$0xf]
    %v528 = vld [vmem:[#allocation7 + $0x27c] sm:$0xff]
    %v529 = vld [vmem:[#allocation7 + $0x284] sm:$0xf]
    %v530 = vld [vmem:[#allocation7 + $0x288] sm:$0xff]
    %v531 = vld [vmem:[#allocation7 + $0x290] sm:$0xf]
    %v532 = vld [vmem:[#allocation7 + $0x294] sm:$0xff]
    %v533 = vld [vmem:[#allocation7 + $0x29c] sm:$0xf]
    %v534 = vld [vmem:[#allocation7 + $0x2a0] sm:$0xff]
    %v535 = vld [vmem:[#allocation7 + $0x2a8] sm:$0xf]
    %v536 = vld [vmem:[#allocation7 + $0x2ac] sm:$0xff]
    %v537 = vld [vmem:[#allocation7 + $0x2b4] sm:$0xf]
    %v538 = vld [vmem:[#allocation7 + $0x2b8] sm:$0xff]
    %v539 = vld [vmem:[#allocation7 + $0x2c0] sm:$0xf]
    %v540 = vld [vmem:[#allocation7 + $0x2c4] sm:$0xff]
    %v541 = vld [vmem:[#allocation7 + $0x2cc] sm:$0xf]
    %v542 = vld [vmem:[#allocation7 + $0x2d0] sm:$0xff]
    %v543 = vld [vmem:[#allocation7 + $0x2d8] sm:$0xf]
    %v544 = vld [vmem:[#allocation7 + $0x2dc] sm:$0xff]
    %v545 = vld [vmem:[#allocation7 + $0x2e4] sm:$0xf]
    %v546 = vld [vmem:[#allocation7 + $0x2e8] sm:$0xff]
    %v547 = vld [vmem:[#allocation7 + $0x2f0] sm:$0xf]
    %v548 = vld [vmem:[#allocation7 + $0x2f4] sm:$0xff]
    %v549 = vld [vmem:[#allocation7 + $0x2fc] sm:$0xf]
    %v550 = vld [vmem:[%s4] sm:$0x7]
    %v552 = vlaneseq
    %v553 = vshrl.u32 %v552, 7
    %v554 = vsub.s32 0, %v553
    %v555 = vrot.slane %v550, %v554
    %v556 = vlaneseq
    %v557 = vshrl.u32 %v556, 7
    %v558 = vsub.s32 1, %v557
    %v559 = vrot.slane %v550, %v558
    %v560 = vlaneseq
    %v561 = vshrl.u32 %v560, 7
    %v562 = vsub.s32 2, %v561
    %v563 = vrot.slane %v550, %v562
    %v695 = vunpack.c.l.b16 %v422
    %v696 = vunpack.c.h.b16 %v422
    %v697 = vunpack.c.l.b16 %v423
    %v698 = vunpack.c.l.b16 %v424
    %v699 = vunpack.c.h.b16 %v424
    %v700 = vunpack.c.l.b16 %v425
    %v701 = vunpack.c.l.b16 %v426
    %v702 = vunpack.c.h.b16 %v426
    %v703 = vunpack.c.l.b16 %v427
    %v704 = vunpack.c.l.b16 %v428
    %v705 = vunpack.c.h.b16 %v428
    %v706 = vunpack.c.l.b16 %v429
    %v707 = vunpack.c.l.b16 %v430
    %v708 = vunpack.c.h.b16 %v430
    %v709 = vunpack.c.l.b16 %v431
    %v710 = vunpack.c.l.b16 %v432
    %v711 = vunpack.c.h.b16 %v432
    %v712 = vunpack.c.l.b16 %v433
    %v713 = vunpack.c.l.b16 %v434
    %v714 = vunpack.c.h.b16 %v434
    %v715 = vunpack.c.l.b16 %v435
    %v716 = vunpack.c.l.b16 %v436
    %v717 = vunpack.c.h.b16 %v436
    %v718 = vunpack.c.l.b16 %v437
    %v719 = vunpack.c.l.b16 %v438
    %v720 = vunpack.c.h.b16 %v438
    %v721 = vunpack.c.l.b16 %v439
    %v722 = vunpack.c.l.b16 %v440
    %v723 = vunpack.c.h.b16 %v440
    %v724 = vunpack.c.l.b16 %v441
    %v725 = vunpack.c.l.b16 %v442
    %v726 = vunpack.c.h.b16 %v442
    %v727 = vunpack.c.l.b16 %v443
    %v728 = vunpack.c.l.b16 %v444
    %v729 = vunpack.c.h.b16 %v444
    %v730 = vunpack.c.l.b16 %v445
    %v731 = vunpack.c.l.b16 %v446
    %v732 = vunpack.c.h.b16 %v446
    %v733 = vunpack.c.l.b16 %v447
    %v734 = vunpack.c.l.b16 %v448
    %v735 = vunpack.c.h.b16 %v448
    %v736 = vunpack.c.l.b16 %v449
    %v737 = vunpack.c.l.b16 %v450
    %v738 = vunpack.c.h.b16 %v450
    %v739 = vunpack.c.l.b16 %v451
    %v740 = vunpack.c.l.b16 %v452
    %v741 = vunpack.c.h.b16 %v452
    %v742 = vunpack.c.l.b16 %v453
    %v743 = vunpack.c.l.b16 %v454
    %v744 = vunpack.c.h.b16 %v454
    %v745 = vunpack.c.l.b16 %v455
    %v746 = vunpack.c.l.b16 %v456
    %v747 = vunpack.c.h.b16 %v456
    %v748 = vunpack.c.l.b16 %v457
    %v749 = vunpack.c.l.b16 %v458
    %v750 = vunpack.c.h.b16 %v458
    %v751 = vunpack.c.l.b16 %v459
    %v752 = vunpack.c.l.b16 %v460
    %v753 = vunpack.c.h.b16 %v460
    %v754 = vunpack.c.l.b16 %v461
    %v755 = vunpack.c.l.b16 %v462
    %v756 = vunpack.c.h.b16 %v462
    %v757 = vunpack.c.l.b16 %v463
    %v758 = vunpack.c.l.b16 %v464
    %v759 = vunpack.c.h.b16 %v464
    %v760 = vunpack.c.l.b16 %v465
    %v761 = vunpack.c.l.b16 %v466
    %v762 = vunpack.c.h.b16 %v466
    %v763 = vunpack.c.l.b16 %v467
    %v764 = vunpack.c.l.b16 %v468
    %v765 = vunpack.c.h.b16 %v468
    %v766 = vunpack.c.l.b16 %v469
    %v767 = vunpack.c.l.b16 %v470
    %v768 = vunpack.c.h.b16 %v470
    %v769 = vunpack.c.l.b16 %v471
    %v770 = vunpack.c.l.b16 %v472
    %v771 = vunpack.c.h.b16 %v472
    %v772 = vunpack.c.l.b16 %v473
    %v773 = vunpack.c.l.b16 %v474
    %v774 = vunpack.c.h.b16 %v474
    %v775 = vunpack.c.l.b16 %v475
    %v776 = vunpack.c.l.b16 %v476
    %v777 = vunpack.c.h.b16 %v476
    %v778 = vunpack.c.l.b16 %v477
    %v779 = vunpack.c.l.b16 %v478
    %v780 = vunpack.c.h.b16 %v478
    %v781 = vunpack.c.l.b16 %v479
    %v782 = vunpack.c.l.b16 %v480
    %v783 = vunpack.c.h.b16 %v480
    %v784 = vunpack.c.l.b16 %v481
    %v785 = vunpack.c.l.b16 %v482
    %v786 = vunpack.c.h.b16 %v482
    %v787 = vunpack.c.l.b16 %v483
    %v788 = vunpack.c.l.b16 %v484
    %v789 = vunpack.c.h.b16 %v484
    %v790 = vunpack.c.l.b16 %v485
    %v791 = vunpack.c.l.b16 %v486
    %v792 = vunpack.c.h.b16 %v486
    %v793 = vunpack.c.l.b16 %v487
    %v794 = vunpack.c.l.b16 %v488
    %v795 = vunpack.c.h.b16 %v488
    %v796 = vunpack.c.l.b16 %v489
    %v797 = vunpack.c.l.b16 %v490
    %v798 = vunpack.c.h.b16 %v490
    %v799 = vunpack.c.l.b16 %v491
    %v800 = vunpack.c.l.b16 %v492
    %v801 = vunpack.c.h.b16 %v492
    %v802 = vunpack.c.l.b16 %v493
    %v803 = vunpack.c.l.b16 %v494
    %v804 = vunpack.c.h.b16 %v494
    %v805 = vunpack.c.l.b16 %v495
    %v806 = vunpack.c.l.b16 %v496
    %v807 = vunpack.c.h.b16 %v496
    %v808 = vunpack.c.l.b16 %v497
    %v809 = vunpack.c.l.b16 %v498
    %v810 = vunpack.c.h.b16 %v498
    %v811 = vunpack.c.l.b16 %v499
    %v812 = vunpack.c.l.b16 %v500
    %v813 = vunpack.c.h.b16 %v500
    %v814 = vunpack.c.l.b16 %v501
    %v815 = vunpack.c.l.b16 %v502
    %v816 = vunpack.c.h.b16 %v502
    %v817 = vunpack.c.l.b16 %v503
    %v818 = vunpack.c.l.b16 %v504
    %v819 = vunpack.c.h.b16 %v504
    %v820 = vunpack.c.l.b16 %v505
    %v821 = vunpack.c.l.b16 %v506
    %v822 = vunpack.c.h.b16 %v506
    %v823 = vunpack.c.l.b16 %v507
    %v824 = vunpack.c.l.b16 %v508
    %v825 = vunpack.c.h.b16 %v508
    %v826 = vunpack.c.l.b16 %v509
    %v827 = vunpack.c.l.b16 %v510
    %v828 = vunpack.c.h.b16 %v510
    %v829 = vunpack.c.l.b16 %v511
    %v830 = vunpack.c.l.b16 %v512
    %v831 = vunpack.c.h.b16 %v512
    %v832 = vunpack.c.l.b16 %v513
    %v833 = vunpack.c.l.b16 %v514
    %v834 = vunpack.c.h.b16 %v514
    %v835 = vunpack.c.l.b16 %v515
    %v836 = vunpack.c.l.b16 %v516
    %v837 = vunpack.c.h.b16 %v516
    %v838 = vunpack.c.l.b16 %v517
    %v839 = vunpack.c.l.b16 %v518
    %v840 = vunpack.c.h.b16 %v518
    %v841 = vunpack.c.l.b16 %v519
    %v842 = vunpack.c.l.b16 %v520
    %v843 = vunpack.c.h.b16 %v520
    %v844 = vunpack.c.l.b16 %v521
    %v845 = vunpack.c.l.b16 %v522
    %v846 = vunpack.c.h.b16 %v522
    %v847 = vunpack.c.l.b16 %v523
    %v848 = vunpack.c.l.b16 %v524
    %v849 = vunpack.c.h.b16 %v524
    %v850 = vunpack.c.l.b16 %v525
    %v851 = vunpack.c.l.b16 %v526
    %v852 = vunpack.c.h.b16 %v526
    %v853 = vunpack.c.l.b16 %v527
    %v854 = vunpack.c.l.b16 %v528
    %v855 = vunpack.c.h.b16 %v528
    %v856 = vunpack.c.l.b16 %v529
    %v857 = vunpack.c.l.b16 %v530
    %v858 = vunpack.c.h.b16 %v530
    %v859 = vunpack.c.l.b16 %v531
    %v860 = vunpack.c.l.b16 %v532
    %v861 = vunpack.c.h.b16 %v532
    %v862 = vunpack.c.l.b16 %v533
    %v863 = vunpack.c.l.b16 %v534
    %v864 = vunpack.c.h.b16 %v534
    %v865 = vunpack.c.l.b16 %v535
    %v866 = vunpack.c.l.b16 %v536
    %v867 = vunpack.c.h.b16 %v536
    %v868 = vunpack.c.l.b16 %v537
    %v869 = vunpack.c.l.b16 %v538
    %v870 = vunpack.c.h.b16 %v538
    %v871 = vunpack.c.l.b16 %v539
    %v872 = vunpack.c.l.b16 %v540
    %v873 = vunpack.c.h.b16 %v540
    %v874 = vunpack.c.l.b16 %v541
    %v875 = vunpack.c.l.b16 %v542
    %v876 = vunpack.c.h.b16 %v542
    %v877 = vunpack.c.l.b16 %v543
    %v878 = vunpack.c.l.b16 %v544
    %v879 = vunpack.c.h.b16 %v544
    %v880 = vunpack.c.l.b16 %v545
    %v881 = vunpack.c.l.b16 %v546
    %v882 = vunpack.c.h.b16 %v546
    %v883 = vunpack.c.l.b16 %v547
    %v884 = vunpack.c.l.b16 %v548
    %v885 = vunpack.c.h.b16 %v548
    %v886 = vunpack.c.l.b16 %v549
    %v887 = vpack.c.b16 %v698, %v695
    %v888 = vpack.c.b16 %v699, %v696
    %v889 = vpack.c.b16 %v700, %v697
    %v890 = vpack.c.b16 %v704, %v701
    %v891 = vpack.c.b16 %v705, %v702
    %v892 = vpack.c.b16 %v706, %v703
    %v893 = vpack.c.b16 %v710, %v707
    %v894 = vpack.c.b16 %v711, %v708
    %v895 = vpack.c.b16 %v712, %v709
    %v896 = vpack.c.b16 %v716, %v713
    %v897 = vpack.c.b16 %v717, %v714
    %v898 = vpack.c.b16 %v718, %v715
    %v899 = vpack.c.b16 %v722, %v719
    %v900 = vpack.c.b16 %v723, %v720
    %v901 = vpack.c.b16 %v724, %v721
    %v902 = vpack.c.b16 %v728, %v725
    %v903 = vpack.c.b16 %v729, %v726
    %v904 = vpack.c.b16 %v730, %v727
    %v905 = vpack.c.b16 %v734, %v731
    %v906 = vpack.c.b16 %v735, %v732
    %v907 = vpack.c.b16 %v736, %v733
    %v908 = vpack.c.b16 %v740, %v737
    %v909 = vpack.c.b16 %v741, %v738
    %v910 = vpack.c.b16 %v742, %v739
    %v911 = vpack.c.b16 %v746, %v743
    %v912 = vpack.c.b16 %v747, %v744
    %v913 = vpack.c.b16 %v748, %v745
    %v914 = vpack.c.b16 %v752, %v749
    %v915 = vpack.c.b16 %v753, %v750
    %v916 = vpack.c.b16 %v754, %v751
    %v917 = vpack.c.b16 %v758, %v755
    %v918 = vpack.c.b16 %v759, %v756
    %v919 = vpack.c.b16 %v760, %v757
    %v920 = vpack.c.b16 %v764, %v761
    %v921 = vpack.c.b16 %v765, %v762
    %v922 = vpack.c.b16 %v766, %v763
    %v923 = vpack.c.b16 %v770, %v767
    %v924 = vpack.c.b16 %v771, %v768
    %v925 = vpack.c.b16 %v772, %v769
    %v926 = vpack.c.b16 %v776, %v773
    %v927 = vpack.c.b16 %v777, %v774
    %v928 = vpack.c.b16 %v778, %v775
    %v929 = vpack.c.b16 %v782, %v779
    %v930 = vpack.c.b16 %v783, %v780
    %v931 = vpack.c.b16 %v784, %v781
    %v932 = vpack.c.b16 %v788, %v785
    %v933 = vpack.c.b16 %v789, %v786
    %v934 = vpack.c.b16 %v790, %v787
    %v935 = vpack.c.b16 %v794, %v791
    %v936 = vpack.c.b16 %v795, %v792
    %v937 = vpack.c.b16 %v796, %v793
    %v938 = vpack.c.b16 %v800, %v797
    %v939 = vpack.c.b16 %v801, %v798
    %v940 = vpack.c.b16 %v802, %v799
    %v941 = vpack.c.b16 %v806, %v803
    %v942 = vpack.c.b16 %v807, %v804
    %v943 = vpack.c.b16 %v808, %v805
    %v944 = vpack.c.b16 %v812, %v809
    %v945 = vpack.c.b16 %v813, %v810
    %v946 = vpack.c.b16 %v814, %v811
    %v947 = vpack.c.b16 %v818, %v815
    %v948 = vpack.c.b16 %v819, %v816
    %v949 = vpack.c.b16 %v820, %v817
    %v950 = vpack.c.b16 %v824, %v821
    %v951 = vpack.c.b16 %v825, %v822
    %v952 = vpack.c.b16 %v826, %v823
    %v953 = vpack.c.b16 %v830, %v827
    %v954 = vpack.c.b16 %v831, %v828
    %v955 = vpack.c.b16 %v832, %v829
    %v956 = vpack.c.b16 %v836, %v833
    %v957 = vpack.c.b16 %v837, %v834
    %v958 = vpack.c.b16 %v838, %v835
    %v959 = vpack.c.b16 %v842, %v839
    %v960 = vpack.c.b16 %v843, %v840
    %v961 = vpack.c.b16 %v844, %v841
    %v962 = vpack.c.b16 %v848, %v845
    %v963 = vpack.c.b16 %v849, %v846
    %v964 = vpack.c.b16 %v850, %v847
    %v965 = vpack.c.b16 %v854, %v851
    %v966 = vpack.c.b16 %v855, %v852
    %v967 = vpack.c.b16 %v856, %v853
    %v968 = vpack.c.b16 %v860, %v857
    %v969 = vpack.c.b16 %v861, %v858
    %v970 = vpack.c.b16 %v862, %v859
    %v971 = vpack.c.b16 %v866, %v863
    %v972 = vpack.c.b16 %v867, %v864
    %v973 = vpack.c.b16 %v868, %v865
    %v974 = vpack.c.b16 %v872, %v869
    %v975 = vpack.c.b16 %v873, %v870
    %v976 = vpack.c.b16 %v874, %v871
    %v977 = vpack.c.b16 %v878, %v875
    %v978 = vpack.c.b16 %v879, %v876
    %v979 = vpack.c.b16 %v880, %v877
    %v980 = vpack.c.b16 %v884, %v881
    %v981 = vpack.c.b16 %v885, %v882
    %v982 = vpack.c.b16 %v886, %v883
    %1079 = vmatprep.subr.bf16.mxu0 %v888
    %1080 = vmatpush1.bf16.msra.mxu0 %v887
    %1081 = vmatprep.subr.bf16.mxu0 %v891
    %1082 = vmatpush1.bf16.msra.mxu0 %v890
    %1083 = vmatprep.subr.bf16.mxu0 %v894
    %1084 = vmatpush1.bf16.msra.mxu0 %v893
    %1085 = vmatprep.subr.bf16.mxu0 %v897
    %1086 = vmatpush1.bf16.msra.mxu0 %v896
    %1087 = vmatprep.subr.bf16.mxu0 %v900
    %1088 = vmatpush1.bf16.msra.mxu0 %v899
    %1089 = vmatprep.subr.bf16.mxu0 %v903
    %1090 = vmatpush1.bf16.msra.mxu0 %v902
    %1091 = vmatprep.subr.bf16.mxu0 %v906
    %1092 = vmatpush1.bf16.msra.mxu0 %v905
    %1093 = vmatprep.subr.bf16.mxu0 %v909
    %1094 = vmatpush1.bf16.msra.mxu0 %v908
    %1095 = vmatprep.subr.bf16.mxu0 %v912
    %1096 = vmatpush1.bf16.msra.mxu0 %v911
    %1097 = vmatprep.subr.bf16.mxu0 %v915
    %1098 = vmatpush1.bf16.msra.mxu0 %v914
    %1099 = vmatprep.subr.bf16.mxu0 %v918
    %1100 = vmatpush1.bf16.msra.mxu0 %v917
    %1101 = vmatprep.subr.bf16.mxu0 %v921
    %1102 = vmatpush1.bf16.msra.mxu0 %v920
    %1103 = vmatprep.subr.bf16.mxu0 %v924
    %1104 = vmatpush1.bf16.msra.mxu0 %v923
    %1105 = vmatprep.subr.bf16.mxu0 %v927
    %1106 = vmatpush1.bf16.msra.mxu0 %v926
    %1107 = vmatprep.subr.bf16.mxu0 %v930
    %1108 = vmatpush1.bf16.msra.mxu0 %v929
    %1109 = vmatprep.subr.bf16.mxu0 %v933
    %1110 = vmatpush1.bf16.msra.mxu0 %v932
    %1111 = vmatprep.mubr.bf16.mxu0 %v419
    %1112 = vmatmul.mubr.bf16.gmra.mrb[0].mxu0 %v418
    %v1113 = vpop.f32.mrb[0].mxu0
    %v1114 = vadd.f32 %v555, %v1113
    %v1115 = vpop.f32.mrb[0].mxu0
    %v1116 = vadd.f32 %v559, %v1115
    %v1117 = vpop.f32.mrb[0].mxu0
    %v1118 = vadd.f32 %v555, %v1117
    %v1119 = vpop.f32.mrb[0].mxu0
    %v1120 = vadd.f32 %v559, %v1119
    %1121 = vdwg.mxu0
    %1122 = vmatprep.subr.bf16.mxu0 %v936
    %1123 = vmatpush1.bf16.msra.mxu0 %v935
    %1124 = vmatprep.subr.bf16.mxu0 %v939
    %1125 = vmatpush1.bf16.msra.mxu0 %v938
    %1126 = vmatprep.subr.bf16.mxu0 %v942
    %1127 = vmatpush1.bf16.msra.mxu0 %v941
    %1128 = vmatprep.subr.bf16.mxu0 %v945
    %1129 = vmatpush1.bf16.msra.mxu0 %v944
    %1130 = vmatprep.subr.bf16.mxu0 %v948
    %1131 = vmatpush1.bf16.msra.mxu0 %v947
    %1132 = vmatprep.subr.bf16.mxu0 %v951
    %1133 = vmatpush1.bf16.msra.mxu0 %v950
    %1134 = vmatprep.subr.bf16.mxu0 %v954
    %1135 = vmatpush1.bf16.msra.mxu0 %v953
    %1136 = vmatprep.subr.bf16.mxu0 %v957
    %1137 = vmatpush1.bf16.msra.mxu0 %v956
    %1138 = vmatprep.subr.bf16.mxu0 %v960
    %1139 = vmatpush1.bf16.msra.mxu0 %v959
    %1140 = vmatprep.subr.bf16.mxu0 %v963
    %1141 = vmatpush1.bf16.msra.mxu0 %v962
    %1142 = vmatprep.subr.bf16.mxu0 %v966
    %1143 = vmatpush1.bf16.msra.mxu0 %v965
    %1144 = vmatprep.subr.bf16.mxu0 %v969
    %1145 = vmatpush1.bf16.msra.mxu0 %v968
    %1146 = vmatprep.subr.bf16.mxu0 %v972
    %1147 = vmatpush1.bf16.msra.mxu0 %v971
    %1148 = vmatprep.subr.bf16.mxu0 %v975
    %1149 = vmatpush1.bf16.msra.mxu0 %v974
    %1150 = vmatprep.subr.bf16.mxu0 %v978
    %1151 = vmatpush1.bf16.msra.mxu0 %v977
    %1152 = vmatprep.subr.bf16.mxu0 %v981
    %1153 = vmatpush1.bf16.msra.mxu0 %v980
    %1154 = vmatprep.mubr.bf16.mxu0 %v421
    %1155 = vmatmul.mubr.bf16.gmra.mrb[0].mxu0 %v420
    %v1156 = vpop.f32.mrb[0].mxu0
    %v1157 = vadd.f32 %v1114, %v1156
    %v1158 = vpop.f32.mrb[0].mxu0
    %v1159 = vadd.f32 %v1116, %v1158
    %v1160 = vpop.f32.mrb[0].mxu0
    %v1161 = vadd.f32 %v1118, %v1160
    %v1162 = vpop.f32.mrb[0].mxu0
    %v1163 = vadd.f32 %v1120, %v1162
    %1164 = vdwg.mxu0
    %1165 = vmatprep.subr.bf16.mxu0 0
    %1166 = vmatpush1.bf16.msra.mxu0 %v889
    %1167 = vmatprep.subr.bf16.mxu0 0
    %1168 = vmatpush1.bf16.msra.mxu0 %v892
    %1169 = vmatprep.subr.bf16.mxu0 0
    %1170 = vmatpush1.bf16.msra.mxu0 %v895
    %1171 = vmatprep.subr.bf16.mxu0 0
    %1172 = vmatpush1.bf16.msra.mxu0 %v898
    %1173 = vmatprep.subr.bf16.mxu0 0
    %1174 = vmatpush1.bf16.msra.mxu0 %v901
    %1175 = vmatprep.subr.bf16.mxu0 0
    %1176 = vmatpush1.bf16.msra.mxu0 %v904
    %1177 = vmatprep.subr.bf16.mxu0 0
    %1178 = vmatpush1.bf16.msra.mxu0 %v907
    %1179 = vmatprep.subr.bf16.mxu0 0
    %1180 = vmatpush1.bf16.msra.mxu0 %v910
    %1181 = vmatprep.subr.bf16.mxu0 0
    %1182 = vmatpush1.bf16.msra.mxu0 %v913
    %1183 = vmatprep.subr.bf16.mxu0 0
    %1184 = vmatpush1.bf16.msra.mxu0 %v916
    %1185 = vmatprep.subr.bf16.mxu0 0
    %1186 = vmatpush1.bf16.msra.mxu0 %v919
    %1187 = vmatprep.subr.bf16.mxu0 0
    %1188 = vmatpush1.bf16.msra.mxu0 %v922
    %1189 = vmatprep.subr.bf16.mxu0 0
    %1190 = vmatpush1.bf16.msra.mxu0 %v925
    %1191 = vmatprep.subr.bf16.mxu0 0
    %1192 = vmatpush1.bf16.msra.mxu0 %v928
    %1193 = vmatprep.subr.bf16.mxu0 0
    %1194 = vmatpush1.bf16.msra.mxu0 %v931
    %1195 = vmatprep.subr.bf16.mxu0 0
    %1196 = vmatpush1.bf16.msra.mxu0 %v934
    %1197 = vmatprep.mubr.bf16.mxu0 %v419
    %1198 = vmatmul.mubr.bf16.gmra.mrb[0].mxu0 %v418
    %v1199 = vpop.f32.mrb[0].mxu0
    %v1200 = vadd.f32 %v563, %v1199
    %v1201 = vpop.f32.mrb[0].mxu0
    %v1202 = vpop.f32.mrb[0].mxu0
    %v1203 = vadd.f32 %v563, %v1202
    %v1204 = vpop.f32.mrb[0].mxu0
    %1205 = vdwg.mxu0
    %1206 = vmatprep.subr.bf16.mxu0 0
    %1207 = vmatpush1.bf16.msra.mxu0 %v937
    %1208 = vmatprep.subr.bf16.mxu0 0
    %1209 = vmatpush1.bf16.msra.mxu0 %v940
    %1210 = vmatprep.subr.bf16.mxu0 0
    %1211 = vmatpush1.bf16.msra.mxu0 %v943
    %1212 = vmatprep.subr.bf16.mxu0 0
    %1213 = vmatpush1.bf16.msra.mxu0 %v946
    %1214 = vmatprep.subr.bf16.mxu0 0
    %1215 = vmatpush1.bf16.msra.mxu0 %v949
    %1216 = vmatprep.subr.bf16.mxu0 0
    %1217 = vmatpush1.bf16.msra.mxu0 %v952
    %1218 = vmatprep.subr.bf16.mxu0 0
    %1219 = vmatpush1.bf16.msra.mxu0 %v955
    %1220 = vmatprep.subr.bf16.mxu0 0
    %1221 = vmatpush1.bf16.msra.mxu0 %v958
    %1222 = vmatprep.subr.bf16.mxu0 0
    %1223 = vmatpush1.bf16.msra.mxu0 %v961
    %1224 = vmatprep.subr.bf16.mxu0 0
    %1225 = vmatpush1.bf16.msra.mxu0 %v964
    %1226 = vmatprep.subr.bf16.mxu0 0
    %1227 = vmatpush1.bf16.msra.mxu0 %v967
    %1228 = vmatprep.subr.bf16.mxu0 0
    %1229 = vmatpush1.bf16.msra.mxu0 %v970
    %1230 = vmatprep.subr.bf16.mxu0 0
    %1231 = vmatpush1.bf16.msra.mxu0 %v973
    %1232 = vmatprep.subr.bf16.mxu0 0
    %1233 = vmatpush1.bf16.msra.mxu0 %v976
    %1234 = vmatprep.subr.bf16.mxu0 0
    %1235 = vmatpush1.bf16.msra.mxu0 %v979
    %1236 = vmatprep.subr.bf16.mxu0 0
    %1237 = vmatpush1.bf16.msra.mxu0 %v982
    %1238 = vmatprep.mubr.bf16.mxu0 %v421
    %1239 = vmatmul.mubr.bf16.gmra.mrb[0].mxu0 %v420
    %v1240 = vpop.f32.mrb[0].mxu0
    %v1241 = vadd.f32 %v1200, %v1240
    %v1242 = vpop.f32.mrb[0].mxu0
    %v1243 = vpop.f32.mrb[0].mxu0
    %v1244 = vadd.f32 %v1203, %v1243
    %v1245 = vpop.f32.mrb[0].mxu0
    %1246 = vdwg.mxu0
    %v1247 = vmax.f32 %v1157, 0.0
    %v1248 = vmax.f32 %v1159, 0.0
    %v1249 = vmax.f32 %v1241, 0.0
    %v1250 = vmax.f32 %v1161, 0.0
    %v1251 = vmax.f32 %v1163, 0.0
    %v1252 = vmax.f32 %v1244, 0.0
    %v1253 = vpack.c.bf16 %v1250, %v1247
    %v1254 = vpack.c.bf16 %v1251, %v1248
    %v1255 = vpack.c.bf16 %v1252, %v1249
    %v1256 = vld [vmem:[#allocation8] sm:$0xf]
    %v1257 = vld [vmem:[#allocation8 + $0x4] sm:$0xf]
    %v1258 = vld [vmem:[#allocation8 + $0x8] sm:$0xf]
    %v1259 = vld [vmem:[#allocation8 + $0xc] sm:$0xf]
    %v1260 = vld [vmem:[#allocation8 + $0x10] sm:$0xf]
    %v1261 = vld [vmem:[#allocation8 + $0x14] sm:$0xf]
    %v1262 = vld [vmem:[#allocation8 + $0x18] sm:$0xf]
    %v1263 = vld [vmem:[#allocation8 + $0x1c] sm:$0xf]
    %v1264 = vld [vmem:[#allocation8 + $0x20] sm:$0xf]
    %v1265 = vld [vmem:[#allocation8 + $0x24] sm:$0xf]
    %v1266 = vld [vmem:[#allocation8 + $0x28] sm:$0xf]
    %v1267 = vld [vmem:[#allocation8 + $0x2c] sm:$0xf]
    %v1268 = vld [vmem:[#allocation8 + $0x30] sm:$0xf]
    %v1269 = vld [vmem:[#allocation8 + $0x34] sm:$0xf]
    %v1270 = vld [vmem:[#allocation8 + $0x38] sm:$0xf]
    %v1271 = vld [vmem:[#allocation8 + $0x3c] sm:$0xf]
    %v1272 = vld [vmem:[#allocation8 + $0x40] sm:$0xf]
    %v1273 = vld [vmem:[#allocation8 + $0x44] sm:$0xf]
    %v1274 = vld [vmem:[#allocation8 + $0x48] sm:$0xf]
    %v1275 = vld [vmem:[#allocation8 + $0x4c] sm:$0xf]
    %v1276 = vld [vmem:[#allocation8 + $0x50] sm:$0xf]
    %v1277 = vld [vmem:[#allocation8 + $0x54] sm:$0xf]
    %v1278 = vld [vmem:[#allocation8 + $0x58] sm:$0xf]
    %v1279 = vld [vmem:[#allocation8 + $0x5c] sm:$0xf]
    %v1280 = vld [vmem:[#allocation8 + $0x60] sm:$0xf]
    %v1281 = vld [vmem:[#allocation8 + $0x64] sm:$0xf]
    %v1282 = vld [vmem:[#allocation8 + $0x68] sm:$0xf]
    %v1283 = vld [vmem:[#allocation8 + $0x6c] sm:$0xf]
    %v1284 = vld [vmem:[#allocation8 + $0x70] sm:$0xf]
    %v1285 = vld [vmem:[#allocation8 + $0x74] sm:$0xf]
    %v1286 = vld [vmem:[#allocation8 + $0x78] sm:$0xf]
    %v1287 = vld [vmem:[#allocation8 + $0x7c] sm:$0xf]
    %v1288 = vld [vmem:[#allocation8 + $0x80] sm:$0xf]
    %v1289 = vld [vmem:[#allocation8 + $0x84] sm:$0xf]
    %v1290 = vld [vmem:[#allocation8 + $0x88] sm:$0xf]
    %v1291 = vld [vmem:[#allocation8 + $0x8c] sm:$0xf]
    %v1292 = vld [vmem:[#allocation8 + $0x90] sm:$0xf]
    %v1293 = vld [vmem:[#allocation8 + $0x94] sm:$0xf]
    %v1294 = vld [vmem:[#allocation8 + $0x98] sm:$0xf]
    %v1295 = vld [vmem:[#allocation8 + $0x9c] sm:$0xf]
    %v1296 = vld [vmem:[#allocation8 + $0xa0] sm:$0xf]
    %v1297 = vld [vmem:[#allocation8 + $0xa4] sm:$0xf]
    %v1298 = vld [vmem:[#allocation8 + $0xa8] sm:$0xf]
    %v1299 = vld [vmem:[#allocation8 + $0xac] sm:$0xf]
    %v1300 = vld [vmem:[#allocation8 + $0xb0] sm:$0xf]
    %v1301 = vld [vmem:[#allocation8 + $0xb4] sm:$0xf]
    %v1302 = vld [vmem:[#allocation8 + $0xb8] sm:$0xf]
    %v1303 = vld [vmem:[#allocation8 + $0xbc] sm:$0xf]
    %v1304 = vld [vmem:[%s6] sm:$0x1]
    %v1306 = vlaneseq
    %v1307 = vshrl.u32 %v1306, 7
    %v1308 = vsub.s32 0, %v1307
    %v1309 = vrot.slane %v1304, %v1308
    %v1359 = vunpack.c.l.b16 %v1256
    %v1360 = vunpack.c.l.b16 %v1257
    %v1361 = vunpack.c.l.b16 %v1258
    %v1362 = vunpack.c.l.b16 %v1259
    %v1363 = vunpack.c.l.b16 %v1260
    %v1364 = vunpack.c.l.b16 %v1261
    %v1365 = vunpack.c.l.b16 %v1262
    %v1366 = vunpack.c.l.b16 %v1263
    %v1367 = vunpack.c.l.b16 %v1264
    %v1368 = vunpack.c.l.b16 %v1265
    %v1369 = vunpack.c.l.b16 %v1266
    %v1370 = vunpack.c.l.b16 %v1267
    %v1371 = vunpack.c.l.b16 %v1268
    %v1372 = vunpack.c.l.b16 %v1269
    %v1373 = vunpack.c.l.b16 %v1270
    %v1374 = vunpack.c.l.b16 %v1271
    %v1375 = vunpack.c.l.b16 %v1272
    %v1376 = vunpack.c.l.b16 %v1273
    %v1377 = vunpack.c.l.b16 %v1274
    %v1378 = vunpack.c.l.b16 %v1275
    %v1379 = vunpack.c.l.b16 %v1276
    %v1380 = vunpack.c.l.b16 %v1277
    %v1381 = vunpack.c.l.b16 %v1278
    %v1382 = vunpack.c.l.b16 %v1279
    %v1383 = vunpack.c.l.b16 %v1280
    %v1384 = vunpack.c.l.b16 %v1281
    %v1385 = vunpack.c.l.b16 %v1282
    %v1386 = vunpack.c.l.b16 %v1283
    %v1387 = vunpack.c.l.b16 %v1284
    %v1388 = vunpack.c.l.b16 %v1285
    %v1389 = vunpack.c.l.b16 %v1286
    %v1390 = vunpack.c.l.b16 %v1287
    %v1391 = vunpack.c.l.b16 %v1288
    %v1392 = vunpack.c.l.b16 %v1289
    %v1393 = vunpack.c.l.b16 %v1290
    %v1394 = vunpack.c.l.b16 %v1291
    %v1395 = vunpack.c.l.b16 %v1292
    %v1396 = vunpack.c.l.b16 %v1293
    %v1397 = vunpack.c.l.b16 %v1294
    %v1398 = vunpack.c.l.b16 %v1295
    %v1399 = vunpack.c.l.b16 %v1296
    %v1400 = vunpack.c.l.b16 %v1297
    %v1401 = vunpack.c.l.b16 %v1298
    %v1402 = vunpack.c.l.b16 %v1299
    %v1403 = vunpack.c.l.b16 %v1300
    %v1404 = vunpack.c.l.b16 %v1301
    %v1405 = vunpack.c.l.b16 %v1302
    %v1406 = vunpack.c.l.b16 %v1303
    %v1407 = vpack.c.b16 %v1360, %v1359
    %v1408 = vpack.c.b16 %v1362, %v1361
    %v1409 = vpack.c.b16 %v1364, %v1363
    %v1410 = vpack.c.b16 %v1366, %v1365
    %v1411 = vpack.c.b16 %v1368, %v1367
    %v1412 = vpack.c.b16 %v1370, %v1369
    %v1413 = vpack.c.b16 %v1372, %v1371
    %v1414 = vpack.c.b16 %v1374, %v1373
    %v1415 = vpack.c.b16 %v1376, %v1375
    %v1416 = vpack.c.b16 %v1378, %v1377
    %v1417 = vpack.c.b16 %v1380, %v1379
    %v1418 = vpack.c.b16 %v1382, %v1381
    %v1419 = vpack.c.b16 %v1384, %v1383
    %v1420 = vpack.c.b16 %v1386, %v1385
    %v1421 = vpack.c.b16 %v1388, %v1387
    %v1422 = vpack.c.b16 %v1390, %v1389
    %v1423 = vpack.c.b16 %v1392, %v1391
    %v1424 = vpack.c.b16 %v1394, %v1393
    %v1425 = vpack.c.b16 %v1396, %v1395
    %v1426 = vpack.c.b16 %v1398, %v1397
    %v1427 = vpack.c.b16 %v1400, %v1399
    %v1428 = vpack.c.b16 %v1402, %v1401
    %v1429 = vpack.c.b16 %v1404, %v1403
    %v1430 = vpack.c.b16 %v1406, %v1405
    %1455 = vmatprep.subr.bf16.mxu0 0
    %1456 = vmatpush1.bf16.msra.mxu0 %v1407
    %1457 = vmatprep.subr.bf16.mxu0 0
    %1458 = vmatpush1.bf16.msra.mxu0 %v1408
    %1459 = vmatprep.subr.bf16.mxu0 0
    %1460 = vmatpush1.bf16.msra.mxu0 %v1409
    %1461 = vmatprep.subr.bf16.mxu0 0
    %1462 = vmatpush1.bf16.msra.mxu0 %v1410
    %1463 = vmatprep.subr.bf16.mxu0 0
    %1464 = vmatpush1.bf16.msra.mxu0 %v1411
    %1465 = vmatprep.subr.bf16.mxu0 0
    %1466 = vmatpush1.bf16.msra.mxu0 %v1412
    %1467 = vmatprep.subr.bf16.mxu0 0
    %1468 = vmatpush1.bf16.msra.mxu0 %v1413
    %1469 = vmatprep.subr.bf16.mxu0 0
    %1470 = vmatpush1.bf16.msra.mxu0 %v1414
    %1471 = vmatprep.subr.bf16.mxu0 0
    %1472 = vmatpush1.bf16.msra.mxu0 %v1415
    %1473 = vmatprep.subr.bf16.mxu0 0
    %1474 = vmatpush1.bf16.msra.mxu0 %v1416
    %1475 = vmatprep.subr.bf16.mxu0 0
    %1476 = vmatpush1.bf16.msra.mxu0 %v1417
    %1477 = vmatprep.subr.bf16.mxu0 0
    %1478 = vmatpush1.bf16.msra.mxu0 %v1418
    %1479 = vmatprep.subr.bf16.mxu0 0
    %1480 = vmatpush1.bf16.msra.mxu0 %v1419
    %1481 = vmatprep.subr.bf16.mxu0 0
    %1482 = vmatpush1.bf16.msra.mxu0 %v1420
    %1483 = vmatprep.subr.bf16.mxu0 0
    %1484 = vmatpush1.bf16.msra.mxu0 %v1421
    %1485 = vmatprep.subr.bf16.mxu0 0
    %1486 = vmatpush1.bf16.msra.mxu0 %v1422
    %1487 = vmatprep.mubr.bf16.mxu0 %v1254
    %1488 = vmatmul.mubr.bf16.gmra.mrb[0].mxu0 %v1253
    %v1489 = vpop.f32.mrb[0].mxu0
    %v1490 = vadd.f32 %v1309, %v1489
    %v1491 = vpop.f32.mrb[0].mxu0
    %v1492 = vpop.f32.mrb[0].mxu0
    %v1493 = vadd.f32 %v1309, %v1492
    %v1494 = vpop.f32.mrb[0].mxu0
    %1495 = vdwg.mxu0
    %1496 = vmatprep.subr.bf16.mxu0 0
    %1497 = vmatpush1.bf16.msra.mxu0 %v1423
    %1498 = vmatprep.subr.bf16.mxu0 0
    %1499 = vmatpush1.bf16.msra.mxu0 %v1424
    %1500 = vmatprep.subr.bf16.mxu0 0
    %1501 = vmatpush1.bf16.msra.mxu0 %v1425
    %1502 = vmatprep.subr.bf16.mxu0 0
    %1503 = vmatpush1.bf16.msra.mxu0 %v1426
    %1504 = vmatprep.subr.bf16.mxu0 0
    %1505 = vmatpush1.bf16.msra.mxu0 %v1427
    %1506 = vmatprep.subr.bf16.mxu0 0
    %1507 = vmatpush1.bf16.msra.mxu0 %v1428
    %1508 = vmatprep.subr.bf16.mxu0 0
    %1509 = vmatpush1.bf16.msra.mxu0 %v1429
    %1510 = vmatprep.subr.bf16.mxu0 0
    %1511 = vmatpush1.bf16.msra.mxu0 %v1430
    %1512 = vmatprep.subr.bf16.mxu0 0
    %1513 = vmatpush1.bf16.msra.mxu0 0
    %1514 = vmatprep.subr.bf16.mxu0 0
    %1515 = vmatpush1.bf16.msra.mxu0 0
    %1516 = vmatprep.subr.bf16.mxu0 0
    %1517 = vmatpush1.bf16.msra.mxu0 0
    %1518 = vmatprep.subr.bf16.mxu0 0
    %1519 = vmatpush1.bf16.msra.mxu0 0
    %1520 = vmatprep.subr.bf16.mxu0 0
    %1521 = vmatpush1.bf16.msra.mxu0 0
    %1522 = vmatprep.subr.bf16.mxu0 0
    %1523 = vmatpush1.bf16.msra.mxu0 0
    %1524 = vmatprep.subr.bf16.mxu0 0
    %1525 = vmatpush1.bf16.msra.mxu0 0
    %1526 = vmatprep.subr.bf16.mxu0 0
    %1527 = vmatpush1.bf16.msra.mxu0 0
    %1528 = vmatprep.mubr.bf16.mxu0 0
    %1529 = vmatmul.mubr.bf16.gmra.mrb[0].mxu0 %v1255
    %v1530 = vpop.f32.mrb[0].mxu0
    %v1531 = vadd.f32 %v1490, %v1530
    %v1532 = vpop.f32.mrb[0].mxu0
    %v1533 = vpop.f32.mrb[0].mxu0
    %v1534 = vadd.f32 %v1493, %v1533
    %v1535 = vpop.f32.mrb[0].mxu0
    %1536 = vdwg.mxu0
    %v1537 = vtanh.pop %v1531
    %v1538 = vtanh.pop %v1534
    %v1539 = vpack.c.bf16 %v1538, %v1537
    %v1540 = vld [vmem:[#allocation10] sm:$0xf]
    %v1541 = vld [vmem:[#allocation10 + $0x4] sm:$0xf]
    %v1542 = vld [vmem:[#allocation10 + $0x8] sm:$0xf]
    %v1543 = vld [vmem:[#allocation10 + $0xc] sm:$0xf]
    %v1544 = vld [vmem:[#allocation10 + $0x10] sm:$0xf]
    %v1545 = vld [vmem:[#allocation10 + $0x14] sm:$0xf]
    %v1546 = vld [vmem:[#allocation10 + $0x18] sm:$0xf]
    %v1547 = vld [vmem:[#allocation10 + $0x1c] sm:$0xf]
    %v1548 = vld [vmem:[#allocation10 + $0x20] sm:$0xf]
    %v1549 = vld [vmem:[#allocation10 + $0x24] sm:$0xf]
    %v1550 = vld [vmem:[#allocation10 + $0x28] sm:$0xf]
    %v1551 = vld [vmem:[#allocation10 + $0x2c] sm:$0xf]
    %v1552 = vld [vmem:[#allocation10 + $0x30] sm:$0xf]
    %v1553 = vld [vmem:[#allocation10 + $0x34] sm:$0xf]
    %v1554 = vld [vmem:[#allocation10 + $0x38] sm:$0xf]
    %v1555 = vld [vmem:[#allocation10 + $0x3c] sm:$0xf]
    %v1556 = vld [vmem:[%s8] sm:$0x1]
    %v1558 = vlaneseq
    %v1559 = vshrl.u32 %v1558, 7
    %v1560 = vsub.s32 0, %v1559
    %v1561 = vrot.slane %v1556, %v1560
    %v1579 = vunpack.c.l.b16 %v1540
    %v1580 = vunpack.c.l.b16 %v1541
    %v1581 = vunpack.c.l.b16 %v1542
    %v1582 = vunpack.c.l.b16 %v1543
    %v1583 = vunpack.c.l.b16 %v1544
    %v1584 = vunpack.c.l.b16 %v1545
    %v1585 = vunpack.c.l.b16 %v1546
    %v1586 = vunpack.c.l.b16 %v1547
    %v1587 = vunpack.c.l.b16 %v1548
    %v1588 = vunpack.c.l.b16 %v1549
    %v1589 = vunpack.c.l.b16 %v1550
    %v1590 = vunpack.c.l.b16 %v1551
    %v1591 = vunpack.c.l.b16 %v1552
    %v1592 = vunpack.c.l.b16 %v1553
    %v1593 = vunpack.c.l.b16 %v1554
    %v1594 = vunpack.c.l.b16 %v1555
    %v1595 = vpack.c.b16 %v1580, %v1579
    %v1596 = vpack.c.b16 %v1582, %v1581
    %v1597 = vpack.c.b16 %v1584, %v1583
    %v1598 = vpack.c.b16 %v1586, %v1585
    %v1599 = vpack.c.b16 %v1588, %v1587
    %v1600 = vpack.c.b16 %v1590, %v1589
    %v1601 = vpack.c.b16 %v1592, %v1591
    %v1602 = vpack.c.b16 %v1594, %v1593
    %1611 = vmatprep.subr.bf16.mxu0 0
    %1612 = vmatpush1.bf16.msra.mxu0 %v1595
    %1613 = vmatprep.subr.bf16.mxu0 0
    %1614 = vmatpush1.bf16.msra.mxu0 %v1596
    %1615 = vmatprep.subr.bf16.mxu0 0
    %1616 = vmatpush1.bf16.msra.mxu0 %v1597
    %1617 = vmatprep.subr.bf16.mxu0 0
    %1618 = vmatpush1.bf16.msra.mxu0 %v1598
    %1619 = vmatprep.subr.bf16.mxu0 0
    %1620 = vmatpush1.bf16.msra.mxu0 %v1599
    %1621 = vmatprep.subr.bf16.mxu0 0
    %1622 = vmatpush1.bf16.msra.mxu0 %v1600
    %1623 = vmatprep.subr.bf16.mxu0 0
    %1624 = vmatpush1.bf16.msra.mxu0 %v1601
    %1625 = vmatprep.subr.bf16.mxu0 0
    %1626 = vmatpush1.bf16.msra.mxu0 %v1602
    %1627 = vmatprep.subr.bf16.mxu0 0
    %1628 = vmatpush1.bf16.msra.mxu0 0
    %1629 = vmatprep.subr.bf16.mxu0 0
    %1630 = vmatpush1.bf16.msra.mxu0 0
    %1631 = vmatprep.subr.bf16.mxu0 0
    %1632 = vmatpush1.bf16.msra.mxu0 0
    %1633 = vmatprep.subr.bf16.mxu0 0
    %1634 = vmatpush1.bf16.msra.mxu0 0
    %1635 = vmatprep.subr.bf16.mxu0 0
    %1636 = vmatpush1.bf16.msra.mxu0 0
    %1637 = vmatprep.subr.bf16.mxu0 0
    %1638 = vmatpush1.bf16.msra.mxu0 0
    %1639 = vmatprep.subr.bf16.mxu0 0
    %1640 = vmatpush1.bf16.msra.mxu0 0
    %1641 = vmatprep.subr.bf16.mxu0 0
    %1642 = vmatpush1.bf16.msra.mxu0 0
    %1643 = vmatprep.mubr.bf16.mxu0 0
    %1644 = vmatmul.mubr.bf16.gmra.mrb[0].mxu0 %v1539
    %v1645 = vpop.f32.mrb[0].mxu0
    %v1646 = vadd.f32 %v1561, %v1645
    %v1647 = vpop.f32.mrb[0].mxu0
    %v1648 = vpop.f32.mrb[0].mxu0
    %v1649 = vadd.f32 %v1561, %v1648
    %v1650 = vpop.f32.mrb[0].mxu0
    %1651 = vdwg.mxu0
    %v1652 = vtanh.pop %v1646
    %v1653 = vtanh.pop %v1649
    %v1654 = vlaneseq
    %v1655 = vand.u32 %v1654, 127
    %vm1656 = vcmp.lt.s32.totalorder %v1655, 3
    %v1657 = vsel %vm1656, %v1652, -1e+30
    %v1658 = vsel %vm1656, %v1653, -1e+30
    %1659 = vmax.xlane.f32.xlu0 %v1657
    %v1660 = vpop.xlane.xlu0 %1659
    %1661 = vmax.xlane.f32.xlu0 %v1658
    %v1662 = vpop.xlane.xlu0 %1661
    %v1663 = vsub.f32 %v1657, %v1660
    %v1664 = vsub.f32 %v1658, %v1662
    %v1665 = vmul.f32 %v1663, 1.442695
    %v1666 = vpow.pop %v1665
    %v1667 = vmul.f32 %v1664, 1.442695
    %v1668 = vpow.pop %v1667
    %1669 = vadd.xlane.f32.xlu0 %v1666
    %v1670 = vpop.xlane.xlu0 %1669
    %1671 = vadd.xlane.f32.xlu0 %v1668
    %v1672 = vpop.xlane.xlu0 %1671
    %v1673 = vlog2.pop %v1670
    %v1674 = vmul.f32 %v1673, 0.6931472
    %v1675 = vlog2.pop %v1672
    %v1676 = vmul.f32 %v1675, 0.6931472
    %v1677 = vsub.f32 %v1663, %v1674
    %v1678 = vsub.f32 %v1664, %v1676
    %1679 = vst [vmem:[#allocation11] sm:$0xff] %v1677
    %1680 = vst [vmem:[#allocation11 + $0x8] sm:$0xff] %v1678
    // Predicated region
    $region58: #{tpu_custom_call.1} parent=1 // pred_check
      _
    $region59: #{tpu_custom_call.1} parent=1 // pred_check_branch
      %1682 = sbr.rel (0) target = $region61
    $region60: #{tpu_custom_call.1} parent=1 // pred_region
      %s1684 = ssub.s32 256, 256
      %1685 = vsyncadd [#allocation4], %s1684
      %s1686 = sshll.u32 [#allocation11], 4
      %s1687 = int_to_ptr.vmem [resolvable:$true] %s1686
      %1692 = dma.vmem_to_hbm [thread:$0]  %s1687, 256, %s9, [#allocation4], 128, 128, 8
    $region61: #{tpu_custom_call.1} parent=1 // pred_fallthru
      _
    // Predicated region
    $region62: #{tpu_custom_call.1} parent=1 // pred_check
      _
    $region63: #{tpu_custom_call.1} parent=1 // pred_check_branch
      %1694 = sbr.rel (0) target = $region65
    $region64: #{tpu_custom_call.1} parent=1 // pred_region
      %1695 = dma.done [#allocation4], 256
    $region65: #{tpu_custom_call.1} parent=1 // pred_fallthru
      _
    %1696 = vsyncpa [#allocation3], 1
    %1697 = vsyncpa [#allocation6], 1
    %1698 = vsyncpa [#allocation9], 1
    %1699 = vsyncpa [#allocation4], 1

// kernel: tpu_custom_call.1
$region0: #{tpu_custom_call.1}
  #allocation0 [shape = 'u32[]', space=smem, size = 0x4, offset = 0x4, fixed_abs, tag = 'smem constant byte address 0x4 - core index']
  #allocation1 [shape = 'u32[144,128]{1,0:T(1,128)}', space=vmem, size = 0x12000, scoped, tag = 'internal scratch']
  %s0 = inlined_call_operand.hbm [shape: bf16[16,128], index: 0, kind: input, shape index: {}]
  %s1 = inlined_call_operand.hbm [shape: bf16[128,512], index: 1, kind: input, shape index: {}]
  %s2 = inlined_call_operand.vmem [shape: f32[1,512], index: 2, kind: input, shape index: {}]
  %s3 = inlined_call_operand.hbm [shape: bf16[512,384], index: 3, kind: input, shape index: {}]
  %s4 = inlined_call_operand.vmem [shape: f32[1,384], index: 4, kind: input, shape index: {}]
  %s5 = inlined_call_operand.hbm [shape: bf16[384,128], index: 5, kind: input, shape index: {}]
  %s6 = inlined_call_operand.vmem [shape: f32[1,128], index: 6, kind: input, shape index: {}]
  %s7 = inlined_call_operand.hbm [shape: bf16[128,128], index: 7, kind: input, shape index: {}]
  %s8 = inlined_call_operand.vmem [shape: f32[1,128], index: 8, kind: input, shape index: {}]
  %s9 = inlined_call_operand.hbm [shape: f32[16,128], index: 9, kind: output, shape index: {}]
  %s10 = sld [smem:[#allocation0]]
  $region66: #{tpu_custom_call.1} parent=0
    _
  %s12 = ssub.s32 1, %s10
  %s13 = scalar_select 0, %s12, %s10
  $region1: #{tpu_custom_call.1} parent=0
    #allocation2 [shape = 'u8[4096]{0}', space=vmem, size = 0x1000, scoped, tag = 'input window, operand 0, single buffered']
    #allocation3 [shape = 's32[1]{0}', space=sflag, size = 0x4, scoped, tag = 'scoped memory for tpu_custom_call.1']
    #allocation4 [shape = 's32[1]{0}', space=sflag, size = 0x4, scoped, tag = 'scoped memory for tpu_custom_call.1']
    #allocation5 [shape = 'u8[131072]{0}', space=vmem, size = 0x20000, scoped, tag = 'input window, operand 1, single buffered']
    #allocation6 [shape = 's32[1]{0}', space=sflag, size = 0x4, scoped, tag = 'scoped memory for tpu_custom_call.1']
    #allocation7 [shape = 'u8[393216]{0}', space=vmem, size = 0x60000, scoped, tag = 'input window, operand 3, single buffered']
    #allocation8 [shape = 'u8[98304]{0}', space=vmem, size = 0x18000, scoped, tag = 'input window, operand 5, single buffered']
    #allocation9 [shape = 's32[1]{0}', space=sflag, size = 0x4, scoped, tag = 'scoped memory for tpu_custom_call.1']
    #allocation10 [shape = 'u8[32768]{0}', space=vmem, size = 0x8000, scoped, tag = 'input window, operand 7, single buffered']
    #allocation11 [shape = 'u8[8192]{0}', space=vmem, size = 0x2000, scoped, tag = 'output window, operand 0, single buffered']
    %14 = vsyncpa [#allocation3], 0
    %15 = vsyncpa [#allocation6], 0
    %16 = vsyncpa [#allocation9], 0
    %17 = vsyncpa [#allocation4], 0
    // Predicated region
    $region2: #{tpu_custom_call.1} parent=1 // pred_check
      _
    $region3: #{tpu_custom_call.1} parent=1 // pred_check_branch
      %19 = sbr.rel (0) target = $region5
    $region4: #{tpu_custom_call.1} parent=1 // pred_region
      %s21 = ssub.s32 128, 128
      %22 = vsyncadd [#allocation3], %s21
      %s23 = sshll.u32 [#allocation2], 4
      %s24 = int_to_ptr.vmem [resolvable:$true] %s23
      %29 = dma.hbm_to_vmem [thread:$0]  %s0, 128, %s24, [#allocation3], 64, 64, 4
    $region5: #{tpu_custom_call.1} parent=1 // pred_fallthru
      _
    // Predicated region
    $region6: #{tpu_custom_call.1} parent=1 // pred_check
      _
    $region7: #{tpu_custom_call.1} parent=1 // pred_check_branch
      %31 = sbr.rel (0) target = $region9
    $region8: #{tpu_custom_call.1} parent=1 // pred_region
      %s33 = ssub.s32 4096, 4096
      %34 = vsyncadd [#allocation6], %s33
      %s35 = sshll.u32 [#allocation5], 4
      %s36 = int_to_ptr.vmem [resolvable:$true] %s35
      %41 = dma.hbm_to_vmem [thread:$0]  %s1, 4096, %s36, [#allocation6], 256, 256, 16
    $region9: #{tpu_custom_call.1} parent=1 // pred_fallthru
      _
    // Predicated region
    $region10: #{tpu_custom_call.1} parent=1 // pred_check
      _
    $region11: #{tpu_custom_call.1} parent=1 // pred_check_branch
      %43 = sbr.rel (0) target = $region13
    $region12: #{tpu_custom_call.1} parent=1 // pred_region
      _
    $region13: #{tpu_custom_call.1} parent=1 // pred_fallthru
      _
    // Predicated region
    $region14: #{tpu_custom_call.1} parent=1 // pred_check
      _
    $region15: #{tpu_custom_call.1} parent=1 // pred_check_branch
      %45 = sbr.rel (0) target = $region17
    $region16: #{tpu_custom_call.1} parent=1 // pred_region
      %s47 = ssub.s32 12288, 12288
      %48 = vsyncadd [#allocation6], %s47
      %s49 = sshll.u32 [#allocation7], 4
      %s50 = int_to_ptr.vmem [resolvable:$true] %s49
      %55 = dma.hbm_to_vmem [thread:$0]  %s3, 12288, %s50, [#allocation6], 192, 192, 12
    $region17: #{tpu_custom_call.1} parent=1 // pred_fallthru
      _
    // Predicated region
    $region18: #{tpu_custom_call.1} parent=1 // pred_check
      _
    $region19: #{tpu_custom_call.1} parent=1 // pred_check_branch
      %57 = sbr.rel (0) target = $region21
    $region20: #{tpu_custom_call.1} parent=1 // pred_region
      _
    $region21: #{tpu_custom_call.1} parent=1 // pred_fallthru
      _
    // Predicated region
    $region22: #{tpu_custom_call.1} parent=1 // pred_check
      _
    $region23: #{tpu_custom_call.1} parent=1 // pred_check_branch
      %59 = sbr.rel (0) target = $region25
    $region24: #{tpu_custom_call.1} parent=1 // pred_region
      %s61 = ssub.s32 3072, 3072
      %62 = vsyncadd [#allocation9], %s61
      %s63 = sshll.u32 [#allocation8], 4
      %s64 = int_to_ptr.vmem [resolvable:$true] %s63
      %69 = dma.hbm_to_vmem [thread:$0]  %s5, 3072, %s64, [#allocation9], 64, 64, 4
    $region25: #{tpu_custom_call.1} parent=1 // pred_fallthru
      _
    // Predicated region
    $region26: #{tpu_custom_call.1} parent=1 // pred_check
      _
    $region27: #{tpu_custom_call.1} parent=1 // pred_check_branch
      %71 = sbr.rel (0) target = $region29
    $region28: #{tpu_custom_call.1} parent=1 // pred_region
      _
    $region29: #{tpu_custom_call.1} parent=1 // pred_fallthru
      _
    // Predicated region
    $region30: #{tpu_custom_call.1} parent=1 // pred_check
      _
    $region31: #{tpu_custom_call.1} parent=1 // pred_check_branch
      %73 = sbr.rel (0) target = $region33
    $region32: #{tpu_custom_call.1} parent=1 // pred_region
      %s75 = ssub.s32 1024, 1024
      %76 = vsyncadd [#allocation9], %s75
      %s77 = sshll.u32 [#allocation10], 4
      %s78 = int_to_ptr.vmem [resolvable:$true] %s77
      %83 = dma.hbm_to_vmem [thread:$0]  %s7, 1024, %s78, [#allocation9], 64, 64, 4
    $region33: #{tpu_custom_call.1} parent=1 // pred_fallthru
      _
    // Predicated region
    $region34: #{tpu_custom_call.1} parent=1 // pred_check
      _
    $region35: #{tpu_custom_call.1} parent=1 // pred_check_branch
      %85 = sbr.rel (0) target = $region37
    $region36: #{tpu_custom_call.1} parent=1 // pred_region
      _
    $region37: #{tpu_custom_call.1} parent=1 // pred_fallthru
      _
    // Predicated region
    $region38: #{tpu_custom_call.1} parent=1 // pred_check
      _
    $region39: #{tpu_custom_call.1} parent=1 // pred_check_branch
      %87 = sbr.rel (0) target = $region41
    $region40: #{tpu_custom_call.1} parent=1 // pred_region
      %88 = dma.done [#allocation3], 128
    $region41: #{tpu_custom_call.1} parent=1 // pred_fallthru
      _
    // Predicated region
    $region42: #{tpu_custom_call.1} parent=1 // pred_check
      _
    $region43: #{tpu_custom_call.1} parent=1 // pred_check_branch
      %90 = sbr.rel (0) target = $region45
    $region44: #{tpu_custom_call.1} parent=1 // pred_region
      %91 = dma.done [#allocation6], 4096
    $region45: #{tpu_custom_call.1} parent=1 // pred_fallthru
      _
    // Predicated region
    $region46: #{tpu_custom_call.1} parent=1 // pred_check
      _
    $region47: #{tpu_custom_call.1} parent=1 // pred_check_branch
      %93 = sbr.rel (0) target = $region49
    $region48: #{tpu_custom_call.1} parent=1 // pred_region
      %94 = dma.done [#allocation6], 12288
    $region49: #{tpu_custom_call.1} parent=1 // pred_fallthru
      _
    // Predicated region
    $region50: #{tpu_custom_call.1} parent=1 // pred_check
      _
    $region51: #{tpu_custom_call.1} parent=1 // pred_check_branch
      %96 = sbr.rel (0) target = $region53
    $region52: #{tpu_custom_call.1} parent=1 // pred_region
      %97 = dma.done [#allocation9], 3072
    $region53: #{tpu_custom_call.1} parent=1 // pred_fallthru
      _
    // Predicated region
    $region54: #{tpu_custom_call.1} parent=1 // pred_check
      _
    $region55: #{tpu_custom_call.1} parent=1 // pred_check_branch
      %99 = sbr.rel (0) target = $region57
    $region56: #{tpu_custom_call.1} parent=1 // pred_region
      %100 = dma.done [#allocation9], 1024
    $region57: #{tpu_custom_call.1} parent=1 // pred_fallthru
      _
    %v102 = vld [vmem:[#allocation2] sm:$0xf]
    %v103 = vld [vmem:[#allocation2 + $0x4] sm:$0xf]
    %v104 = vld [vmem:[#allocation5] sm:$0xff]
    %v105 = vld [vmem:[#allocation5 + $0x8] sm:$0xff]
    %v106 = vld [vmem:[#allocation5 + $0x10] sm:$0xff]
    %v107 = vld [vmem:[#allocation5 + $0x18] sm:$0xff]
    %v108 = vld [vmem:[#allocation5 + $0x20] sm:$0xff]
    %v109 = vld [vmem:[#allocation5 + $0x28] sm:$0xff]
    %v110 = vld [vmem:[#allocation5 + $0x30] sm:$0xff]
    %v111 = vld [vmem:[#allocation5 + $0x38] sm:$0xff]
    %v112 = vld [vmem:[#allocation5 + $0x40] sm:$0xff]
    %v113 = vld [vmem:[#allocation5 + $0x48] sm:$0xff]
    %v114 = vld [vmem:[#allocation5 + $0x50] sm:$0xff]
    %v115 = vld [vmem:[#allocation5 + $0x58] sm:$0xff]
    %v116 = vld [vmem:[#allocation5 + $0x60] sm:$0xff]
    %v117 = vld [vmem:[#allocation5 + $0x68] sm:$0xff]
    %v118 = vld [vmem:[#allocation5 + $0x70] sm:$0xff]
    %v119 = vld [vmem:[#allocation5 + $0x78] sm:$0xff]
    %v120 = vld [vmem:[#allocation5 + $0x80] sm:$0xff]
    %v121 = vld [vmem:[#allocation5 + $0x88] sm:$0xff]
    %v122 = vld [vmem:[#allocation5 + $0x90] sm:$0xff]
    %v123 = vld [vmem:[#allocation5 + $0x98] sm:$0xff]
    %v124 = vld [vmem:[#allocation5 + $0xa0] sm:$0xff]
    %v125 = vld [vmem:[#allocation5 + $0xa8] sm:$0xff]
    %v126 = vld [vmem:[#allocation5 + $0xb0] sm:$0xff]
    %v127 = vld [vmem:[#allocation5 + $0xb8] sm:$0xff]
    %v128 = vld [vmem:[#allocation5 + $0xc0] sm:$0xff]
    %v129 = vld [vmem:[#allocation5 + $0xc8] sm:$0xff]
    %v130 = vld [vmem:[#allocation5 + $0xd0] sm:$0xff]
    %v131 = vld [vmem:[#allocation5 + $0xd8] sm:$0xff]
    %v132 = vld [vmem:[#allocation5 + $0xe0] sm:$0xff]
    %v133 = vld [vmem:[#allocation5 + $0xe8] sm:$0xff]
    %v134 = vld [vmem:[#allocation5 + $0xf0] sm:$0xff]
    %v135 = vld [vmem:[#allocation5 + $0xf8] sm:$0xff]
    %v136 = vld [vmem:[%s2] sm:$0xf]
    %v138 = vlaneseq
    %v139 = vshrl.u32 %v138, 7
    %v140 = vsub.s32 0, %v139
    %v141 = vrot.slane %v136, %v140
    %v142 = vlaneseq
    %v143 = vshrl.u32 %v142, 7
    %v144 = vsub.s32 1, %v143
    %v145 = vrot.slane %v136, %v144
    %v146 = vlaneseq
    %v147 = vshrl.u32 %v146, 7
    %v148 = vsub.s32 2, %v147
    %v149 = vrot.slane %v136, %v148
    %v150 = vlaneseq
    %v151 = vshrl.u32 %v150, 7
    %v152 = vsub.s32 3, %v151
    %v153 = vrot.slane %v136, %v152
    %v160 = vunpack.c.l.b16 %v102
    %v161 = vunpack.c.l.b16 %v103
    %v162 = vpack.c.b16 %v161, %v160
    %v196 = vunpack.c.l.b16 %v104
    %v197 = vunpack.c.h.b16 %v104
    %v198 = vunpack.c.l.b16 %v105
    %v199 = vunpack.c.h.b16 %v105
    %v200 = vunpack.c.l.b16 %v106
    %v201 = vunpack.c.h.b16 %v106
    %v202 = vunpack.c.l.b16 %v107
    %v203 = vunpack.c.h.b16 %v107
    %v204 = vunpack.c.l.b16 %v108
    %v205 = vunpack.c.h.b16 %v108
    %v206 = vunpack.c.l.b16 %v109
    %v207 = vunpack.c.h.b16 %v109
    %v208 = vunpack.c.l.b16 %v110
    %v209 = vunpack.c.h.b16 %v110
    %v210 = vunpack.c.l.b16 %v111
    %v211 = vunpack.c.h.b16 %v111
    %v212 = vunpack.c.l.b16 %v112
    %v213 = vunpack.c.h.b16 %v112
    %v214 = vunpack.c.l.b16 %v113
    %v215 = vunpack.c.h.b16 %v113
    %v216 = vunpack.c.l.b16 %v114
    %v217 = vunpack.c.h.b16 %v114
    %v218 = vunpack.c.l.b16 %v115
    %v219 = vunpack.c.h.b16 %v115
    %v220 = vunpack.c.l.b16 %v116
    %v221 = vunpack.c.h.b16 %v116
    %v222 = vunpack.c.l.b16 %v117
    %v223 = vunpack.c.h.b16 %v117
    %v224 = vunpack.c.l.b16 %v118
    %v225 = vunpack.c.h.b16 %v118
    %v226 = vunpack.c.l.b16 %v119
    %v227 = vunpack.c.h.b16 %v119
    %v228 = vunpack.c.l.b16 %v120
    %v229 = vunpack.c.h.b16 %v120
    %v230 = vunpack.c.l.b16 %v121
    %v231 = vunpack.c.h.b16 %v121
    %v232 = vunpack.c.l.b16 %v122
    %v233 = vunpack.c.h.b16 %v122
    %v234 = vunpack.c.l.b16 %v123
    %v235 = vunpack.c.h.b16 %v123
    %v236 = vunpack.c.l.b16 %v124
    %v237 = vunpack.c.h.b16 %v124
    %v238 = vunpack.c.l.b16 %v125
    %v239 = vunpack.c.h.b16 %v125
    %v240 = vunpack.c.l.b16 %v126
    %v241 = vunpack.c.h.b16 %v126
    %v242 = vunpack.c.l.b16 %v127
    %v243 = vunpack.c.h.b16 %v127
    %v244 = vunpack.c.l.b16 %v128
    %v245 = vunpack.c.h.b16 %v128
    %v246 = vunpack.c.l.b16 %v129
    %v247 = vunpack.c.h.b16 %v129
    %v248 = vunpack.c.l.b16 %v130
    %v249 = vunpack.c.h.b16 %v130
    %v250 = vunpack.c.l.b16 %v131
    %v251 = vunpack.c.h.b16 %v131
    %v252 = vunpack.c.l.b16 %v132
    %v253 = vunpack.c.h.b16 %v132
    %v254 = vunpack.c.l.b16 %v133
    %v255 = vunpack.c.h.b16 %v133
    %v256 = vunpack.c.l.b16 %v134
    %v257 = vunpack.c.h.b16 %v134
    %v258 = vunpack.c.l.b16 %v135
    %v259 = vunpack.c.h.b16 %v135
    %v260 = vpack.c.b16 %v200, %v196
    %v261 = vpack.c.b16 %v201, %v197
    %v262 = vpack.c.b16 %v202, %v198
    %v263 = vpack.c.b16 %v203, %v199
    %v264 = vpack.c.b16 %v208, %v204
    %v265 = vpack.c.b16 %v209, %v205
    %v266 = vpack.c.b16 %v210, %v206
    %v267 = vpack.c.b16 %v211, %v207
    %v268 = vpack.c.b16 %v216, %v212
    %v269 = vpack.c.b16 %v217, %v213
    %v270 = vpack.c.b16 %v218, %v214
    %v271 = vpack.c.b16 %v219, %v215
    %v272 = vpack.c.b16 %v224, %v220
    %v273 = vpack.c.b16 %v225, %v221
    %v274 = vpack.c.b16 %v226, %v222
    %v275 = vpack.c.b16 %v227, %v223
    %v276 = vpack.c.b16 %v232, %v228
    %v277 = vpack.c.b16 %v233, %v229
    %v278 = vpack.c.b16 %v234, %v230
    %v279 = vpack.c.b16 %v235, %v231
    %v280 = vpack.c.b16 %v240, %v236
    %v281 = vpack.c.b16 %v241, %v237
    %v282 = vpack.c.b16 %v242, %v238
    %v283 = vpack.c.b16 %v243, %v239
    %v284 = vpack.c.b16 %v248, %v244
    %v285 = vpack.c.b16 %v249, %v245
    %v286 = vpack.c.b16 %v250, %v246
    %v287 = vpack.c.b16 %v251, %v247
    %v288 = vpack.c.b16 %v256, %v252
    %v289 = vpack.c.b16 %v257, %v253
    %v290 = vpack.c.b16 %v258, %v254
    %v291 = vpack.c.b16 %v259, %v255
    %324 = vmatprep.subr.bf16.mxu0 %v261
    %325 = vmatpush1.bf16.msra.mxu0 %v260
    %326 = vmatprep.subr.bf16.mxu0 %v265
    %327 = vmatpush1.bf16.msra.mxu0 %v264
    %328 = vmatprep.subr.bf16.mxu0 %v269
    %329 = vmatpush1.bf16.msra.mxu0 %v268
    %330 = vmatprep.subr.bf16.mxu0 %v273
    %331 = vmatpush1.bf16.msra.mxu0 %v272
    %332 = vmatprep.subr.bf16.mxu0 %v277
    %333 = vmatpush1.bf16.msra.mxu0 %v276
    %334 = vmatprep.subr.bf16.mxu0 %v281
    %335 = vmatpush1.bf16.msra.mxu0 %v280
    %336 = vmatprep.subr.bf16.mxu0 %v285
    %337 = vmatpush1.bf16.msra.mxu0 %v284
    %338 = vmatprep.subr.bf16.mxu0 %v289
    %339 = vmatpush1.bf16.msra.mxu0 %v288
    %340 = vmatprep.subr.bf16.mxu0 0
    %341 = vmatpush1.bf16.msra.mxu0 0
    %342 = vmatprep.subr.bf16.mxu0 0
    %343 = vmatpush1.bf16.msra.mxu0 0
    %344 = vmatprep.subr.bf16.mxu0 0
    %345 = vmatpush1.bf16.msra.mxu0 0
    %346 = vmatprep.subr.bf16.mxu0 0
    %347 = vmatpush1.bf16.msra.mxu0 0
    %348 = vmatprep.subr.bf16.mxu0 0
    %349 = vmatpush1.bf16.msra.mxu0 0
    %350 = vmatprep.subr.bf16.mxu0 0
    %351 = vmatpush1.bf16.msra.mxu0 0
    %352 = vmatprep.subr.bf16.mxu0 0
    %353 = vmatpush1.bf16.msra.mxu0 0
    %354 = vmatprep.subr.bf16.mxu0 0
    %355 = vmatpush1.bf16.msra.mxu0 0
    %356 = vmatprep.mubr.bf16.mxu0 0
    %357 = vmatmul.mubr.bf16.gmra.mrb[0].mxu0 %v162
    %v358 = vpop.f32.mrb[0].mxu0
    %v359 = vadd.f32 %v141, %v358
    %v360 = vpop.f32.mrb[0].mxu0
    %v361 = vadd.f32 %v145, %v360
    %v362 = vpop.f32.mrb[0].mxu0
    %v363 = vadd.f32 %v141, %v362
    %v364 = vpop.f32.mrb[0].mxu0
    %v365 = vadd.f32 %v145, %v364
    %366 = vdwg.mxu0
    %367 = vmatprep.subr.bf16.mxu0 %v263
    %368 = vmatpush1.bf16.msra.mxu0 %v262
    %369 = vmatprep.subr.bf16.mxu0 %v267
    %370 = vmatpush1.bf16.msra.mxu0 %v266
    %371 = vmatprep.subr.bf16.mxu0 %v271
    %372 = vmatpush1.bf16.msra.mxu0 %v270
    %373 = vmatprep.subr.bf16.mxu0 %v275
    %374 = vmatpush1.bf16.msra.mxu0 %v274
    %375 = vmatprep.subr.bf16.mxu0 %v279
    %376 = vmatpush1.bf16.msra.mxu0 %v278
    %377 = vmatprep.subr.bf16.mxu0 %v283
    %378 = vmatpush1.bf16.msra.mxu0 %v282
    %379 = vmatprep.subr.bf16.mxu0 %v287
    %380 = vmatpush1.bf16.msra.mxu0 %v286
    %381 = vmatprep.subr.bf16.mxu0 %v291
    %382 = vmatpush1.bf16.msra.mxu0 %v290
    %383 = vmatprep.subr.bf16.mxu0 0
    %384 = vmatpush1.bf16.msra.mxu0 0
    %385 = vmatprep.subr.bf16.mxu0 0
    %386 = vmatpush1.bf16.msra.mxu0 0
    %387 = vmatprep.subr.bf16.mxu0 0
    %388 = vmatpush1.bf16.msra.mxu0 0
    %389 = vmatprep.subr.bf16.mxu0 0
    %390 = vmatpush1.bf16.msra.mxu0 0
    %391 = vmatprep.subr.bf16.mxu0 0
    %392 = vmatpush1.bf16.msra.mxu0 0
    %393 = vmatprep.subr.bf16.mxu0 0
    %394 = vmatpush1.bf16.msra.mxu0 0
    %395 = vmatprep.subr.bf16.mxu0 0
    %396 = vmatpush1.bf16.msra.mxu0 0
    %397 = vmatprep.subr.bf16.mxu0 0
    %398 = vmatpush1.bf16.msra.mxu0 0
    %399 = vmatprep.mubr.bf16.mxu0 0
    %400 = vmatmul.mubr.bf16.gmra.mrb[0].mxu0 %v162
    %v401 = vpop.f32.mrb[0].mxu0
    %v402 = vadd.f32 %v149, %v401
    %v403 = vpop.f32.mrb[0].mxu0
    %v404 = vadd.f32 %v153, %v403
    %v405 = vpop.f32.mrb[0].mxu0
    %v406 = vadd.f32 %v149, %v405
    %v407 = vpop.f32.mrb[0].mxu0
    %v408 = vadd.f32 %v153, %v407
    %409 = vdwg.mxu0
    %v410 = vmax.f32 %v359, 0.0
    %v411 = vmax.f32 %v361, 0.0
    %v412 = vmax.f32 %v402, 0.0
    %v413 = vmax.f32 %v404, 0.0
    %v414 = vmax.f32 %v363, 0.0
    %v415 = vmax.f32 %v365, 0.0
    %v416 = vmax.f32 %v406, 0.0
    %v417 = vmax.f32 %v408, 0.0
    %v418 = vpack.c.bf16 %v414, %v410
    %v419 = vpack.c.bf16 %v415, %v411
    %v420 = vpack.c.bf16 %v416, %v412
    %v421 = vpack.c.bf16 %v417, %v413
    %v422 = vld [vmem:[#allocation7] sm:$0xff]
    %v423 = vld [vmem:[#allocation7 + $0x8] sm:$0xf]
    %v424 = vld [vmem:[#allocation7 + $0xc] sm:$0xff]
    %v425 = vld [vmem:[#allocation7 + $0x14] sm:$0xf]
    %v426 = vld [vmem:[#allocation7 + $0x18] sm:$0xff]
    %v427 = vld [vmem:[#allocation7 + $0x20] sm:$0xf]
    %v428 = vld [vmem:[#allocation7 + $0x24] sm:$0xff]
    %v429 = vld [vmem:[#allocation7 + $0x2c] sm:$0xf]
    %v430 = vld [vmem:[#allocation7 + $0x30] sm:$0xff]
    %v431 = vld [vmem:[#allocation7 + $0x38] sm:$0xf]
    %v432 = vld [vmem:[#allocation7 + $0x3c] sm:$0xff]
    %v433 = vld [vmem:[#allocation7 + $0x44] sm:$0xf]
    %v434 = vld [vmem:[#allocation7 + $0x48] sm:$0xff]
    %v435 = vld [vmem:[#allocation7 + $0x50] sm:$0xf]
    %v436 = vld [vmem:[#allocation7 + $0x54] sm:$0xff]
    %v437 = vld [vmem:[#allocation7 + $0x5c] sm:$0xf]
    %v438 = vld [vmem:[#allocation7 + $0x60] sm:$0xff]
    %v439 = vld [vmem:[#allocation7 + $0x68] sm:$0xf]
    %v440 = vld [vmem:[#allocation7 + $0x6c] sm:$0xff]
    %v441 = vld [vmem:[#allocation7 + $0x74] sm:$0xf]
    %v442 = vld [vmem:[#allocation7 + $0x78] sm:$0xff]
    %v443 = vld [vmem:[#allocation7 + $0x80] sm:$0xf]
    %v444 = vld [vmem:[#allocation7 + $0x84] sm:$0xff]
    %v445 = vld [vmem:[#allocation7 + $0x8c] sm:$0xf]
    %v446 = vld [vmem:[#allocation7 + $0x90] sm:$0xff]
    %v447 = vld [vmem:[#allocation7 + $0x98] sm:$0xf]
    %v448 = vld [vmem:[#allocation7 + $0x9c] sm:$0xff]
    %v449 = vld [vmem:[#allocation7 + $0xa4] sm:$0xf]
    %v450 = vld [vmem:[#allocation7 + $0xa8] sm:$0xff]
    %v451 = vld [vmem:[#allocation7 + $0xb0] sm:$0xf]
    %v452 = vld [vmem:[#allocation7 + $0xb4] sm:$0xff]
    %v453 = vld [vmem:[#allocation7 + $0xbc] sm:$0xf]
    %v454 = vld [vmem:[#allocation7 + $0xc0] sm:$0xff]
    %v455 = vld [vmem:[#allocation7 + $0xc8] sm:$0xf]
    %v456 = vld [vmem:[#allocation7 + $0xcc] sm:$0xff]
    %v457 = vld [vmem:[#allocation7 + $0xd4] sm:$0xf]
    %v458 = vld [vmem:[#allocation7 + $0xd8] sm:$0xff]
    %v459 = vld [vmem:[#allocation7 + $0xe0] sm:$0xf]
    %v460 = vld [vmem:[#allocation7 + $0xe4] sm:$0xff]
    %v461 = vld [vmem:[#allocation7 + $0xec] sm:$0xf]
    %v462 = vld [vmem:[#allocation7 + $0xf0] sm:$0xff]
    %v463 = vld [vmem:[#allocation7 + $0xf8] sm:$0xf]
    %v464 = vld [vmem:[#allocation7 + $0xfc] sm:$0xff]
    %v465 = vld [vmem:[#allocation7 + $0x104] sm:$0xf]
    %v466 = vld [vmem:[#allocation7 + $0x108] sm:$0xff]
    %v467 = vld [vmem:[#allocation7 + $0x110] sm:$0xf]
    %v468 = vld [vmem:[#allocation7 + $0x114] sm:$0xff]
    %v469 = vld [vmem:[#allocation7 + $0x11c] sm:$0xf]
    %v470 = vld [vmem:[#allocation7 + $0x120] sm:$0xff]
    %v471 = vld [vmem:[#allocation7 + $0x128] sm:$0xf]
    %v472 = vld [vmem:[#allocation7 + $0x12c] sm:$0xff]
    %v473 = vld [vmem:[#allocation7 + $0x134] sm:$0xf]
    %v474 = vld [vmem:[#allocation7 + $0x138] sm:$0xff]
    %v475 = vld [vmem:[#allocation7 + $0x140] sm:$0xf]
    %v476 = vld [vmem:[#allocation7 + $0x144] sm:$0xff]
    %v477 = vld [vmem:[#allocation7 + $0x14c] sm:$0xf]
    %v478 = vld [vmem:[#allocation7 + $0x150] sm:$0xff]
    %v479 = vld [vmem:[#allocation7 + $0x158] sm:$0xf]
    %v480 = vld [vmem:[#allocation7 + $0x15c] sm:$0xff]
    %v481 = vld [vmem:[#allocation7 + $0x164] sm:$0xf]
    %v482 = vld [vmem:[#allocation7 + $0x168] sm:$0xff]
    %v483 = vld [vmem:[#allocation7 + $0x170] sm:$0xf]
    %v484 = vld [vmem:[#allocation7 + $0x174] sm:$0xff]
    %v485 = vld [vmem:[#allocation7 + $0x17c] sm:$0xf]
    %v486 = vld [vmem:[#allocation7 + $0x180] sm:$0xff]
    %v487 = vld [vmem:[#allocation7 + $0x188] sm:$0xf]
    %v488 = vld [vmem:[#allocation7 + $0x18c] sm:$0xff]
    %v489 = vld [vmem:[#allocation7 + $0x194] sm:$0xf]
    %v490 = vld [vmem:[#allocation7 + $0x198] sm:$0xff]
    %v491 = vld [vmem:[#allocation7 + $0x1a0] sm:$0xf]
    %v492 = vld [vmem:[#allocation7 + $0x1a4] sm:$0xff]
    %v493 = vld [vmem:[#allocation7 + $0x1ac] sm:$0xf]
    %v494 = vld [vmem:[#allocation7 + $0x1b0] sm:$0xff]
    %v495 = vld [vmem:[#allocation7 + $0x1b8] sm:$0xf]
    %v496 = vld [vmem:[#allocation7 + $0x1bc] sm:$0xff]
    %v497 = vld [vmem:[#allocation7 + $0x1c4] sm:$0xf]
    %v498 = vld [vmem:[#allocation7 + $0x1c8] sm:$0xff]
    %v499 = vld [vmem:[#allocation7 + $0x1d0] sm:$0xf]
    %v500 = vld [vmem:[#allocation7 + $0x1d4] sm:$0xff]
    %v501 = vld [vmem:[#allocation7 + $0x1dc] sm:$0xf]
    %v502 = vld [vmem:[#allocation7 + $0x1e0] sm:$0xff]
    %v503 = vld [vmem:[#allocation7 + $0x1e8] sm:$0xf]
    %v504 = vld [vmem:[#allocation7 + $0x1ec] sm:$0xff]
    %v505 = vld [vmem:[#allocation7 + $0x1f4] sm:$0xf]
    %v506 = vld [vmem:[#allocation7 + $0x1f8] sm:$0xff]
    %v507 = vld [vmem:[#allocation7 + $0x200] sm:$0xf]
    %v508 = vld [vmem:[#allocation7 + $0x204] sm:$0xff]
    %v509 = vld [vmem:[#allocation7 + $0x20c] sm:$0xf]
    %v510 = vld [vmem:[#allocation7 + $0x210] sm:$0xff]
    %v511 = vld [vmem:[#allocation7 + $0x218] sm:$0xf]
    %v512 = vld [vmem:[#allocation7 + $0x21c] sm:$0xff]
    %v513 = vld [vmem:[#allocation7 + $0x224] sm:$0xf]
    %v514 = vld [vmem:[#allocation7 + $0x228] sm:$0xff]
    %v515 = vld [vmem:[#allocation7 + $0x230] sm:$0xf]
    %v516 = vld [vmem:[#allocation7 + $0x234] sm:$0xff]
    %v517 = vld [vmem:[#allocation7 + $0x23c] sm:$0xf]
    %v518 = vld [vmem:[#allocation7 + $0x240] sm:$0xff]
    %v519 = vld [vmem:[#allocation7 + $0x248] sm:$0xf]
    %v520 = vld [vmem:[#allocation7 + $0x24c] sm:$0xff]
    %v521 = vld [vmem:[#allocation7 + $0x254] sm:$0xf]
    %v522 = vld [vmem:[#allocation7 + $0x258] sm:$0xff]
    %v523 = vld [vmem:[#allocation7 + $0x260] sm:$0xf]
    %v524 = vld [vmem:[#allocation7 + $0x264] sm:$0xff]
    %v525 = vld [vmem:[#allocation7 + $0x26c] sm:$0xf]
    %v526 = vld [vmem:[#allocation7 + $0x270] sm:$0xff]
    %v527 = vld [vmem:[#allocation7 + $0x278] sm:$0xf]
    %v528 = vld [vmem:[#allocation7 + $0x27c] sm:$0xff]
    %v529 = vld [vmem:[#allocation7 + $0x284] sm:$0xf]
    %v530 = vld [vmem:[#allocation7 + $0x288] sm:$0xff]
    %v531 = vld [vmem:[#allocation7 + $0x290] sm:$0xf]
    %v532 = vld [vmem:[#allocation7 + $0x294] sm:$0xff]
    %v533 = vld [vmem:[#allocation7 + $0x29c] sm:$0xf]
    %v534 = vld [vmem:[#allocation7 + $0x2a0] sm:$0xff]
    %v535 = vld [vmem:[#allocation7 + $0x2a8] sm:$0xf]
    %v536 = vld [vmem:[#allocation7 + $0x2ac] sm:$0xff]
    %v537 = vld [vmem:[#allocation7 + $0x2b4] sm:$0xf]
    %v538 = vld [vmem:[#allocation7 + $0x2b8] sm:$0xff]
    %v539 = vld [vmem:[#allocation7 + $0x2c0] sm:$0xf]
    %v540 = vld [vmem:[#allocation7 + $0x2c4] sm:$0xff]
    %v541 = vld [vmem:[#allocation7 + $0x2cc] sm:$0xf]
    %v542 = vld [vmem:[#allocation7 + $0x2d0] sm:$0xff]
    %v543 = vld [vmem:[#allocation7 + $0x2d8] sm:$0xf]
    %v544 = vld [vmem:[#allocation7 + $0x2dc] sm:$0xff]
    %v545 = vld [vmem:[#allocation7 + $0x2e4] sm:$0xf]
    %v546 = vld [vmem:[#allocation7 + $0x2e8] sm:$0xff]
    %v547 = vld [vmem:[#allocation7 + $0x2f0] sm:$0xf]
    %v548 = vld [vmem:[#allocation7 + $0x2f4] sm:$0xff]
    %v549 = vld [vmem:[#allocation7 + $0x2fc] sm:$0xf]
    %v550 = vld [vmem:[%s4] sm:$0x7]
    %v552 = vlaneseq
    %v553 = vshrl.u32 %v552, 7
    %v554 = vsub.s32 0, %v553
    %v555 = vrot.slane %v550, %v554
    %v556 = vlaneseq
    %v557 = vshrl.u32 %v556, 7
    %v558 = vsub.s32 1, %v557
    %v559 = vrot.slane %v550, %v558
    %v560 = vlaneseq
    %v561 = vshrl.u32 %v560, 7
    %v562 = vsub.s32 2, %v561
    %v563 = vrot.slane %v550, %v562
    %v695 = vunpack.c.l.b16 %v422
    %v696 = vunpack.c.h.b16 %v422
    %v697 = vunpack.c.l.b16 %v423
    %v698 = vunpack.c.l.b16 %v424
    %v699 = vunpack.c.h.b16 %v424
    %v700 = vunpack.c.l.b16 %v425
    %v701 = vunpack.c.l.b16 %v426
    %v702 = vunpack.c.h.b16 %v426
    %v703 = vunpack.c.l.b16 %v427
    %v704 = vunpack.c.l.b16 %v428
    %v705 = vunpack.c.h.b16 %v428
    %v706 = vunpack.c.l.b16 %v429
    %v707 = vunpack.c.l.b16 %v430
    %v708 = vunpack.c.h.b16 %v430
    %v709 = vunpack.c.l.b16 %v431
    %v710 = vunpack.c.l.b16 %v432
    %v711 = vunpack.c.h.b16 %v432
    %v712 = vunpack.c.l.b16 %v433
    %v713 = vunpack.c.l.b16 %v434
    %v714 = vunpack.c.h.b16 %v434
    %v715 = vunpack.c.l.b16 %v435
    %v716 = vunpack.c.l.b16 %v436
    %v717 = vunpack.c.h.b16 %v436
    %v718 = vunpack.c.l.b16 %v437
    %v719 = vunpack.c.l.b16 %v438
    %v720 = vunpack.c.h.b16 %v438
    %v721 = vunpack.c.l.b16 %v439
    %v722 = vunpack.c.l.b16 %v440
    %v723 = vunpack.c.h.b16 %v440
    %v724 = vunpack.c.l.b16 %v441
    %v725 = vunpack.c.l.b16 %v442
    %v726 = vunpack.c.h.b16 %v442
    %v727 = vunpack.c.l.b16 %v443
    %v728 = vunpack.c.l.b16 %v444
    %v729 = vunpack.c.h.b16 %v444
    %v730 = vunpack.c.l.b16 %v445
    %v731 = vunpack.c.l.b16 %v446
    %v732 = vunpack.c.h.b16 %v446
    %v733 = vunpack.c.l.b16 %v447
    %v734 = vunpack.c.l.b16 %v448
    %v735 = vunpack.c.h.b16 %v448
    %v736 = vunpack.c.l.b16 %v449
    %v737 = vunpack.c.l.b16 %v450
    %v738 = vunpack.c.h.b16 %v450
    %v739 = vunpack.c.l.b16 %v451
    %v740 = vunpack.c.l.b16 %v452
    %v741 = vunpack.c.h.b16 %v452
    %v742 = vunpack.c.l.b16 %v453
    %v743 = vunpack.c.l.b16 %v454
    %v744 = vunpack.c.h.b16 %v454
    %v745 = vunpack.c.l.b16 %v455
    %v746 = vunpack.c.l.b16 %v456
    %v747 = vunpack.c.h.b16 %v456
    %v748 = vunpack.c.l.b16 %v457
    %v749 = vunpack.c.l.b16 %v458
    %v750 = vunpack.c.h.b16 %v458
    %v751 = vunpack.c.l.b16 %v459
    %v752 = vunpack.c.l.b16 %v460
    %v753 = vunpack.c.h.b16 %v460
    %v754 = vunpack.c.l.b16 %v461
    %v755 = vunpack.c.l.b16 %v462
    %v756 = vunpack.c.h.b16 %v462
    %v757 = vunpack.c.l.b16 %v463
    %v758 = vunpack.c.l.b16 %v464
    %v759 = vunpack.c.h.b16 %v464
    %v760 = vunpack.c.l.b16 %v465
    %v761 = vunpack.c.l.b16 %v466
    %v762 = vunpack.c.h.b16 %v466
    %v763 = vunpack.c.l.b16 %v467
    %v764 = vunpack.c.l.b16 %v468
    %v765 = vunpack.c.h.b16 %v468
    %v766 = vunpack.c.l.b16 %v469
    %v767 = vunpack.c.l.b16 %v470
    %v768 = vunpack.c.h.b16 %v470
    %v769 = vunpack.c.l.b16 %v471
    %v770 = vunpack.c.l.b16 %v472
    %v771 = vunpack.c.h.b16 %v472
    %v772 = vunpack.c.l.b16 %v473
    %v773 = vunpack.c.l.b16 %v474
    %v774 = vunpack.c.h.b16 %v474
    %v775 = vunpack.c.l.b16 %v475
    %v776 = vunpack.c.l.b16 %v476
    %v777 = vunpack.c.h.b16 %v476
    %v778 = vunpack.c.l.b16 %v477
    %v779 = vunpack.c.l.b16 %v478
    %v780 = vunpack.c.h.b16 %v478
    %v781 = vunpack.c.l.b16 %v479
    %v782 = vunpack.c.l.b16 %v480
    %v783 = vunpack.c.h.b16 %v480
    %v784 = vunpack.c.l.b16 %v481
    %v785 = vunpack.c.l.b16 %v482
    %v786 = vunpack.c.h.b16 %v482
    %v787 = vunpack.c.l.b16 %v483
    %v788 = vunpack.c.l.b16 %v484
    %v789 = vunpack.c.h.b16 %v484
    %v790 = vunpack.c.l.b16 %v485
    %v791 = vunpack.c.l.b16 %v486
    %v792 = vunpack.c.h.b16 %v486
    %v793 = vunpack.c.l.b16 %v487
    %v794 = vunpack.c.l.b16 %v488
    %v795 = vunpack.c.h.b16 %v488
    %v796 = vunpack.c.l.b16 %v489
    %v797 = vunpack.c.l.b16 %v490
    %v798 = vunpack.c.h.b16 %v490
    %v799 = vunpack.c.l.b16 %v491
    %v800 = vunpack.c.l.b16 %v492
    %v801 = vunpack.c.h.b16 %v492
    %v802 = vunpack.c.l.b16 %v493
    %v803 = vunpack.c.l.b16 %v494
    %v804 = vunpack.c.h.b16 %v494
    %v805 = vunpack.c.l.b16 %v495
    %v806 = vunpack.c.l.b16 %v496
    %v807 = vunpack.c.h.b16 %v496
    %v808 = vunpack.c.l.b16 %v497
    %v809 = vunpack.c.l.b16 %v498
    %v810 = vunpack.c.h.b16 %v498
    %v811 = vunpack.c.l.b16 %v499
    %v812 = vunpack.c.l.b16 %v500
    %v813 = vunpack.c.h.b16 %v500
    %v814 = vunpack.c.l.b16 %v501
    %v815 = vunpack.c.l.b16 %v502
    %v816 = vunpack.c.h.b16 %v502
    %v817 = vunpack.c.l.b16 %v503
    %v818 = vunpack.c.l.b16 %v504
    %v819 = vunpack.c.h.b16 %v504
    %v820 = vunpack.c.l.b16 %v505
    %v821 = vunpack.c.l.b16 %v506
    %v822 = vunpack.c.h.b16 %v506
    %v823 = vunpack.c.l.b16 %v507
    %v824 = vunpack.c.l.b16 %v508
    %v825 = vunpack.c.h.b16 %v508
    %v826 = vunpack.c.l.b16 %v509
    %v827 = vunpack.c.l.b16 %v510
    %v828 = vunpack.c.h.b16 %v510
    %v829 = vunpack.c.l.b16 %v511
    %v830 = vunpack.c.l.b16 %v512
    %v831 = vunpack.c.h.b16 %v512
    %v832 = vunpack.c.l.b16 %v513
    %v833 = vunpack.c.l.b16 %v514
    %v834 = vunpack.c.h.b16 %v514
    %v835 = vunpack.c.l.b16 %v515
    %v836 = vunpack.c.l.b16 %v516
    %v837 = vunpack.c.h.b16 %v516
    %v838 = vunpack.c.l.b16 %v517
    %v839 = vunpack.c.l.b16 %v518
    %v840 = vunpack.c.h.b16 %v518
    %v841 = vunpack.c.l.b16 %v519
    %v842 = vunpack.c.l.b16 %v520
    %v843 = vunpack.c.h.b16 %v520
    %v844 = vunpack.c.l.b16 %v521
    %v845 = vunpack.c.l.b16 %v522
    %v846 = vunpack.c.h.b16 %v522
    %v847 = vunpack.c.l.b16 %v523
    %v848 = vunpack.c.l.b16 %v524
    %v849 = vunpack.c.h.b16 %v524
    %v850 = vunpack.c.l.b16 %v525
    %v851 = vunpack.c.l.b16 %v526
    %v852 = vunpack.c.h.b16 %v526
    %v853 = vunpack.c.l.b16 %v527
    %v854 = vunpack.c.l.b16 %v528
    %v855 = vunpack.c.h.b16 %v528
    %v856 = vunpack.c.l.b16 %v529
    %v857 = vunpack.c.l.b16 %v530
    %v858 = vunpack.c.h.b16 %v530
    %v859 = vunpack.c.l.b16 %v531
    %v860 = vunpack.c.l.b16 %v532
    %v861 = vunpack.c.h.b16 %v532
    %v862 = vunpack.c.l.b16 %v533
    %v863 = vunpack.c.l.b16 %v534
    %v864 = vunpack.c.h.b16 %v534
    %v865 = vunpack.c.l.b16 %v535
    %v866 = vunpack.c.l.b16 %v536
    %v867 = vunpack.c.h.b16 %v536
    %v868 = vunpack.c.l.b16 %v537
    %v869 = vunpack.c.l.b16 %v538
    %v870 = vunpack.c.h.b16 %v538
    %v871 = vunpack.c.l.b16 %v539
    %v872 = vunpack.c.l.b16 %v540
    %v873 = vunpack.c.h.b16 %v540
    %v874 = vunpack.c.l.b16 %v541
    %v875 = vunpack.c.l.b16 %v542
    %v876 = vunpack.c.h.b16 %v542
    %v877 = vunpack.c.l.b16 %v543
    %v878 = vunpack.c.l.b16 %v544
    %v879 = vunpack.c.h.b16 %v544
    %v880 = vunpack.c.l.b16 %v545
    %v881 = vunpack.c.l.b16 %v546
    %v882 = vunpack.c.h.b16 %v546
    %v883 = vunpack.c.l.b16 %v547
    %v884 = vunpack.c.l.b16 %v548
    %v885 = vunpack.c.h.b16 %v548
    %v886 = vunpack.c.l.b16 %v549
    %v887 = vpack.c.b16 %v698, %v695
    %v888 = vpack.c.b16 %v699, %v696
    %v889 = vpack.c.b16 %v700, %v697
    %v890 = vpack.c.b16 %v704, %v701
    %v891 = vpack.c.b16 %v705, %v702
    %v892 = vpack.c.b16 %v706, %v703
    %v893 = vpack.c.b16 %v710, %v707
    %v894 = vpack.c.b16 %v711, %v708
    %v895 = vpack.c.b16 %v712, %v709
    %v896 = vpack.c.b16 %v716, %v713
    %v897 = vpack.c.b16 %v717, %v714
    %v898 = vpack.c.b16 %v718, %v715
    %v899 = vpack.c.b16 %v722, %v719
    %v900 = vpack.c.b16 %v723, %v720
    %v901 = vpack.c.b16 %v724, %v721
    %v902 = vpack.c.b16 %v728, %v725
    %v903 = vpack.c.b16 %v729, %v726
    %v904 = vpack.c.b16 %v730, %v727
    %v905 = vpack.c.b16 %v734, %v731
    %v906 = vpack.c.b16 %v735, %v732
    %v907 = vpack.c.b16 %v736, %v733
    %v908 = vpack.c.b16 %v740, %v737
    %v909 = vpack.c.b16 %v741, %v738
    %v910 = vpack.c.b16 %v742, %v739
    %v911 = vpack.c.b16 %v746, %v743
    %v912 = vpack.c.b16 %v747, %v744
    %v913 = vpack.c.b16 %v748, %v745
    %v914 = vpack.c.b16 %v752, %v749
    %v915 = vpack.c.b16 %v753, %v750
    %v916 = vpack.c.b16 %v754, %v751
    %v917 = vpack.c.b16 %v758, %v755
    %v918 = vpack.c.b16 %v759, %v756
    %v919 = vpack.c.b16 %v760, %v757
    %v920 = vpack.c.b16 %v764, %v761
    %v921 = vpack.c.b16 %v765, %v762
    %v922 = vpack.c.b16 %v766, %v763
    %v923 = vpack.c.b16 %v770, %v767
    %v924 = vpack.c.b16 %v771, %v768
    %v925 = vpack.c.b16 %v772, %v769
    %v926 = vpack.c.b16 %v776, %v773
    %v927 = vpack.c.b16 %v777, %v774
    %v928 = vpack.c.b16 %v778, %v775
    %v929 = vpack.c.b16 %v782, %v779
    %v930 = vpack.c.b16 %v783, %v780
    %v931 = vpack.c.b16 %v784, %v781
    %v932 = vpack.c.b16 %v788, %v785
    %v933 = vpack.c.b16 %v789, %v786
    %v934 = vpack.c.b16 %v790, %v787
    %v935 = vpack.c.b16 %v794, %v791
    %v936 = vpack.c.b16 %v795, %v792
    %v937 = vpack.c.b16 %v796, %v793
    %v938 = vpack.c.b16 %v800, %v797
    %v939 = vpack.c.b16 %v801, %v798
    %v940 = vpack.c.b16 %v802, %v799
    %v941 = vpack.c.b16 %v806, %v803
    %v942 = vpack.c.b16 %v807, %v804
    %v943 = vpack.c.b16 %v808, %v805
    %v944 = vpack.c.b16 %v812, %v809
    %v945 = vpack.c.b16 %v813, %v810
    %v946 = vpack.c.b16 %v814, %v811
    %v947 = vpack.c.b16 %v818, %v815
    %v948 = vpack.c.b16 %v819, %v816
    %v949 = vpack.c.b16 %v820, %v817
    %v950 = vpack.c.b16 %v824, %v821
    %v951 = vpack.c.b16 %v825, %v822
    %v952 = vpack.c.b16 %v826, %v823
    %v953 = vpack.c.b16 %v830, %v827
    %v954 = vpack.c.b16 %v831, %v828
    %v955 = vpack.c.b16 %v832, %v829
    %v956 = vpack.c.b16 %v836, %v833
    %v957 = vpack.c.b16 %v837, %v834
    %v958 = vpack.c.b16 %v838, %v835
    %v959 = vpack.c.b16 %v842, %v839
    %v960 = vpack.c.b16 %v843, %v840
    %v961 = vpack.c.b16 %v844, %v841
    %v962 = vpack.c.b16 %v848, %v845
    %v963 = vpack.c.b16 %v849, %v846
    %v964 = vpack.c.b16 %v850, %v847
    %v965 = vpack.c.b16 %v854, %v851
    %v966 = vpack.c.b16 %v855, %v852
    %v967 = vpack.c.b16 %v856, %v853
    %v968 = vpack.c.b16 %v860, %v857
    %v969 = vpack.c.b16 %v861, %v858
    %v970 = vpack.c.b16 %v862, %v859
    %v971 = vpack.c.b16 %v866, %v863
    %v972 = vpack.c.b16 %v867, %v864
    %v973 = vpack.c.b16 %v868, %v865
    %v974 = vpack.c.b16 %v872, %v869
    %v975 = vpack.c.b16 %v873, %v870
    %v976 = vpack.c.b16 %v874, %v871
    %v977 = vpack.c.b16 %v878, %v875
    %v978 = vpack.c.b16 %v879, %v876
    %v979 = vpack.c.b16 %v880, %v877
    %v980 = vpack.c.b16 %v884, %v881
    %v981 = vpack.c.b16 %v885, %v882
    %v982 = vpack.c.b16 %v886, %v883
    %1079 = vmatprep.subr.bf16.mxu0 %v888
    %1080 = vmatpush1.bf16.msra.mxu0 %v887
    %1081 = vmatprep.subr.bf16.mxu0 %v891
    %1082 = vmatpush1.bf16.msra.mxu0 %v890
    %1083 = vmatprep.subr.bf16.mxu0 %v894
    %1084 = vmatpush1.bf16.msra.mxu0 %v893
    %1085 = vmatprep.subr.bf16.mxu0 %v897
    %1086 = vmatpush1.bf16.msra.mxu0 %v896
    %1087 = vmatprep.subr.bf16.mxu0 %v900
    %1088 = vmatpush1.bf16.msra.mxu0 %v899
    %1089 = vmatprep.subr.bf16.mxu0 %v903
    %1090 = vmatpush1.bf16.msra.mxu0 %v902
    %1091 = vmatprep.subr.bf16.mxu0 %v906
    %1092 = vmatpush1.bf16.msra.mxu0 %v905
    %1093 = vmatprep.subr.bf16.mxu0 %v909
    %1094 = vmatpush1.bf16.msra.mxu0 %v908
    %1095 = vmatprep.subr.bf16.mxu0 %v912
    %1096 = vmatpush1.bf16.msra.mxu0 %v911
    %1097 = vmatprep.subr.bf16.mxu0 %v915
    %1098 = vmatpush1.bf16.msra.mxu0 %v914
    %1099 = vmatprep.subr.bf16.mxu0 %v918
    %1100 = vmatpush1.bf16.msra.mxu0 %v917
    %1101 = vmatprep.subr.bf16.mxu0 %v921
    %1102 = vmatpush1.bf16.msra.mxu0 %v920
    %1103 = vmatprep.subr.bf16.mxu0 %v924
    %1104 = vmatpush1.bf16.msra.mxu0 %v923
    %1105 = vmatprep.subr.bf16.mxu0 %v927
    %1106 = vmatpush1.bf16.msra.mxu0 %v926
    %1107 = vmatprep.subr.bf16.mxu0 %v930
    %1108 = vmatpush1.bf16.msra.mxu0 %v929
    %1109 = vmatprep.subr.bf16.mxu0 %v933
    %1110 = vmatpush1.bf16.msra.mxu0 %v932
    %1111 = vmatprep.mubr.bf16.mxu0 %v419
    %1112 = vmatmul.mubr.bf16.gmra.mrb[0].mxu0 %v418
    %v1113 = vpop.f32.mrb[0].mxu0
    %v1114 = vadd.f32 %v555, %v1113
    %v1115 = vpop.f32.mrb[0].mxu0
    %v1116 = vadd.f32 %v559, %v1115
    %v1117 = vpop.f32.mrb[0].mxu0
    %v1118 = vadd.f32 %v555, %v1117
    %v1119 = vpop.f32.mrb[0].mxu0
    %v1120 = vadd.f32 %v559, %v1119
    %1121 = vdwg.mxu0
    %1122 = vmatprep.subr.bf16.mxu0 %v936
    %1123 = vmatpush1.bf16.msra.mxu0 %v935
    %1124 = vmatprep.subr.bf16.mxu0 %v939
    %1125 = vmatpush1.bf16.msra.mxu0 %v938
    %1126 = vmatprep.subr.bf16.mxu0 %v942
    %1127 = vmatpush1.bf16.msra.mxu0 %v941
    %1128 = vmatprep.subr.bf16.mxu0 %v945
    %1129 = vmatpush1.bf16.msra.mxu0 %v944
    %1130 = vmatprep.subr.bf16.mxu0 %v948
    %1131 = vmatpush1.bf16.msra.mxu0 %v947
    %1132 = vmatprep.subr.bf16.mxu0 %v951
    %1133 = vmatpush1.bf16.msra.mxu0 %v950
    %1134 = vmatprep.subr.bf16.mxu0 %v954
    %1135 = vmatpush1.bf16.msra.mxu0 %v953
    %1136 = vmatprep.subr.bf16.mxu0 %v957
    %1137 = vmatpush1.bf16.msra.mxu0 %v956
    %1138 = vmatprep.subr.bf16.mxu0 %v960
    %1139 = vmatpush1.bf16.msra.mxu0 %v959
    %1140 = vmatprep.subr.bf16.mxu0 %v963
    %1141 = vmatpush1.bf16.msra.mxu0 %v962
    %1142 = vmatprep.subr.bf16.mxu0 %v966
    %1143 = vmatpush1.bf16.msra.mxu0 %v965
    %1144 = vmatprep.subr.bf16.mxu0 %v969
    %1145 = vmatpush1.bf16.msra.mxu0 %v968
    %1146 = vmatprep.subr.bf16.mxu0 %v972
    %1147 = vmatpush1.bf16.msra.mxu0 %v971
    %1148 = vmatprep.subr.bf16.mxu0 %v975
    %1149 = vmatpush1.bf16.msra.mxu0 %v974
    %1150 = vmatprep.subr.bf16.mxu0 %v978
    %1151 = vmatpush1.bf16.msra.mxu0 %v977
    %1152 = vmatprep.subr.bf16.mxu0 %v981
    %1153 = vmatpush1.bf16.msra.mxu0 %v980
    %1154 = vmatprep.mubr.bf16.mxu0 %v421
    %1155 = vmatmul.mubr.bf16.gmra.mrb[0].mxu0 %v420
    %v1156 = vpop.f32.mrb[0].mxu0
    %v1157 = vadd.f32 %v1114, %v1156
    %v1158 = vpop.f32.mrb[0].mxu0
    %v1159 = vadd.f32 %v1116, %v1158
    %v1160 = vpop.f32.mrb[0].mxu0
    %v1161 = vadd.f32 %v1118, %v1160
    %v1162 = vpop.f32.mrb[0].mxu0
    %v1163 = vadd.f32 %v1120, %v1162
    %1164 = vdwg.mxu0
    %1165 = vmatprep.subr.bf16.mxu0 0
    %1166 = vmatpush1.bf16.msra.mxu0 %v889
    %1167 = vmatprep.subr.bf16.mxu0 0
    %1168 = vmatpush1.bf16.msra.mxu0 %v892
    %1169 = vmatprep.subr.bf16.mxu0 0
    %1170 = vmatpush1.bf16.msra.mxu0 %v895
    %1171 = vmatprep.subr.bf16.mxu0 0
    %1172 = vmatpush1.bf16.msra.mxu0 %v898
    %1173 = vmatprep.subr.bf16.mxu0 0
    %1174 = vmatpush1.bf16.msra.mxu0 %v901
    %1175 = vmatprep.subr.bf16.mxu0 0
    %1176 = vmatpush1.bf16.msra.mxu0 %v904
    %1177 = vmatprep.subr.bf16.mxu0 0
    %1178 = vmatpush1.bf16.msra.mxu0 %v907
    %1179 = vmatprep.subr.bf16.mxu0 0
    %1180 = vmatpush1.bf16.msra.mxu0 %v910
    %1181 = vmatprep.subr.bf16.mxu0 0
    %1182 = vmatpush1.bf16.msra.mxu0 %v913
    %1183 = vmatprep.subr.bf16.mxu0 0
    %1184 = vmatpush1.bf16.msra.mxu0 %v916
    %1185 = vmatprep.subr.bf16.mxu0 0
    %1186 = vmatpush1.bf16.msra.mxu0 %v919
    %1187 = vmatprep.subr.bf16.mxu0 0
    %1188 = vmatpush1.bf16.msra.mxu0 %v922
    %1189 = vmatprep.subr.bf16.mxu0 0
    %1190 = vmatpush1.bf16.msra.mxu0 %v925
    %1191 = vmatprep.subr.bf16.mxu0 0
    %1192 = vmatpush1.bf16.msra.mxu0 %v928
    %1193 = vmatprep.subr.bf16.mxu0 0
    %1194 = vmatpush1.bf16.msra.mxu0 %v931
    %1195 = vmatprep.subr.bf16.mxu0 0
    %1196 = vmatpush1.bf16.msra.mxu0 %v934
    %1197 = vmatprep.mubr.bf16.mxu0 %v419
    %1198 = vmatmul.mubr.bf16.gmra.mrb[0].mxu0 %v418
    %v1199 = vpop.f32.mrb[0].mxu0
    %v1200 = vadd.f32 %v563, %v1199
    %v1201 = vpop.f32.mrb[0].mxu0
    %v1202 = vpop.f32.mrb[0].mxu0
    %v1203 = vadd.f32 %v563, %v1202
    %v1204 = vpop.f32.mrb[0].mxu0
    %1205 = vdwg.mxu0
    %1206 = vmatprep.subr.bf16.mxu0 0
    %1207 = vmatpush1.bf16.msra.mxu0 %v937
    %1208 = vmatprep.subr.bf16.mxu0 0
    %1209 = vmatpush1.bf16.msra.mxu0 %v940
    %1210 = vmatprep.subr.bf16.mxu0 0
    %1211 = vmatpush1.bf16.msra.mxu0 %v943
    %1212 = vmatprep.subr.bf16.mxu0 0
    %1213 = vmatpush1.bf16.msra.mxu0 %v946
    %1214 = vmatprep.subr.bf16.mxu0 0
    %1215 = vmatpush1.bf16.msra.mxu0 %v949
    %1216 = vmatprep.subr.bf16.mxu0 0
    %1217 = vmatpush1.bf16.msra.mxu0 %v952
    %1218 = vmatprep.subr.bf16.mxu0 0
    %1219 = vmatpush1.bf16.msra.mxu0 %v955
    %1220 = vmatprep.subr.bf16.mxu0 0
    %1221 = vmatpush1.bf16.msra.mxu0 %v958
    %1222 = vmatprep.subr.bf16.mxu0 0
    %1223 = vmatpush1.bf16.msra.mxu0 %v961
    %1224 = vmatprep.subr.bf16.mxu0 0
    %1225 = vmatpush1.bf16.msra.mxu0 %v964
    %1226 = vmatprep.subr.bf16.mxu0 0
    %1227 = vmatpush1.bf16.msra.mxu0 %v967
    %1228 = vmatprep.subr.bf16.mxu0 0
    %1229 = vmatpush1.bf16.msra.mxu0 %v970
    %1230 = vmatprep.subr.bf16.mxu0 0
    %1231 = vmatpush1.bf16.msra.mxu0 %v973
    %1232 = vmatprep.subr.bf16.mxu0 0
    %1233 = vmatpush1.bf16.msra.mxu0 %v976
    %1234 = vmatprep.subr.bf16.mxu0 0
    %1235 = vmatpush1.bf16.msra.mxu0 %v979
    %1236 = vmatprep.subr.bf16.mxu0 0
    %1237 = vmatpush1.bf16.msra.mxu0 %v982
    %1238 = vmatprep.mubr.bf16.mxu0 %v421
    %1239 = vmatmul.mubr.bf16.gmra.mrb[0].mxu0 %v420
    %v1240 = vpop.f32.mrb[0].mxu0
    %v1241 = vadd.f32 %v1200, %v1240
    %v1242 = vpop.f32.mrb[0].mxu0
    %v1243 = vpop.f32.mrb[0].mxu0
    %v1244 = vadd.f32 %v1203, %v1243
    %v1245 = vpop.f32.mrb[0].mxu0
    %1246 = vdwg.mxu0
    %v1247 = vmax.f32 %v1157, 0.0
    %v1248 = vmax.f32 %v1159, 0.0
    %v1249 = vmax.f32 %v1241, 0.0
    %v1250 = vmax.f32 %v1161, 0.0
    %v1251 = vmax.f32 %v1163, 0.0
    %v1252 = vmax.f32 %v1244, 0.0
    %v1253 = vpack.c.bf16 %v1250, %v1247
    %v1254 = vpack.c.bf16 %v1251, %v1248
    %v1255 = vpack.c.bf16 %v1252, %v1249
    %v1256 = vld [vmem:[#allocation8] sm:$0xf]
    %v1257 = vld [vmem:[#allocation8 + $0x4] sm:$0xf]
    %v1258 = vld [vmem:[#allocation8 + $0x8] sm:$0xf]
    %v1259 = vld [vmem:[#allocation8 + $0xc] sm:$0xf]
    %v1260 = vld [vmem:[#allocation8 + $0x10] sm:$0xf]
    %v1261 = vld [vmem:[#allocation8 + $0x14] sm:$0xf]
    %v1262 = vld [vmem:[#allocation8 + $0x18] sm:$0xf]
    %v1263 = vld [vmem:[#allocation8 + $0x1c] sm:$0xf]
    %v1264 = vld [vmem:[#allocation8 + $0x20] sm:$0xf]
    %v1265 = vld [vmem:[#allocation8 + $0x24] sm:$0xf]
    %v1266 = vld [vmem:[#allocation8 + $0x28] sm:$0xf]
    %v1267 = vld [vmem:[#allocation8 + $0x2c] sm:$0xf]
    %v1268 = vld [vmem:[#allocation8 + $0x30] sm:$0xf]
    %v1269 = vld [vmem:[#allocation8 + $0x34] sm:$0xf]
    %v1270 = vld [vmem:[#allocation8 + $0x38] sm:$0xf]
    %v1271 = vld [vmem:[#allocation8 + $0x3c] sm:$0xf]
    %v1272 = vld [vmem:[#allocation8 + $0x40] sm:$0xf]
    %v1273 = vld [vmem:[#allocation8 + $0x44] sm:$0xf]
    %v1274 = vld [vmem:[#allocation8 + $0x48] sm:$0xf]
    %v1275 = vld [vmem:[#allocation8 + $0x4c] sm:$0xf]
    %v1276 = vld [vmem:[#allocation8 + $0x50] sm:$0xf]
    %v1277 = vld [vmem:[#allocation8 + $0x54] sm:$0xf]
    %v1278 = vld [vmem:[#allocation8 + $0x58] sm:$0xf]
    %v1279 = vld [vmem:[#allocation8 + $0x5c] sm:$0xf]
    %v1280 = vld [vmem:[#allocation8 + $0x60] sm:$0xf]
    %v1281 = vld [vmem:[#allocation8 + $0x64] sm:$0xf]
    %v1282 = vld [vmem:[#allocation8 + $0x68] sm:$0xf]
    %v1283 = vld [vmem:[#allocation8 + $0x6c] sm:$0xf]
    %v1284 = vld [vmem:[#allocation8 + $0x70] sm:$0xf]
    %v1285 = vld [vmem:[#allocation8 + $0x74] sm:$0xf]
    %v1286 = vld [vmem:[#allocation8 + $0x78] sm:$0xf]
    %v1287 = vld [vmem:[#allocation8 + $0x7c] sm:$0xf]
    %v1288 = vld [vmem:[#allocation8 + $0x80] sm:$0xf]
    %v1289 = vld [vmem:[#allocation8 + $0x84] sm:$0xf]
    %v1290 = vld [vmem:[#allocation8 + $0x88] sm:$0xf]
    %v1291 = vld [vmem:[#allocation8 + $0x8c] sm:$0xf]
    %v1292 = vld [vmem:[#allocation8 + $0x90] sm:$0xf]
    %v1293 = vld [vmem:[#allocation8 + $0x94] sm:$0xf]
    %v1294 = vld [vmem:[#allocation8 + $0x98] sm:$0xf]
    %v1295 = vld [vmem:[#allocation8 + $0x9c] sm:$0xf]
    %v1296 = vld [vmem:[#allocation8 + $0xa0] sm:$0xf]
    %v1297 = vld [vmem:[#allocation8 + $0xa4] sm:$0xf]
    %v1298 = vld [vmem:[#allocation8 + $0xa8] sm:$0xf]
    %v1299 = vld [vmem:[#allocation8 + $0xac] sm:$0xf]
    %v1300 = vld [vmem:[#allocation8 + $0xb0] sm:$0xf]
    %v1301 = vld [vmem:[#allocation8 + $0xb4] sm:$0xf]
    %v1302 = vld [vmem:[#allocation8 + $0xb8] sm:$0xf]
    %v1303 = vld [vmem:[#allocation8 + $0xbc] sm:$0xf]
    %v1304 = vld [vmem:[%s6] sm:$0x1]
    %v1306 = vlaneseq
    %v1307 = vshrl.u32 %v1306, 7
    %v1308 = vsub.s32 0, %v1307
    %v1309 = vrot.slane %v1304, %v1308
    %v1359 = vunpack.c.l.b16 %v1256
    %v1360 = vunpack.c.l.b16 %v1257
    %v1361 = vunpack.c.l.b16 %v1258
    %v1362 = vunpack.c.l.b16 %v1259
    %v1363 = vunpack.c.l.b16 %v1260
    %v1364 = vunpack.c.l.b16 %v1261
    %v1365 = vunpack.c.l.b16 %v1262
    %v1366 = vunpack.c.l.b16 %v1263
    %v1367 = vunpack.c.l.b16 %v1264
    %v1368 = vunpack.c.l.b16 %v1265
    %v1369 = vunpack.c.l.b16 %v1266
    %v1370 = vunpack.c.l.b16 %v1267
    %v1371 = vunpack.c.l.b16 %v1268
    %v1372 = vunpack.c.l.b16 %v1269
    %v1373 = vunpack.c.l.b16 %v1270
    %v1374 = vunpack.c.l.b16 %v1271
    %v1375 = vunpack.c.l.b16 %v1272
    %v1376 = vunpack.c.l.b16 %v1273
    %v1377 = vunpack.c.l.b16 %v1274
    %v1378 = vunpack.c.l.b16 %v1275
    %v1379 = vunpack.c.l.b16 %v1276
    %v1380 = vunpack.c.l.b16 %v1277
    %v1381 = vunpack.c.l.b16 %v1278
    %v1382 = vunpack.c.l.b16 %v1279
    %v1383 = vunpack.c.l.b16 %v1280
    %v1384 = vunpack.c.l.b16 %v1281
    %v1385 = vunpack.c.l.b16 %v1282
    %v1386 = vunpack.c.l.b16 %v1283
    %v1387 = vunpack.c.l.b16 %v1284
    %v1388 = vunpack.c.l.b16 %v1285
    %v1389 = vunpack.c.l.b16 %v1286
    %v1390 = vunpack.c.l.b16 %v1287
    %v1391 = vunpack.c.l.b16 %v1288
    %v1392 = vunpack.c.l.b16 %v1289
    %v1393 = vunpack.c.l.b16 %v1290
    %v1394 = vunpack.c.l.b16 %v1291
    %v1395 = vunpack.c.l.b16 %v1292
    %v1396 = vunpack.c.l.b16 %v1293
    %v1397 = vunpack.c.l.b16 %v1294
    %v1398 = vunpack.c.l.b16 %v1295
    %v1399 = vunpack.c.l.b16 %v1296
    %v1400 = vunpack.c.l.b16 %v1297
    %v1401 = vunpack.c.l.b16 %v1298
    %v1402 = vunpack.c.l.b16 %v1299
    %v1403 = vunpack.c.l.b16 %v1300
    %v1404 = vunpack.c.l.b16 %v1301
    %v1405 = vunpack.c.l.b16 %v1302
    %v1406 = vunpack.c.l.b16 %v1303
    %v1407 = vpack.c.b16 %v1360, %v1359
    %v1408 = vpack.c.b16 %v1362, %v1361
    %v1409 = vpack.c.b16 %v1364, %v1363
    %v1410 = vpack.c.b16 %v1366, %v1365
    %v1411 = vpack.c.b16 %v1368, %v1367
    %v1412 = vpack.c.b16 %v1370, %v1369
    %v1413 = vpack.c.b16 %v1372, %v1371
    %v1414 = vpack.c.b16 %v1374, %v1373
    %v1415 = vpack.c.b16 %v1376, %v1375
    %v1416 = vpack.c.b16 %v1378, %v1377
    %v1417 = vpack.c.b16 %v1380, %v1379
    %v1418 = vpack.c.b16 %v1382, %v1381
    %v1419 = vpack.c.b16 %v1384, %v1383
    %v1420 = vpack.c.b16 %v1386, %v1385
    %v1421 = vpack.c.b16 %v1388, %v1387
    %v1422 = vpack.c.b16 %v1390, %v1389
    %v1423 = vpack.c.b16 %v1392, %v1391
    %v1424 = vpack.c.b16 %v1394, %v1393
    %v1425 = vpack.c.b16 %v1396, %v1395
    %v1426 = vpack.c.b16 %v1398, %v1397
    %v1427 = vpack.c.b16 %v1400, %v1399
    %v1428 = vpack.c.b16 %v1402, %v1401
    %v1429 = vpack.c.b16 %v1404, %v1403
    %v1430 = vpack.c.b16 %v1406, %v1405
    %1455 = vmatprep.subr.bf16.mxu0 0
    %1456 = vmatpush1.bf16.msra.mxu0 %v1407
    %1457 = vmatprep.subr.bf16.mxu0 0
    %1458 = vmatpush1.bf16.msra.mxu0 %v1408
    %1459 = vmatprep.subr.bf16.mxu0 0
    %1460 = vmatpush1.bf16.msra.mxu0 %v1409
    %1461 = vmatprep.subr.bf16.mxu0 0
    %1462 = vmatpush1.bf16.msra.mxu0 %v1410
    %1463 = vmatprep.subr.bf16.mxu0 0
    %1464 = vmatpush1.bf16.msra.mxu0 %v1411
    %1465 = vmatprep.subr.bf16.mxu0 0
    %1466 = vmatpush1.bf16.msra.mxu0 %v1412
    %1467 = vmatprep.subr.bf16.mxu0 0
    %1468 = vmatpush1.bf16.msra.mxu0 %v1413
    %1469 = vmatprep.subr.bf16.mxu0 0
    %1470 = vmatpush1.bf16.msra.mxu0 %v1414
    %1471 = vmatprep.subr.bf16.mxu0 0
    %1472 = vmatpush1.bf16.msra.mxu0 %v1415
    %1473 = vmatprep.subr.bf16.mxu0 0
    %1474 = vmatpush1.bf16.msra.mxu0 %v1416
    %1475 = vmatprep.subr.bf16.mxu0 0
    %1476 = vmatpush1.bf16.msra.mxu0 %v1417
    %1477 = vmatprep.subr.bf16.mxu0 0
    %1478 = vmatpush1.bf16.msra.mxu0 %v1418
    %1479 = vmatprep.subr.bf16.mxu0 0
    %1480 = vmatpush1.bf16.msra.mxu0 %v1419
    %1481 = vmatprep.subr.bf16.mxu0 0
    %1482 = vmatpush1.bf16.msra.mxu0 %v1420
    %1483 = vmatprep.subr.bf16.mxu0 0
    %1484 = vmatpush1.bf16.msra.mxu0 %v1421
    %1485 = vmatprep.subr.bf16.mxu0 0
    %1486 = vmatpush1.bf16.msra.mxu0 %v1422
    %1487 = vmatprep.mubr.bf16.mxu0 %v1254
    %1488 = vmatmul.mubr.bf16.gmra.mrb[0].mxu0 %v1253
    %v1489 = vpop.f32.mrb[0].mxu0
    %v1490 = vadd.f32 %v1309, %v1489
    %v1491 = vpop.f32.mrb[0].mxu0
    %v1492 = vpop.f32.mrb[0].mxu0
    %v1493 = vadd.f32 %v1309, %v1492
    %v1494 = vpop.f32.mrb[0].mxu0
    %1495 = vdwg.mxu0
    %1496 = vmatprep.subr.bf16.mxu0 0
    %1497 = vmatpush1.bf16.msra.mxu0 %v1423
    %1498 = vmatprep.subr.bf16.mxu0 0
    %1499 = vmatpush1.bf16.msra.mxu0 %v1424
    %1500 = vmatprep.subr.bf16.mxu0 0
    %1501 = vmatpush1.bf16.msra.mxu0 %v1425
    %1502 = vmatprep.subr.bf16.mxu0 0
    %1503 = vmatpush1.bf16.msra.mxu0 %v1426
    %1504 = vmatprep.subr.bf16.mxu0 0
    %1505 = vmatpush1.bf16.msra.mxu0 %v1427
    %1506 = vmatprep.subr.bf16.mxu0 0
    %1507 = vmatpush1.bf16.msra.mxu0 %v1428
    %1508 = vmatprep.subr.bf16.mxu0 0
    %1509 = vmatpush1.bf16.msra.mxu0 %v1429
    %1510 = vmatprep.subr.bf16.mxu0 0
    %1511 = vmatpush1.bf16.msra.mxu0 %v1430
    %1512 = vmatprep.subr.bf16.mxu0 0
    %1513 = vmatpush1.bf16.msra.mxu0 0
    %1514 = vmatprep.subr.bf16.mxu0 0
    %1515 = vmatpush1.bf16.msra.mxu0 0
    %1516 = vmatprep.subr.bf16.mxu0 0
    %1517 = vmatpush1.bf16.msra.mxu0 0
    %1518 = vmatprep.subr.bf16.mxu0 0
    %1519 = vmatpush1.bf16.msra.mxu0 0
    %1520 = vmatprep.subr.bf16.mxu0 0
    %1521 = vmatpush1.bf16.msra.mxu0 0
    %1522 = vmatprep.subr.bf16.mxu0 0
    %1523 = vmatpush1.bf16.msra.mxu0 0
    %1524 = vmatprep.subr.bf16.mxu0 0
    %1525 = vmatpush1.bf16.msra.mxu0 0
    %1526 = vmatprep.subr.bf16.mxu0 0
    %1527 = vmatpush1.bf16.msra.mxu0 0
    %1528 = vmatprep.mubr.bf16.mxu0 0
    %1529 = vmatmul.mubr.bf16.gmra.mrb[0].mxu0 %v1255
    %v1530 = vpop.f32.mrb[0].mxu0
    %v1531 = vadd.f32 %v1490, %v1530
    %v1532 = vpop.f32.mrb[0].mxu0
    %v1533 = vpop.f32.mrb[0].mxu0
    %v1534 = vadd.f32 %v1493, %v1533
    %v1535 = vpop.f32.mrb[0].mxu0
    %1536 = vdwg.mxu0
    %v1537 = vtanh.pop %v1531
    %v1538 = vtanh.pop %v1534
    %v1539 = vpack.c.bf16 %v1538, %v1537
    %v1540 = vld [vmem:[#allocation10] sm:$0xf]
    %v1541 = vld [vmem:[#allocation10 + $0x4] sm:$0xf]
    %v1542 = vld [vmem:[#allocation10 + $0x8] sm:$0xf]
    %v1543 = vld [vmem:[#allocation10 + $0xc] sm:$0xf]
    %v1544 = vld [vmem:[#allocation10 + $0x10] sm:$0xf]
    %v1545 = vld [vmem:[#allocation10 + $0x14] sm:$0xf]
    %v1546 = vld [vmem:[#allocation10 + $0x18] sm:$0xf]
    %v1547 = vld [vmem:[#allocation10 + $0x1c] sm:$0xf]
    %v1548 = vld [vmem:[#allocation10 + $0x20] sm:$0xf]
    %v1549 = vld [vmem:[#allocation10 + $0x24] sm:$0xf]
    %v1550 = vld [vmem:[#allocation10 + $0x28] sm:$0xf]
    %v1551 = vld [vmem:[#allocation10 + $0x2c] sm:$0xf]
    %v1552 = vld [vmem:[#allocation10 + $0x30] sm:$0xf]
    %v1553 = vld [vmem:[#allocation10 + $0x34] sm:$0xf]
    %v1554 = vld [vmem:[#allocation10 + $0x38] sm:$0xf]
    %v1555 = vld [vmem:[#allocation10 + $0x3c] sm:$0xf]
    %v1556 = vld [vmem:[%s8] sm:$0x1]
    %v1558 = vlaneseq
    %v1559 = vshrl.u32 %v1558, 7
    %v1560 = vsub.s32 0, %v1559
    %v1561 = vrot.slane %v1556, %v1560
    %v1579 = vunpack.c.l.b16 %v1540
    %v1580 = vunpack.c.l.b16 %v1541
    %v1581 = vunpack.c.l.b16 %v1542
    %v1582 = vunpack.c.l.b16 %v1543
    %v1583 = vunpack.c.l.b16 %v1544
    %v1584 = vunpack.c.l.b16 %v1545
    %v1585 = vunpack.c.l.b16 %v1546
    %v1586 = vunpack.c.l.b16 %v1547
    %v1587 = vunpack.c.l.b16 %v1548
    %v1588 = vunpack.c.l.b16 %v1549
    %v1589 = vunpack.c.l.b16 %v1550
    %v1590 = vunpack.c.l.b16 %v1551
    %v1591 = vunpack.c.l.b16 %v1552
    %v1592 = vunpack.c.l.b16 %v1553
    %v1593 = vunpack.c.l.b16 %v1554
    %v1594 = vunpack.c.l.b16 %v1555
    %v1595 = vpack.c.b16 %v1580, %v1579
    %v1596 = vpack.c.b16 %v1582, %v1581
    %v1597 = vpack.c.b16 %v1584, %v1583
    %v1598 = vpack.c.b16 %v1586, %v1585
    %v1599 = vpack.c.b16 %v1588, %v1587
    %v1600 = vpack.c.b16 %v1590, %v1589
    %v1601 = vpack.c.b16 %v1592, %v1591
    %v1602 = vpack.c.b16 %v1594, %v1593
    %1611 = vmatprep.subr.bf16.mxu0 0
    %1612 = vmatpush1.bf16.msra.mxu0 %v1595
    %1613 = vmatprep.subr.bf16.mxu0 0
    %1614 = vmatpush1.bf16.msra.mxu0 %v1596
    %1615 = vmatprep.subr.bf16.mxu0 0
    %1616 = vmatpush1.bf16.msra.mxu0 %v1597
    %1617 = vmatprep.subr.bf16.mxu0 0
    %1618 = vmatpush1.bf16.msra.mxu0 %v1598
    %1619 = vmatprep.subr.bf16.mxu0 0
    %1620 = vmatpush1.bf16.msra.mxu0 %v1599
    %1621 = vmatprep.subr.bf16.mxu0 0
    %1622 = vmatpush1.bf16.msra.mxu0 %v1600
    %1623 = vmatprep.subr.bf16.mxu0 0
    %1624 = vmatpush1.bf16.msra.mxu0 %v1601
    %1625 = vmatprep.subr.bf16.mxu0 0
    %1626 = vmatpush1.bf16.msra.mxu0 %v1602
    %1627 = vmatprep.subr.bf16.mxu0 0
    %1628 = vmatpush1.bf16.msra.mxu0 0
    %1629 = vmatprep.subr.bf16.mxu0 0
    %1630 = vmatpush1.bf16.msra.mxu0 0
    %1631 = vmatprep.subr.bf16.mxu0 0
    %1632 = vmatpush1.bf16.msra.mxu0 0
    %1633 = vmatprep.subr.bf16.mxu0 0
    %1634 = vmatpush1.bf16.msra.mxu0 0
    %1635 = vmatprep.subr.bf16.mxu0 0
    %1636 = vmatpush1.bf16.msra.mxu0 0
    %1637 = vmatprep.subr.bf16.mxu0 0
    %1638 = vmatpush1.bf16.msra.mxu0 0
    %1639 = vmatprep.subr.bf16.mxu0 0
    %1640 = vmatpush1.bf16.msra.mxu0 0
    %1641 = vmatprep.subr.bf16.mxu0 0
    %1642 = vmatpush1.bf16.msra.mxu0 0
    %1643 = vmatprep.mubr.bf16.mxu0 0
    %1644 = vmatmul.mubr.bf16.gmra.mrb[0].mxu0 %v1539
    %v1645 = vpop.f32.mrb[0].mxu0
    %v1646 = vadd.f32 %v1561, %v1645
    %v1647 = vpop.f32.mrb[0].mxu0
    %v1648 = vpop.f32.mrb[0].mxu0
    %v1649 = vadd.f32 %v1561, %v1648
    %v1650 = vpop.f32.mrb[0].mxu0
    %1651 = vdwg.mxu0
    %v1652 = vtanh.pop %v1646
    %v1653 = vtanh.pop %v1649
    %v1654 = vlaneseq
    %v1655 = vand.u32 %v1654, 127
    %vm1656 = vcmp.lt.s32.totalorder %v1655, 3
    %v1657 = vsel %vm1656, %v1652, -1e+30
    %v1658 = vsel %vm1656, %v1653, -1e+30
    %1659 = vmax.xlane.f32.xlu0 %v1657
    %v1660 = vpop.xlane.xlu0 %1659
    %1661 = vmax.xlane.f32.xlu0 %v1658
    %v1662 = vpop.xlane.xlu0 %1661
    %v1663 = vsub.f32 %v1657, %v1660
    %v1664 = vsub.f32 %v1658, %v1662
    %v1665 = vmul.f32 %v1663, 1.442695
    %v1666 = vpow.pop %v1665
    %v1667 = vmul.f32 %v1664, 1.442695
    %v1668 = vpow.pop %v1667
    %1669 = vadd.xlane.f32.xlu0 %v1666
    %v1670 = vpop.xlane.xlu0 %1669
    %1671 = vadd.xlane.f32.xlu0 %v1668
    %v1672 = vpop.xlane.xlu0 %1671
    %v1673 = vlog2.pop %v1670
    %v1674 = vmul.f32 %v1673, 0.6931472
    %v1675 = vlog2.pop %v1672
    %v1676 = vmul.f32 %v1675, 0.6931472
    %v1677 = vsub.f32 %v1663, %v1674
    %v1678 = vsub.f32 %v1664, %v1676
    %1679 = vst [vmem:[#allocation11] sm:$0xff] %v1677
    %1680 = vst [vmem:[#allocation11 + $0x8] sm:$0xff] %v1678
    // Predicated region
    $region58: #{tpu_custom_call.1} parent=1 // pred_check
      _
    $region59: #{tpu_custom_call.1} parent=1 // pred_check_branch
      %1682 = sbr.rel (0) target = $region61
    $region60: #{tpu_custom_call.1} parent=1 // pred_region
      %s1684 = ssub.s32 256, 256
      %1685 = vsyncadd [#allocation4], %s1684
      %s1686 = sshll.u32 [#allocation11], 4
      %s1687 = int_to_ptr.vmem [resolvable:$true] %s1686
      %1692 = dma.vmem_to_hbm [thread:$0]  %s1687, 256, %s9, [#allocation4], 128, 128, 8
    $region61: #{tpu_custom_call.1} parent=1 // pred_fallthru
      _
    // Predicated region
    $region62: #{tpu_custom_call.1} parent=1 // pred_check
      _
    $region63: #{tpu_custom_call.1} parent=1 // pred_check_branch
      %1694 = sbr.rel (0) target = $region65
    $region64: #{tpu_custom_call.1} parent=1 // pred_region
      %1695 = dma.done [#allocation4], 256
    $region65: #{tpu_custom_call.1} parent=1 // pred_fallthru
      _
    %1696 = vsyncpa [#allocation3], 1
    %1697 = vsyncpa [#allocation6], 1
    %1698 = vsyncpa [#allocation9], 1
    %1699 = vsyncpa [#allocation4], 1

</llo_original>
